<compile_context>
chip_gen: v7x
topology: tpu7x:2x2x1
jax: 0.10.0
libtpu: 0.0.40
codegen_flags: <defaults>
</compile_context>

<pallas_src>
import functools

import jax
import jax.numpy as jnp
from jax.experimental import pallas as pl
from jax.experimental.pallas import tpu as pltpu

BN_EPS = 1e-5
LANE = 128


def _round_up(v, m):
    return (v + m - 1) // m * m


# ----------------------------- Pallas kernel ------------------------------ #
def _resblock_kernel(x_ref, w1_ref, w2_ref, b1_ref, b2_ref, mask_ref, extra_ref,
                     o_ref, acc_ref, y1p_ref, *, taps1, taps2, s0, has_projection):
    """Fused residual block for one image (all operands flat 2-D, lane-dense).

    x_ref    : (R_in, Ci_p) bf16   flattened space-to-depth zero-padded image
    w1_ref   : (9, Ci_p, Co_p) bf16  conv1 taps (BN1 scale folded in)
    w2_ref   : (9, Co_p, Co_p) bf16  conv2 taps (BN2 scale folded in)
    b1_ref   : (1, Co_p) f32       folded BN1 shift
    b2_ref   : (1, Co_p) f32       folded BN2 (+BNs) shift
    mask_ref : (M1, 1) f32         1.0 on valid output columns, 0.0 on over-computed ones
    extra_ref: (Ci_p, Co_p) bf16   shortcut 1x1 conv (projection)  |
               (M1, Ci_p) f32      exact center-tap slab (identity)
    o_ref    : (M1, Co_p) bf16     output block (garbage columns trimmed in wrapper)
    acc_ref  : (M1, Co_p) f32      shared accumulator scratch
    y1p_ref  : (Rh, Co_p) bf16     flattened halo buffer for conv2 (never touches HBM)
    """
    M1, Cp = acc_ref.shape
    Rh = y1p_ref.shape[0]

    # Zero only the halo border rows that the interior store below does not cover.
    y1p_ref[0:s0, :] = jnp.zeros((s0, Cp), jnp.bfloat16)
    y1p_ref[s0 + M1:Rh, :] = jnp.zeros((Rh - s0 - M1, Cp), jnp.bfloat16)

    # ---- conv1 (3x3, stride s, pad 1) + folded BN1: 9 contiguous row-slice matmuls ----
    acc_ref[...] = jnp.dot(x_ref[taps1[0]:taps1[0] + M1, :], w1_ref[0],
                           preferred_element_type=jnp.float32)
    for k in range(1, 9):
        off = taps1[k]
        acc_ref[...] += jnp.dot(x_ref[off:off + M1, :], w1_ref[k],
                                preferred_element_type=jnp.float32)

    # BN1 shift + ReLU, mask the over-computed garbage columns, and stage y1 as ONE
    # lane-dense bf16 store into the halo interior (offset s0 is sublane-aligned).
    y1 = jnp.maximum(acc_ref[...] + b1_ref[...], 0.0) * mask_ref[...]
    y1p_ref[s0:s0 + M1, :] = y1.astype(jnp.bfloat16)

    # ---- shortcut seeds the conv2 accumulator (residual add comes for free) ----
    if has_projection:
        c = x_ref[taps1[4]:taps1[4] + M1, :]      # center tap == 1x1 stride-s conv input
        acc_ref[...] = jnp.dot(c, extra_ref[...], preferred_element_type=jnp.float32)
    else:
        acc_ref[...] = extra_ref[...]             # exact f32 identity shortcut

    # ---- conv2 (3x3, stride 1, pad 1) + folded BN2: 9 row-slices of the bf16 halo ----
    for k in range(9):
        off = taps2[k]
        acc_ref[...] += jnp.dot(y1p_ref[off:off + M1, :], w2_ref[k],
                                preferred_element_type=jnp.float32)

    # Folded BN shift(s) + final ReLU; lane-dense bf16 writeback.
    o_ref[...] = jnp.maximum(acc_ref[...] + b2_ref[...], 0.0).astype(o_ref.dtype)


# ------------------------------ JAX glue ---------------------------------- #
def _fold_bn(bn):
    scale = bn["gamma"] / jnp.sqrt(bn["var"] + BN_EPS)
    shift = bn["beta"] - bn["mean"] * scale
    return scale, shift


def residual_block_forward(x_nchw, params, stride):
    """Pallas implementation of ResidualBlock.forward (inference BN). NCHW in/out."""
    s = stride
    x = jnp.transpose(x_nchw, (0, 2, 3, 1)).astype(jnp.float32)            # NHWC
    N, H, W, Cin = x.shape
    Cout = params["conv1_w"].shape[0]
    Ho = (H - 1) // s + 1
    Wo = (W - 1) // s + 1
    Ci_p = _round_up(Cin, LANE)
    Co_p = _round_up(Cout, LANE)
    has_projection = not (s == 1 and Cin == Cout)

    # Zero-pad (spatial pad=1 + channel pad to lane width), space-to-depth, then flatten
    # spatial dims to rows so every 3x3 tap of the strided conv is a contiguous row slice.
    Hp = _round_up(H + 2, s)
    Wp = _round_up(W + 2, s)
    Hs, Ws = Hp // s, Wp // s
    M1 = Ho * Ws                        # matmul rows (includes Ws - Wo garbage columns)

    def tap_off(dy, dx):                # flat row offset of conv1 tap (dy, dx)
        return ((dy % s) * s + (dx % s)) * Hs * Ws + (dy // s) * Ws + (dx // s)

    taps1 = tuple(tap_off(dy, dx) for dy in range(3) for dx in range(3))
    total = s * s * Hs * Ws
    R_in = _round_up(max(max(taps1) + M1, total), 8)

    # Halo buffer layout: row-major (rows of width Ws), interior starts at a
    # sublane-aligned offset s0 so the single big y1 store is aligned.
    pad0 = (-(Ws + 1)) % 8
    s0 = pad0 + Ws + 1
    Rh = _round_up(pad0 + M1 + 2 * Ws + 2, 8)
    taps2 = tuple(pad0 + dy * Ws + dx for dy in range(3) for dx in range(3))

    xpad = jnp.pad(x, ((0, 0), (1, Hp - H - 1), (1, Wp - W - 1), (0, Ci_p - Cin)))
    x_flat = (xpad.reshape(N, Hs, s, Ws, s, Ci_p)
                  .transpose(0, 2, 4, 1, 3, 5)
                  .reshape(N, total, Ci_p))
    x_flat = jnp.pad(x_flat, ((0, 0), (0, R_in - total), (0, 0)))
    x_bf16 = x_flat.astype(jnp.bfloat16)

    # Per-row validity mask for conv1's over-computed columns: (row % Ws) < Wo.
    mask = ((jnp.arange(M1, dtype=jnp.int32) % Ws) < Wo).astype(jnp.float32)
    mask = mask.reshape(M1, 1)

    # Fold BN scales into weight columns; pad channels; bf16 operands for the MXU.
    sc1, sh1 = _fold_bn(params["bn1"])
    w1 = jnp.transpose(params["conv1_w"], (2, 3, 1, 0)).reshape(9, Cin, Cout) * sc1
    w1 = jnp.pad(w1, ((0, 0), (0, Ci_p - Cin), (0, Co_p - Cout))).astype(jnp.bfloat16)
    b1 = jnp.pad(sh1, (0, Co_p - Cout)).reshape(1, Co_p)

    sc2, sh2 = _fold_bn(params["bn2"])
    w2 = jnp.transpose(params["conv2_w"], (2, 3, 1, 0)).reshape(9, Cout, Cout) * sc2
    w2 = jnp.pad(w2, ((0, 0), (0, Co_p - Cout), (0, Co_p - Cout))).astype(jnp.bfloat16)
    shift2 = sh2

    if has_projection:
        scs, shs = _fold_bn(params["bns"])
        ws = jnp.transpose(params["convs_w"][:, :, 0, 0], (1, 0)) * scs
        extra = jnp.pad(ws, ((0, Ci_p - Cin), (0, Co_p - Cout))).astype(jnp.bfloat16)
        extra_spec = pl.BlockSpec((Ci_p, Co_p), lambda i: (0, 0))
        shift2 = shift2 + shs               # fold BN2 + BN_shortcut shifts together
    else:
        # Exact f32 center-tap slab so the identity residual add carries no bf16 rounding.
        extra = jax.lax.slice_in_dim(x_flat, taps1[4], taps1[4] + M1, axis=1)
        extra_spec = pl.BlockSpec((None, M1, Ci_p), lambda i: (i, 0, 0))
    b2 = jnp.pad(shift2, (0, Co_p - Cout)).reshape(1, Co_p)

    in_arrays = [x_bf16, w1, w2, b1, b2, mask, extra]
    # NOTE: weight/bias/mask index_maps are constant, so Pallas re-uses the fetched block
    # across grid steps; with very large Cout consider pipeline_mode=pl.Buffered(1) on them.
    in_specs = [
        pl.BlockSpec((None, R_in, Ci_p), lambda i: (i, 0, 0)),   # x (flattened s2d)
        pl.BlockSpec((9, Ci_p, Co_p), lambda i: (0, 0, 0)),      # w1
        pl.BlockSpec((9, Co_p, Co_p), lambda i: (0, 0, 0)),      # w2
        pl.BlockSpec((1, Co_p), lambda i: (0, 0)),               # b1
        pl.BlockSpec((1, Co_p), lambda i: (0, 0)),               # b2 (+bs)
        pl.BlockSpec((M1, 1), lambda i: (0, 0)),                 # column mask
        extra_spec,                                              # ws | identity slab
    ]

    kernel = functools.partial(_resblock_kernel, taps1=taps1, taps2=taps2, s0=s0,
                               has_projection=has_projection)

    # Cost estimate with REAL channel counts (padded lanes are not useful work).
    flops = 2 * N * Ho * Wo * Cout * (9 * Cin + 9 * Cout
                                      + (Cin if has_projection else 0))
    bytes_accessed = int(
        N * (R_in * Ci_p * 2 + M1 * Co_p * 2)
        + 9 * (Ci_p * Co_p + Co_p * Co_p) * 2 + 2 * Co_p * 4 + M1 * 4
        + (Ci_p * Co_p * 2 if has_projection else N * M1 * Ci_p * 4))

    # Explicit VMEM limit from actual block sizes (double-buffered) + scratch + headroom.
    block_bytes = (R_in * Ci_p * 2 + 9 * Ci_p * Co_p * 2 + 9 * Co_p * Co_p * 2
                   + 2 * Co_p * 4 + M1 * 4
                   + (Ci_p * Co_p * 2 if has_projection else M1 * Ci_p * 4)
                   + M1 * Co_p * 2)
    scratch_bytes = M1 * Co_p * 4 + Rh * Co_p * 2
    vmem_limit = int(min(max(2 * block_bytes + scratch_bytes + (4 << 20), 16 << 20),
                         48 << 20))

    out = pl.pallas_call(
        kernel,
        out_shape=jax.ShapeDtypeStruct((N, M1, Co_p), jnp.bfloat16),
        grid=(N,),
        in_specs=in_specs,
        out_specs=pl.BlockSpec((None, M1, Co_p), lambda i: (i, 0, 0)),
        scratch_shapes=[pltpu.VMEM((M1, Co_p), jnp.float32),      # shared accumulator
                        pltpu.VMEM((Rh, Co_p), jnp.bfloat16)],    # conv2 halo buffer
        compiler_params=pltpu.CompilerParams(
            dimension_semantics=("parallel",),
            vmem_limit_bytes=vmem_limit),
        cost_estimate=pl.CostEstimate(flops=flops, transcendentals=0,
                                      bytes_accessed=bytes_accessed),
    )(*in_arrays)

    # Single fused trim (garbage columns + padded channels) + NCHW transpose + f32 cast.
    out = out.reshape(N, Ho, Ws, Co_p)[:, :, :Wo, :Cout].astype(jnp.float32)
    return jnp.transpose(out, (0, 3, 1, 2))                               # NCHW


# --------------------------- reference (pure JAX) -------------------------- #
def reference_forward(x_nchw, params, stride):
    def conv(x, w, s, pad):
        return jax.lax.conv_general_dilated(
            x, w, (s, s), pad, dimension_numbers=("NCHW", "OIHW", "NCHW"))

    def bn(x, p):
        scale = p["gamma"] / jnp.sqrt(p["var"] + BN_EPS)
        shift = p["beta"] - p["mean"] * scale
        return x * scale[None, :, None, None] + shift[None, :, None, None]

    y = conv(x_nchw, params["conv1_w"], stride, ((1, 1), (1, 1)))
    y = jax.nn.relu(bn(y, params["bn1"]))
    y = conv(y, params["conv2_w"], 1, ((1, 1), (1, 1)))
    y = bn(y, params["bn2"])
    if "convs_w" in params:
        s = bn(conv(x_nchw, params["convs_w"], stride, ((0, 0), (0, 0))), params["bns"])
    else:
        s = x_nchw
    return jax.nn.relu(y + s)


# ------------------------------- parameters -------------------------------- #
def make_params(key, inchannel, outchannel, stride):
    ks = jax.random.split(key, 12)

    def bn_params(k, c):
        k1, k2, k3, k4 = jax.random.split(k, 4)
        return {
            "gamma": 1.0 + 0.1 * jax.random.normal(k1, (c,), jnp.float32),
            "beta": 0.1 * jax.random.normal(k2, (c,), jnp.float32),
            "mean": 0.1 * jax.random.normal(k3, (c,), jnp.float32),
            "var": 0.5 + jax.random.uniform(k4, (c,), jnp.float32),
        }

    params = {
        "conv1_w": 0.1 * jax.random.normal(ks[0], (outchannel, inchannel, 3, 3), jnp.float32),
        "bn1": bn_params(ks[1], outchannel),
        "conv2_w": 0.1 * jax.random.normal(ks[2], (outchannel, outchannel, 3, 3), jnp.float32),
        "bn2": bn_params(ks[3], outchannel),
    }
    if not (stride == 1 and inchannel == outchannel):
        params["convs_w"] = 0.1 * jax.random.normal(
            ks[4], (outchannel, inchannel, 1, 1), jnp.float32)
        params["bns"] = bn_params(ks[5], outchannel)
    return params


if __name__ == "__main__":
    key = jax.random.PRNGKey(0)
    k_x, k_p, k_x2, k_p2 = jax.random.split(key, 4)

    fwd = jax.jit(residual_block_forward, static_argnums=2)

    # Projection shortcut: ResidualBlock(4, 8, stride=2) on x: [2, 4, 16, 16] (NCHW)
    x = jax.random.normal(k_x, (2, 4, 16, 16), jnp.float32)
    params = make_params(k_p, 4, 8, 2)
    out = jax.block_until_ready(fwd(x, params, 2))
    ref = jax.block_until_ready(reference_forward(x, params, 2))
    assert out.shape == ref.shape == (2, 8, 8, 8), out.shape
    # bf16 MXU operands + bf16 writeback (f32 accumulation) -> ~1e-2 abs error vs pure-f32 ref.
    assert jnp.allclose(out, ref, atol=5e-2, rtol=5e-2), float(jnp.max(jnp.abs(out - ref)))

    # Identity shortcut: ResidualBlock(8, 8, stride=1) on x: [2, 8, 16, 16]
    x2 = jax.random.normal(k_x2, (2, 8, 16, 16), jnp.float32)
    params2 = make_params(k_p2, 8, 8, 1)
    out2 = jax.block_until_ready(fwd(x2, params2, 1))
    ref2 = jax.block_until_ready(reference_forward(x2, params2, 1))
    assert out2.shape == ref2.shape == (2, 8, 16, 16), out2.shape
    assert jnp.allclose(out2, ref2, atol=5e-2, rtol=5e-2), float(jnp.max(jnp.abs(out2 - ref2)))

    print("KERNEL_OK")
</pallas_src>

<mosaic_0001>
module attributes {stable_mosaic.version = 11 : i64} {
  func.func @_resblock_kernel(%arg0: i32, %arg1: memref<1x328x128xbf16, #tpu.memory_space<vmem>>, %arg2: memref<9x128x128xbf16, #tpu.memory_space<vmem>>, %arg3: memref<9x128x128xbf16, #tpu.memory_space<vmem>>, %arg4: memref<1x128xf32, #tpu.memory_space<vmem>>, %arg5: memref<1x128xf32, #tpu.memory_space<vmem>>, %arg6: memref<72x1xf32, #tpu.memory_space<vmem>>, %arg7: memref<128x128xbf16, #tpu.memory_space<vmem>>, %arg8: memref<1x72x128xbf16, #tpu.memory_space<vmem>>, %arg9: memref<72x128xf32, #tpu.memory_space<vmem>>, %arg10: memref<104x128xbf16, #tpu.memory_space<vmem>>) attributes {dimension_semantics = [#tpu.dimension_semantics<parallel>], iteration_bounds = array<i64: 2>, scalar_prefetch = 0 : i64, scratch_operands = 2 : i64, tpu.core_type = #tpu.core_type<tc>, window_params = [{transform_indices = @transform_0, window_bounds = array<i64: 1, 328, 128>}, {pipeline_mode = #tpu.pipeline_mode<synchronous>, transform_indices = @transform_1, window_bounds = array<i64: 9, 128, 128>}, {pipeline_mode = #tpu.pipeline_mode<synchronous>, transform_indices = @transform_2, window_bounds = array<i64: 9, 128, 128>}, {pipeline_mode = #tpu.pipeline_mode<synchronous>, transform_indices = @transform_3, window_bounds = array<i64: 1, 128>}, {pipeline_mode = #tpu.pipeline_mode<synchronous>, transform_indices = @transform_4, window_bounds = array<i64: 1, 128>}, {pipeline_mode = #tpu.pipeline_mode<synchronous>, transform_indices = @transform_5, window_bounds = array<i64: 72, 1>}, {pipeline_mode = #tpu.pipeline_mode<synchronous>, transform_indices = @transform_6, window_bounds = array<i64: 128, 128>}, {transform_indices = @transform_7, window_bounds = array<i64: 1, 72, 128>}]} {
    %cst = arith.constant 0.000000e+00 : bf16
    %0 = vector.broadcast %cst : bf16 to vector<16x128xbf16>
    %c0 = arith.constant 0 : index
    %c0_0 = arith.constant 0 : index
    %1 = vector.load %arg10[%c0, %c0_0] : memref<104x128xbf16, #tpu.memory_space<vmem>>, vector<16x128xbf16>
    tpu.vector_store %arg10[%c0, %c0_0], %0 {strides = array<i32>} : memref<104x128xbf16, #tpu.memory_space<vmem>>, vector<16x128xbf16>,
    %cst_1 = arith.constant 0.000000e+00 : bf16
    %2 = vector.broadcast %cst_1 : bf16 to vector<16x128xbf16>
    %c88 = arith.constant 88 : index
    %c0_2 = arith.constant 0 : index
    %3 = vector.load %arg10[%c88, %c0_2] : memref<104x128xbf16, #tpu.memory_space<vmem>>, vector<16x128xbf16>
    tpu.vector_store %arg10[%c88, %c0_2], %2 {strides = array<i32>} : memref<104x128xbf16, #tpu.memory_space<vmem>>, vector<16x128xbf16>,
    %c0_3 = arith.constant 0 : index
    %c0_4 = arith.constant 0 : index
    %c0_5 = arith.constant 0 : index
    %4 = vector.load %arg1[%c0_3, %c0_4, %c0_5] : memref<1x328x128xbf16, #tpu.memory_space<vmem>>, vector<1x72x128xbf16>
    %5 = vector.shape_cast %4 : vector<1x72x128xbf16> to vector<72x128xbf16>
    %c0_6 = arith.constant 0 : index
    %c0_7 = arith.constant 0 : index
    %c0_8 = arith.constant 0 : index
    %6 = vector.load %arg2[%c0_6, %c0_7, %c0_8] : memref<9x128x128xbf16, #tpu.memory_space<vmem>>, vector<1x128x128xbf16>
    %7 = vector.shape_cast %6 : vector<1x128x128xbf16> to vector<128x128xbf16>
    %cst_9 = arith.constant dense<0.000000e+00> : vector<72x128xf32>
    %8 = tpu.matmul %5, %7, %cst_9 {dimension_numbers = #tpu.dot_dimension_numbers<[1], [0], [0], [1], [0, 0, 1, 1], [], []>} : vector<72x128xbf16>, vector<128x128xbf16>, vector<72x128xf32> -> vector<72x128xf32>
    %c0_10 = arith.constant 0 : index
    %c0_11 = arith.constant 0 : index
    %9 = vector.load %arg9[%c0_10, %c0_11] : memref<72x128xf32, #tpu.memory_space<vmem>>, vector<72x128xf32>
    tpu.vector_store %arg9[%c0_10, %c0_11], %8 {strides = array<i32>} : memref<72x128xf32, #tpu.memory_space<vmem>>, vector<72x128xf32>,
    %c0_12 = arith.constant 0 : index
    %c0_13 = arith.constant 0 : index
    %10 = vector.load %arg9[%c0_12, %c0_13] : memref<72x128xf32, #tpu.memory_space<vmem>>, vector<72x128xf32>
    %c0_14 = arith.constant 0 : index
    %c81 = arith.constant 81 : index
    %c0_15 = arith.constant 0 : index
    %11 = vector.load %arg1[%c0_14, %c81, %c0_15] : memref<1x328x128xbf16, #tpu.memory_space<vmem>>, vector<1x72x128xbf16>
    %12 = vector.shape_cast %11 : vector<1x72x128xbf16> to vector<72x128xbf16>
    %c1 = arith.constant 1 : index
    %c0_16 = arith.constant 0 : index
    %c0_17 = arith.constant 0 : index
    %13 = vector.load %arg2[%c1, %c0_16, %c0_17] : memref<9x128x128xbf16, #tpu.memory_space<vmem>>, vector<1x128x128xbf16>
    %14 = vector.shape_cast %13 : vector<1x128x128xbf16> to vector<128x128xbf16>
    %cst_18 = arith.constant dense<0.000000e+00> : vector<72x128xf32>
    %15 = tpu.matmul %12, %14, %cst_18 {dimension_numbers = #tpu.dot_dimension_numbers<[1], [0], [0], [1], [0, 0, 1, 1], [], []>} : vector<72x128xbf16>, vector<128x128xbf16>, vector<72x128xf32> -> vector<72x128xf32>
    %16 = arith.addf %10, %15 : vector<72x128xf32>
    %c0_19 = arith.constant 0 : index
    %c0_20 = arith.constant 0 : index
    %17 = vector.load %arg9[%c0_19, %c0_20] : memref<72x128xf32, #tpu.memory_space<vmem>>, vector<72x128xf32>
    tpu.vector_store %arg9[%c0_19, %c0_20], %16 {strides = array<i32>} : memref<72x128xf32, #tpu.memory_space<vmem>>, vector<72x128xf32>,
    %c0_21 = arith.constant 0 : index
    %c0_22 = arith.constant 0 : index
    %18 = vector.load %arg9[%c0_21, %c0_22] : memref<72x128xf32, #tpu.memory_space<vmem>>, vector<72x128xf32>
    %c0_23 = arith.constant 0 : index
    %c1_24 = arith.constant 1 : index
    %c0_25 = arith.constant 0 : index
    %19 = vector.load %arg1[%c0_23, %c1_24, %c0_25] : memref<1x328x128xbf16, #tpu.memory_space<vmem>>, vector<1x72x128xbf16>
    %20 = vector.shape_cast %19 : vector<1x72x128xbf16> to vector<72x128xbf16>
    %c2 = arith.constant 2 : index
    %c0_26 = arith.constant 0 : index
    %c0_27 = arith.constant 0 : index
    %21 = vector.load %arg2[%c2, %c0_26, %c0_27] : memref<9x128x128xbf16, #tpu.memory_space<vmem>>, vector<1x128x128xbf16>
    %22 = vector.shape_cast %21 : vector<1x128x128xbf16> to vector<128x128xbf16>
    %cst_28 = arith.constant dense<0.000000e+00> : vector<72x128xf32>
    %23 = tpu.matmul %20, %22, %cst_28 {dimension_numbers = #tpu.dot_dimension_numbers<[1], [0], [0], [1], [0, 0, 1, 1], [], []>} : vector<72x128xbf16>, vector<128x128xbf16>, vector<72x128xf32> -> vector<72x128xf32>
    %24 = arith.addf %18, %23 : vector<72x128xf32>
    %c0_29 = arith.constant 0 : index
    %c0_30 = arith.constant 0 : index
    %25 = vector.load %arg9[%c0_29, %c0_30] : memref<72x128xf32, #tpu.memory_space<vmem>>, vector<72x128xf32>
    tpu.vector_store %arg9[%c0_29, %c0_30], %24 {strides = array<i32>} : memref<72x128xf32, #tpu.memory_space<vmem>>, vector<72x128xf32>,
    %c0_31 = arith.constant 0 : index
    %c0_32 = arith.constant 0 : index
    %26 = vector.load %arg9[%c0_31, %c0_32] : memref<72x128xf32, #tpu.memory_space<vmem>>, vector<72x128xf32>
    %c0_33 = arith.constant 0 : index
    %c162 = arith.constant 162 : index
    %c0_34 = arith.constant 0 : index
    %27 = vector.load %arg1[%c0_33, %c162, %c0_34] : memref<1x328x128xbf16, #tpu.memory_space<vmem>>, vector<1x72x128xbf16>
    %28 = vector.shape_cast %27 : vector<1x72x128xbf16> to vector<72x128xbf16>
    %c3 = arith.constant 3 : index
    %c0_35 = arith.constant 0 : index
    %c0_36 = arith.constant 0 : index
    %29 = vector.load %arg2[%c3, %c0_35, %c0_36] : memref<9x128x128xbf16, #tpu.memory_space<vmem>>, vector<1x128x128xbf16>
    %30 = vector.shape_cast %29 : vector<1x128x128xbf16> to vector<128x128xbf16>
    %cst_37 = arith.constant dense<0.000000e+00> : vector<72x128xf32>
    %31 = tpu.matmul %28, %30, %cst_37 {dimension_numbers = #tpu.dot_dimension_numbers<[1], [0], [0], [1], [0, 0, 1, 1], [], []>} : vector<72x128xbf16>, vector<128x128xbf16>, vector<72x128xf32> -> vector<72x128xf32>
    %32 = arith.addf %26, %31 : vector<72x128xf32>
    %c0_38 = arith.constant 0 : index
    %c0_39 = arith.constant 0 : index
    %33 = vector.load %arg9[%c0_38, %c0_39] : memref<72x128xf32, #tpu.memory_space<vmem>>, vector<72x128xf32>
    tpu.vector_store %arg9[%c0_38, %c0_39], %32 {strides = array<i32>} : memref<72x128xf32, #tpu.memory_space<vmem>>, vector<72x128xf32>,
    %c0_40 = arith.constant 0 : index
    %c0_41 = arith.constant 0 : index
    %34 = vector.load %arg9[%c0_40, %c0_41] : memref<72x128xf32, #tpu.memory_space<vmem>>, vector<72x128xf32>
    %c0_42 = arith.constant 0 : index
    %c243 = arith.constant 243 : index
    %c0_43 = arith.constant 0 : index
    %35 = vector.load %arg1[%c0_42, %c243, %c0_43] : memref<1x328x128xbf16, #tpu.memory_space<vmem>>, vector<1x72x128xbf16>
    %36 = vector.shape_cast %35 : vector<1x72x128xbf16> to vector<72x128xbf16>
    %c4 = arith.constant 4 : index
    %c0_44 = arith.constant 0 : index
    %c0_45 = arith.constant 0 : index
    %37 = vector.load %arg2[%c4, %c0_44, %c0_45] : memref<9x128x128xbf16, #tpu.memory_space<vmem>>, vector<1x128x128xbf16>
    %38 = vector.shape_cast %37 : vector<1x128x128xbf16> to vector<128x128xbf16>
    %cst_46 = arith.constant dense<0.000000e+00> : vector<72x128xf32>
    %39 = tpu.matmul %36, %38, %cst_46 {dimension_numbers = #tpu.dot_dimension_numbers<[1], [0], [0], [1], [0, 0, 1, 1], [], []>} : vector<72x128xbf16>, vector<128x128xbf16>, vector<72x128xf32> -> vector<72x128xf32>
    %40 = arith.addf %34, %39 : vector<72x128xf32>
    %c0_47 = arith.constant 0 : index
    %c0_48 = arith.constant 0 : index
    %41 = vector.load %arg9[%c0_47, %c0_48] : memref<72x128xf32, #tpu.memory_space<vmem>>, vector<72x128xf32>
    tpu.vector_store %arg9[%c0_47, %c0_48], %40 {strides = array<i32>} : memref<72x128xf32, #tpu.memory_space<vmem>>, vector<72x128xf32>,
    %c0_49 = arith.constant 0 : index
    %c0_50 = arith.constant 0 : index
    %42 = vector.load %arg9[%c0_49, %c0_50] : memref<72x128xf32, #tpu.memory_space<vmem>>, vector<72x128xf32>
    %c0_51 = arith.constant 0 : index
    %c163 = arith.constant 163 : index
    %c0_52 = arith.constant 0 : index
    %43 = vector.load %arg1[%c0_51, %c163, %c0_52] : memref<1x328x128xbf16, #tpu.memory_space<vmem>>, vector<1x72x128xbf16>
    %44 = vector.shape_cast %43 : vector<1x72x128xbf16> to vector<72x128xbf16>
    %c5 = arith.constant 5 : index
    %c0_53 = arith.constant 0 : index
    %c0_54 = arith.constant 0 : index
    %45 = vector.load %arg2[%c5, %c0_53, %c0_54] : memref<9x128x128xbf16, #tpu.memory_space<vmem>>, vector<1x128x128xbf16>
    %46 = vector.shape_cast %45 : vector<1x128x128xbf16> to vector<128x128xbf16>
    %cst_55 = arith.constant dense<0.000000e+00> : vector<72x128xf32>
    %47 = tpu.matmul %44, %46, %cst_55 {dimension_numbers = #tpu.dot_dimension_numbers<[1], [0], [0], [1], [0, 0, 1, 1], [], []>} : vector<72x128xbf16>, vector<128x128xbf16>, vector<72x128xf32> -> vector<72x128xf32>
    %48 = arith.addf %42, %47 : vector<72x128xf32>
    %c0_56 = arith.constant 0 : index
    %c0_57 = arith.constant 0 : index
    %49 = vector.load %arg9[%c0_56, %c0_57] : memref<72x128xf32, #tpu.memory_space<vmem>>, vector<72x128xf32>
    tpu.vector_store %arg9[%c0_56, %c0_57], %48 {strides = array<i32>} : memref<72x128xf32, #tpu.memory_space<vmem>>, vector<72x128xf32>,
    %c0_58 = arith.constant 0 : index
    %c0_59 = arith.constant 0 : index
    %50 = vector.load %arg9[%c0_58, %c0_59] : memref<72x128xf32, #tpu.memory_space<vmem>>, vector<72x128xf32>
    %c0_60 = arith.constant 0 : index
    %c9 = arith.constant 9 : index
    %c0_61 = arith.constant 0 : index
    %51 = vector.load %arg1[%c0_60, %c9, %c0_61] : memref<1x328x128xbf16, #tpu.memory_space<vmem>>, vector<1x72x128xbf16>
    %52 = vector.shape_cast %51 : vector<1x72x128xbf16> to vector<72x128xbf16>
    %c6 = arith.constant 6 : index
    %c0_62 = arith.constant 0 : index
    %c0_63 = arith.constant 0 : index
    %53 = vector.load %arg2[%c6, %c0_62, %c0_63] : memref<9x128x128xbf16, #tpu.memory_space<vmem>>, vector<1x128x128xbf16>
    %54 = vector.shape_cast %53 : vector<1x128x128xbf16> to vector<128x128xbf16>
    %cst_64 = arith.constant dense<0.000000e+00> : vector<72x128xf32>
    %55 = tpu.matmul %52, %54, %cst_64 {dimension_numbers = #tpu.dot_dimension_numbers<[1], [0], [0], [1], [0, 0, 1, 1], [], []>} : vector<72x128xbf16>, vector<128x128xbf16>, vector<72x128xf32> -> vector<72x128xf32>
    %56 = arith.addf %50, %55 : vector<72x128xf32>
    %c0_65 = arith.constant 0 : index
    %c0_66 = arith.constant 0 : index
    %57 = vector.load %arg9[%c0_65, %c0_66] : memref<72x128xf32, #tpu.memory_space<vmem>>, vector<72x128xf32>
    tpu.vector_store %arg9[%c0_65, %c0_66], %56 {strides = array<i32>} : memref<72x128xf32, #tpu.memory_space<vmem>>, vector<72x128xf32>,
    %c0_67 = arith.constant 0 : index
    %c0_68 = arith.constant 0 : index
    %58 = vector.load %arg9[%c0_67, %c0_68] : memref<72x128xf32, #tpu.memory_space<vmem>>, vector<72x128xf32>
    %c0_69 = arith.constant 0 : index
    %c90 = arith.constant 90 : index
    %c0_70 = arith.constant 0 : index
    %59 = vector.load %arg1[%c0_69, %c90, %c0_70] : memref<1x328x128xbf16, #tpu.memory_space<vmem>>, vector<1x72x128xbf16>
    %60 = vector.shape_cast %59 : vector<1x72x128xbf16> to vector<72x128xbf16>
    %c7 = arith.constant 7 : index
    %c0_71 = arith.constant 0 : index
    %c0_72 = arith.constant 0 : index
    %61 = vector.load %arg2[%c7, %c0_71, %c0_72] : memref<9x128x128xbf16, #tpu.memory_space<vmem>>, vector<1x128x128xbf16>
    %62 = vector.shape_cast %61 : vector<1x128x128xbf16> to vector<128x128xbf16>
    %cst_73 = arith.constant dense<0.000000e+00> : vector<72x128xf32>
    %63 = tpu.matmul %60, %62, %cst_73 {dimension_numbers = #tpu.dot_dimension_numbers<[1], [0], [0], [1], [0, 0, 1, 1], [], []>} : vector<72x128xbf16>, vector<128x128xbf16>, vector<72x128xf32> -> vector<72x128xf32>
    %64 = arith.addf %58, %63 : vector<72x128xf32>
    %c0_74 = arith.constant 0 : index
    %c0_75 = arith.constant 0 : index
    %65 = vector.load %arg9[%c0_74, %c0_75] : memref<72x128xf32, #tpu.memory_space<vmem>>, vector<72x128xf32>
    tpu.vector_store %arg9[%c0_74, %c0_75], %64 {strides = array<i32>} : memref<72x128xf32, #tpu.memory_space<vmem>>, vector<72x128xf32>,
    %c0_76 = arith.constant 0 : index
    %c0_77 = arith.constant 0 : index
    %66 = vector.load %arg9[%c0_76, %c0_77] : memref<72x128xf32, #tpu.memory_space<vmem>>, vector<72x128xf32>
    %c0_78 = arith.constant 0 : index
    %c10 = arith.constant 10 : index
    %c0_79 = arith.constant 0 : index
    %67 = vector.load %arg1[%c0_78, %c10, %c0_79] : memref<1x328x128xbf16, #tpu.memory_space<vmem>>, vector<1x72x128xbf16>
    %68 = vector.shape_cast %67 : vector<1x72x128xbf16> to vector<72x128xbf16>
    %c8 = arith.constant 8 : index
    %c0_80 = arith.constant 0 : index
    %c0_81 = arith.constant 0 : index
    %69 = vector.load %arg2[%c8, %c0_80, %c0_81] : memref<9x128x128xbf16, #tpu.memory_space<vmem>>, vector<1x128x128xbf16>
    %70 = vector.shape_cast %69 : vector<1x128x128xbf16> to vector<128x128xbf16>
    %cst_82 = arith.constant dense<0.000000e+00> : vector<72x128xf32>
    %71 = tpu.matmul %68, %70, %cst_82 {dimension_numbers = #tpu.dot_dimension_numbers<[1], [0], [0], [1], [0, 0, 1, 1], [], []>} : vector<72x128xbf16>, vector<128x128xbf16>, vector<72x128xf32> -> vector<72x128xf32>
    %72 = arith.addf %66, %71 : vector<72x128xf32>
    %c0_83 = arith.constant 0 : index
    %c0_84 = arith.constant 0 : index
    %73 = vector.load %arg9[%c0_83, %c0_84] : memref<72x128xf32, #tpu.memory_space<vmem>>, vector<72x128xf32>
    tpu.vector_store %arg9[%c0_83, %c0_84], %72 {strides = array<i32>} : memref<72x128xf32, #tpu.memory_space<vmem>>, vector<72x128xf32>,
    %c0_85 = arith.constant 0 : index
    %c0_86 = arith.constant 0 : index
    %74 = vector.load %arg9[%c0_85, %c0_86] : memref<72x128xf32, #tpu.memory_space<vmem>>, vector<72x128xf32>
    %c0_87 = arith.constant 0 : index
    %c0_88 = arith.constant 0 : index
    %75 = vector.load %arg4[%c0_87, %c0_88] : memref<1x128xf32, #tpu.memory_space<vmem>>, vector<1x128xf32>
    %76 = vector.broadcast %75 : vector<1x128xf32> to vector<72x128xf32>
    %77 = arith.addf %74, %76 : vector<72x128xf32>
    %cst_89 = arith.constant 0.000000e+00 : f32
    %78 = vector.broadcast %cst_89 : f32 to vector<72x128xf32>
    %79 = arith.maximumf %77, %78 : vector<72x128xf32>
    %c0_90 = arith.constant 0 : index
    %c0_91 = arith.constant 0 : index
    %80 = vector.load %arg6[%c0_90, %c0_91] : memref<72x1xf32, #tpu.memory_space<vmem>>, vector<72x1xf32>
    %81 = vector.broadcast %80 : vector<72x1xf32> to vector<72x128xf32>
    %82 = arith.mulf %79, %81 : vector<72x128xf32>
    %83 = arith.truncf %82 : vector<72x128xf32> to vector<72x128xbf16>
    %c16 = arith.constant 16 : index
    %c0_92 = arith.constant 0 : index
    %84 = vector.load %arg10[%c16, %c0_92] : memref<104x128xbf16, #tpu.memory_space<vmem>>, vector<72x128xbf16>
    tpu.vector_store %arg10[%c16, %c0_92], %83 {strides = array<i32>} : memref<104x128xbf16, #tpu.memory_space<vmem>>, vector<72x128xbf16>,
    %c0_93 = arith.constant 0 : index
    %c243_94 = arith.constant 243 : index
    %c0_95 = arith.constant 0 : index
    %85 = vector.load %arg1[%c0_93, %c243_94, %c0_95] : memref<1x328x128xbf16, #tpu.memory_space<vmem>>, vector<1x72x128xbf16>
    %86 = vector.shape_cast %85 : vector<1x72x128xbf16> to vector<72x128xbf16>
    %c0_96 = arith.constant 0 : index
    %c0_97 = arith.constant 0 : index
    %87 = vector.load %arg7[%c0_96, %c0_97] : memref<128x128xbf16, #tpu.memory_space<vmem>>, vector<128x128xbf16>
    %cst_98 = arith.constant dense<0.000000e+00> : vector<72x128xf32>
    %88 = tpu.matmul %86, %87, %cst_98 {dimension_numbers = #tpu.dot_dimension_numbers<[1], [0], [0], [1], [0, 0, 1, 1], [], []>} : vector<72x128xbf16>, vector<128x128xbf16>, vector<72x128xf32> -> vector<72x128xf32>
    %c0_99 = arith.constant 0 : index
    %c0_100 = arith.constant 0 : index
    %89 = vector.load %arg9[%c0_99, %c0_100] : memref<72x128xf32, #tpu.memory_space<vmem>>, vector<72x128xf32>
    tpu.vector_store %arg9[%c0_99, %c0_100], %88 {strides = array<i32>} : memref<72x128xf32, #tpu.memory_space<vmem>>, vector<72x128xf32>,
    %c0_101 = arith.constant 0 : index
    %c0_102 = arith.constant 0 : index
    %90 = vector.load %arg9[%c0_101, %c0_102] : memref<72x128xf32, #tpu.memory_space<vmem>>, vector<72x128xf32>
    %c6_103 = arith.constant 6 : index
    %c0_104 = arith.constant 0 : index
    %91 = vector.load %arg10[%c6_103, %c0_104] : memref<104x128xbf16, #tpu.memory_space<vmem>>, vector<72x128xbf16>
    %c0_105 = arith.constant 0 : index
    %c0_106 = arith.constant 0 : index
    %c0_107 = arith.constant 0 : index
    %92 = vector.load %arg3[%c0_105, %c0_106, %c0_107] : memref<9x128x128xbf16, #tpu.memory_space<vmem>>, vector<1x128x128xbf16>
    %93 = vector.shape_cast %92 : vector<1x128x128xbf16> to vector<128x128xbf16>
    %cst_108 = arith.constant dense<0.000000e+00> : vector<72x128xf32>
    %94 = tpu.matmul %91, %93, %cst_108 {dimension_numbers = #tpu.dot_dimension_numbers<[1], [0], [0], [1], [0, 0, 1, 1], [], []>} : vector<72x128xbf16>, vector<128x128xbf16>, vector<72x128xf32> -> vector<72x128xf32>
    %95 = arith.addf %90, %94 : vector<72x128xf32>
    %c0_109 = arith.constant 0 : index
    %c0_110 = arith.constant 0 : index
    %96 = vector.load %arg9[%c0_109, %c0_110] : memref<72x128xf32, #tpu.memory_space<vmem>>, vector<72x128xf32>
    tpu.vector_store %arg9[%c0_109, %c0_110], %95 {strides = array<i32>} : memref<72x128xf32, #tpu.memory_space<vmem>>, vector<72x128xf32>,
    %c0_111 = arith.constant 0 : index
    %c0_112 = arith.constant 0 : index
    %97 = vector.load %arg9[%c0_111, %c0_112] : memref<72x128xf32, #tpu.memory_space<vmem>>, vector<72x128xf32>
    %c7_113 = arith.constant 7 : index
    %c0_114 = arith.constant 0 : index
    %98 = vector.load %arg10[%c7_113, %c0_114] : memref<104x128xbf16, #tpu.memory_space<vmem>>, vector<72x128xbf16>
    %c1_115 = arith.constant 1 : index
    %c0_116 = arith.constant 0 : index
    %c0_117 = arith.constant 0 : index
    %99 = vector.load %arg3[%c1_115, %c0_116, %c0_117] : memref<9x128x128xbf16, #tpu.memory_space<vmem>>, vector<1x128x128xbf16>
    %100 = vector.shape_cast %99 : vector<1x128x128xbf16> to vector<128x128xbf16>
    %cst_118 = arith.constant dense<0.000000e+00> : vector<72x128xf32>
    %101 = tpu.matmul %98, %100, %cst_118 {dimension_numbers = #tpu.dot_dimension_numbers<[1], [0], [0], [1], [0, 0, 1, 1], [], []>} : vector<72x128xbf16>, vector<128x128xbf16>, vector<72x128xf32> -> vector<72x128xf32>
    %102 = arith.addf %97, %101 : vector<72x128xf32>
    %c0_119 = arith.constant 0 : index
    %c0_120 = arith.constant 0 : index
    %103 = vector.load %arg9[%c0_119, %c0_120] : memref<72x128xf32, #tpu.memory_space<vmem>>, vector<72x128xf32>
    tpu.vector_store %arg9[%c0_119, %c0_120], %102 {strides = array<i32>} : memref<72x128xf32, #tpu.memory_space<vmem>>, vector<72x128xf32>,
    %c0_121 = arith.constant 0 : index
    %c0_122 = arith.constant 0 : index
    %104 = vector.load %arg9[%c0_121, %c0_122] : memref<72x128xf32, #tpu.memory_space<vmem>>, vector<72x128xf32>
    %c8_123 = arith.constant 8 : index
    %c0_124 = arith.constant 0 : index
    %105 = vector.load %arg10[%c8_123, %c0_124] : memref<104x128xbf16, #tpu.memory_space<vmem>>, vector<72x128xbf16>
    %c2_125 = arith.constant 2 : index
    %c0_126 = arith.constant 0 : index
    %c0_127 = arith.constant 0 : index
    %106 = vector.load %arg3[%c2_125, %c0_126, %c0_127] : memref<9x128x128xbf16, #tpu.memory_space<vmem>>, vector<1x128x128xbf16>
    %107 = vector.shape_cast %106 : vector<1x128x128xbf16> to vector<128x128xbf16>
    %cst_128 = arith.constant dense<0.000000e+00> : vector<72x128xf32>
    %108 = tpu.matmul %105, %107, %cst_128 {dimension_numbers = #tpu.dot_dimension_numbers<[1], [0], [0], [1], [0, 0, 1, 1], [], []>} : vector<72x128xbf16>, vector<128x128xbf16>, vector<72x128xf32> -> vector<72x128xf32>
    %109 = arith.addf %104, %108 : vector<72x128xf32>
    %c0_129 = arith.constant 0 : index
    %c0_130 = arith.constant 0 : index
    %110 = vector.load %arg9[%c0_129, %c0_130] : memref<72x128xf32, #tpu.memory_space<vmem>>, vector<72x128xf32>
    tpu.vector_store %arg9[%c0_129, %c0_130], %109 {strides = array<i32>} : memref<72x128xf32, #tpu.memory_space<vmem>>, vector<72x128xf32>,
    %c0_131 = arith.constant 0 : index
    %c0_132 = arith.constant 0 : index
    %111 = vector.load %arg9[%c0_131, %c0_132] : memref<72x128xf32, #tpu.memory_space<vmem>>, vector<72x128xf32>
    %c15 = arith.constant 15 : index
    %c0_133 = arith.constant 0 : index
    %112 = vector.load %arg10[%c15, %c0_133] : memref<104x128xbf16, #tpu.memory_space<vmem>>, vector<72x128xbf16>
    %c3_134 = arith.constant 3 : index
    %c0_135 = arith.constant 0 : index
    %c0_136 = arith.constant 0 : index
    %113 = vector.load %arg3[%c3_134, %c0_135, %c0_136] : memref<9x128x128xbf16, #tpu.memory_space<vmem>>, vector<1x128x128xbf16>
    %114 = vector.shape_cast %113 : vector<1x128x128xbf16> to vector<128x128xbf16>
    %cst_137 = arith.constant dense<0.000000e+00> : vector<72x128xf32>
    %115 = tpu.matmul %112, %114, %cst_137 {dimension_numbers = #tpu.dot_dimension_numbers<[1], [0], [0], [1], [0, 0, 1, 1], [], []>} : vector<72x128xbf16>, vector<128x128xbf16>, vector<72x128xf32> -> vector<72x128xf32>
    %116 = arith.addf %111, %115 : vector<72x128xf32>
    %c0_138 = arith.constant 0 : index
    %c0_139 = arith.constant 0 : index
    %117 = vector.load %arg9[%c0_138, %c0_139] : memref<72x128xf32, #tpu.memory_space<vmem>>, vector<72x128xf32>
    tpu.vector_store %arg9[%c0_138, %c0_139], %116 {strides = array<i32>} : memref<72x128xf32, #tpu.memory_space<vmem>>, vector<72x128xf32>,
    %c0_140 = arith.constant 0 : index
    %c0_141 = arith.constant 0 : index
    %118 = vector.load %arg9[%c0_140, %c0_141] : memref<72x128xf32, #tpu.memory_space<vmem>>, vector<72x128xf32>
    %c16_142 = arith.constant 16 : index
    %c0_143 = arith.constant 0 : index
    %119 = vector.load %arg10[%c16_142, %c0_143] : memref<104x128xbf16, #tpu.memory_space<vmem>>, vector<72x128xbf16>
    %c4_144 = arith.constant 4 : index
    %c0_145 = arith.constant 0 : index
    %c0_146 = arith.constant 0 : index
    %120 = vector.load %arg3[%c4_144, %c0_145, %c0_146] : memref<9x128x128xbf16, #tpu.memory_space<vmem>>, vector<1x128x128xbf16>
    %121 = vector.shape_cast %120 : vector<1x128x128xbf16> to vector<128x128xbf16>
    %cst_147 = arith.constant dense<0.000000e+00> : vector<72x128xf32>
    %122 = tpu.matmul %119, %121, %cst_147 {dimension_numbers = #tpu.dot_dimension_numbers<[1], [0], [0], [1], [0, 0, 1, 1], [], []>} : vector<72x128xbf16>, vector<128x128xbf16>, vector<72x128xf32> -> vector<72x128xf32>
    %123 = arith.addf %118, %122 : vector<72x128xf32>
    %c0_148 = arith.constant 0 : index
    %c0_149 = arith.constant 0 : index
    %124 = vector.load %arg9[%c0_148, %c0_149] : memref<72x128xf32, #tpu.memory_space<vmem>>, vector<72x128xf32>
    tpu.vector_store %arg9[%c0_148, %c0_149], %123 {strides = array<i32>} : memref<72x128xf32, #tpu.memory_space<vmem>>, vector<72x128xf32>,
    %c0_150 = arith.constant 0 : index
    %c0_151 = arith.constant 0 : index
    %125 = vector.load %arg9[%c0_150, %c0_151] : memref<72x128xf32, #tpu.memory_space<vmem>>, vector<72x128xf32>
    %c17 = arith.constant 17 : index
    %c0_152 = arith.constant 0 : index
    %126 = vector.load %arg10[%c17, %c0_152] : memref<104x128xbf16, #tpu.memory_space<vmem>>, vector<72x128xbf16>
    %c5_153 = arith.constant 5 : index
    %c0_154 = arith.constant 0 : index
    %c0_155 = arith.constant 0 : index
    %127 = vector.load %arg3[%c5_153, %c0_154, %c0_155] : memref<9x128x128xbf16, #tpu.memory_space<vmem>>, vector<1x128x128xbf16>
    %128 = vector.shape_cast %127 : vector<1x128x128xbf16> to vector<128x128xbf16>
    %cst_156 = arith.constant dense<0.000000e+00> : vector<72x128xf32>
    %129 = tpu.matmul %126, %128, %cst_156 {dimension_numbers = #tpu.dot_dimension_numbers<[1], [0], [0], [1], [0, 0, 1, 1], [], []>} : vector<72x128xbf16>, vector<128x128xbf16>, vector<72x128xf32> -> vector<72x128xf32>
    %130 = arith.addf %125, %129 : vector<72x128xf32>
    %c0_157 = arith.constant 0 : index
    %c0_158 = arith.constant 0 : index
    %131 = vector.load %arg9[%c0_157, %c0_158] : memref<72x128xf32, #tpu.memory_space<vmem>>, vector<72x128xf32>
    tpu.vector_store %arg9[%c0_157, %c0_158], %130 {strides = array<i32>} : memref<72x128xf32, #tpu.memory_space<vmem>>, vector<72x128xf32>,
    %c0_159 = arith.constant 0 : index
    %c0_160 = arith.constant 0 : index
    %132 = vector.load %arg9[%c0_159, %c0_160] : memref<72x128xf32, #tpu.memory_space<vmem>>, vector<72x128xf32>
    %c24 = arith.constant 24 : index
    %c0_161 = arith.constant 0 : index
    %133 = vector.load %arg10[%c24, %c0_161] : memref<104x128xbf16, #tpu.memory_space<vmem>>, vector<72x128xbf16>
    %c6_162 = arith.constant 6 : index
    %c0_163 = arith.constant 0 : index
    %c0_164 = arith.constant 0 : index
    %134 = vector.load %arg3[%c6_162, %c0_163, %c0_164] : memref<9x128x128xbf16, #tpu.memory_space<vmem>>, vector<1x128x128xbf16>
    %135 = vector.shape_cast %134 : vector<1x128x128xbf16> to vector<128x128xbf16>
    %cst_165 = arith.constant dense<0.000000e+00> : vector<72x128xf32>
    %136 = tpu.matmul %133, %135, %cst_165 {dimension_numbers = #tpu.dot_dimension_numbers<[1], [0], [0], [1], [0, 0, 1, 1], [], []>} : vector<72x128xbf16>, vector<128x128xbf16>, vector<72x128xf32> -> vector<72x128xf32>
    %137 = arith.addf %132, %136 : vector<72x128xf32>
    %c0_166 = arith.constant 0 : index
    %c0_167 = arith.constant 0 : index
    %138 = vector.load %arg9[%c0_166, %c0_167] : memref<72x128xf32, #tpu.memory_space<vmem>>, vector<72x128xf32>
    tpu.vector_store %arg9[%c0_166, %c0_167], %137 {strides = array<i32>} : memref<72x128xf32, #tpu.memory_space<vmem>>, vector<72x128xf32>,
    %c0_168 = arith.constant 0 : index
    %c0_169 = arith.constant 0 : index
    %139 = vector.load %arg9[%c0_168, %c0_169] : memref<72x128xf32, #tpu.memory_space<vmem>>, vector<72x128xf32>
    %c25 = arith.constant 25 : index
    %c0_170 = arith.constant 0 : index
    %140 = vector.load %arg10[%c25, %c0_170] : memref<104x128xbf16, #tpu.memory_space<vmem>>, vector<72x128xbf16>
    %c7_171 = arith.constant 7 : index
    %c0_172 = arith.constant 0 : index
    %c0_173 = arith.constant 0 : index
    %141 = vector.load %arg3[%c7_171, %c0_172, %c0_173] : memref<9x128x128xbf16, #tpu.memory_space<vmem>>, vector<1x128x128xbf16>
    %142 = vector.shape_cast %141 : vector<1x128x128xbf16> to vector<128x128xbf16>
    %cst_174 = arith.constant dense<0.000000e+00> : vector<72x128xf32>
    %143 = tpu.matmul %140, %142, %cst_174 {dimension_numbers = #tpu.dot_dimension_numbers<[1], [0], [0], [1], [0, 0, 1, 1], [], []>} : vector<72x128xbf16>, vector<128x128xbf16>, vector<72x128xf32> -> vector<72x128xf32>
    %144 = arith.addf %139, %143 : vector<72x128xf32>
    %c0_175 = arith.constant 0 : index
    %c0_176 = arith.constant 0 : index
    %145 = vector.load %arg9[%c0_175, %c0_176] : memref<72x128xf32, #tpu.memory_space<vmem>>, vector<72x128xf32>
    tpu.vector_store %arg9[%c0_175, %c0_176], %144 {strides = array<i32>} : memref<72x128xf32, #tpu.memory_space<vmem>>, vector<72x128xf32>,
    %c0_177 = arith.constant 0 : index
    %c0_178 = arith.constant 0 : index
    %146 = vector.load %arg9[%c0_177, %c0_178] : memref<72x128xf32, #tpu.memory_space<vmem>>, vector<72x128xf32>
    %c26 = arith.constant 26 : index
    %c0_179 = arith.constant 0 : index
    %147 = vector.load %arg10[%c26, %c0_179] : memref<104x128xbf16, #tpu.memory_space<vmem>>, vector<72x128xbf16>
    %c8_180 = arith.constant 8 : index
    %c0_181 = arith.constant 0 : index
    %c0_182 = arith.constant 0 : index
    %148 = vector.load %arg3[%c8_180, %c0_181, %c0_182] : memref<9x128x128xbf16, #tpu.memory_space<vmem>>, vector<1x128x128xbf16>
    %149 = vector.shape_cast %148 : vector<1x128x128xbf16> to vector<128x128xbf16>
    %cst_183 = arith.constant dense<0.000000e+00> : vector<72x128xf32>
    %150 = tpu.matmul %147, %149, %cst_183 {dimension_numbers = #tpu.dot_dimension_numbers<[1], [0], [0], [1], [0, 0, 1, 1], [], []>} : vector<72x128xbf16>, vector<128x128xbf16>, vector<72x128xf32> -> vector<72x128xf32>
    %151 = arith.addf %146, %150 : vector<72x128xf32>
    %c0_184 = arith.constant 0 : index
    %c0_185 = arith.constant 0 : index
    %152 = vector.load %arg9[%c0_184, %c0_185] : memref<72x128xf32, #tpu.memory_space<vmem>>, vector<72x128xf32>
    tpu.vector_store %arg9[%c0_184, %c0_185], %151 {strides = array<i32>} : memref<72x128xf32, #tpu.memory_space<vmem>>, vector<72x128xf32>,
    %c0_186 = arith.constant 0 : index
    %c0_187 = arith.constant 0 : index
    %153 = vector.load %arg9[%c0_186, %c0_187] : memref<72x128xf32, #tpu.memory_space<vmem>>, vector<72x128xf32>
    %c0_188 = arith.constant 0 : index
    %c0_189 = arith.constant 0 : index
    %154 = vector.load %arg5[%c0_188, %c0_189] : memref<1x128xf32, #tpu.memory_space<vmem>>, vector<1x128xf32>
    %155 = vector.broadcast %154 : vector<1x128xf32> to vector<72x128xf32>
    %156 = arith.addf %153, %155 : vector<72x128xf32>
    %cst_190 = arith.constant 0.000000e+00 : f32
    %157 = vector.broadcast %cst_190 : f32 to vector<72x128xf32>
    %158 = arith.maximumf %156, %157 : vector<72x128xf32>
    %159 = arith.truncf %158 : vector<72x128xf32> to vector<72x128xbf16>
    %c0_191 = arith.constant 0 : index
    %c0_192 = arith.constant 0 : index
    %c0_193 = arith.constant 0 : index
    %160 = vector.load %arg8[%c0_191, %c0_192, %c0_193] : memref<1x72x128xbf16, #tpu.memory_space<vmem>>, vector<1x72x128xbf16>
    %161 = vector.shape_cast %160 : vector<1x72x128xbf16> to vector<72x128xbf16>
    %162 = vector.shape_cast %159 : vector<72x128xbf16> to vector<1x72x128xbf16>
    tpu.vector_store %arg8[%c0_191, %c0_192, %c0_193], %162 {strides = array<i32>} : memref<1x72x128xbf16, #tpu.memory_space<vmem>>, vector<1x72x128xbf16>,
    return
  }
  func.func @transform_0(%arg0: i32) -> (i32, i32, i32) {
    %c0_i32 = arith.constant 0 : i32
    %c0_i32_0 = arith.constant 0 : i32
    %c0_i32_1 = arith.constant 0 : i32
    return %arg0, %c0_i32, %c0_i32_0 : i32, i32, i32
  }
  func.func @transform_1(%arg0: i32) -> (i32, i32, i32) {
    %c0_i32 = arith.constant 0 : i32
    %c0_i32_0 = arith.constant 0 : i32
    %c0_i32_1 = arith.constant 0 : i32
    %c0_i32_2 = arith.constant 0 : i32
    return %c0_i32, %c0_i32_0, %c0_i32_1 : i32, i32, i32
  }
  func.func @transform_2(%arg0: i32) -> (i32, i32, i32) {
    %c0_i32 = arith.constant 0 : i32
    %c0_i32_0 = arith.constant 0 : i32
    %c0_i32_1 = arith.constant 0 : i32
    %c0_i32_2 = arith.constant 0 : i32
    return %c0_i32, %c0_i32_0, %c0_i32_1 : i32, i32, i32
  }
  func.func @transform_3(%arg0: i32) -> (i32, i32) {
    %c0_i32 = arith.constant 0 : i32
    %c0_i32_0 = arith.constant 0 : i32
    %c0_i32_1 = arith.constant 0 : i32
    return %c0_i32, %c0_i32_0 : i32, i32
  }
  func.func @transform_4(%arg0: i32) -> (i32, i32) {
    %c0_i32 = arith.constant 0 : i32
    %c0_i32_0 = arith.constant 0 : i32
    %c0_i32_1 = arith.constant 0 : i32
    return %c0_i32, %c0_i32_0 : i32, i32
  }
  func.func @transform_5(%arg0: i32) -> (i32, i32) {
    %c0_i32 = arith.constant 0 : i32
    %c0_i32_0 = arith.constant 0 : i32
    %c0_i32_1 = arith.constant 0 : i32
    return %c0_i32, %c0_i32_0 : i32, i32
  }
  func.func @transform_6(%arg0: i32) -> (i32, i32) {
    %c0_i32 = arith.constant 0 : i32
    %c0_i32_0 = arith.constant 0 : i32
    %c0_i32_1 = arith.constant 0 : i32
    return %c0_i32, %c0_i32_0 : i32, i32
  }
  func.func @transform_7(%arg0: i32) -> (i32, i32, i32) {
    %c0_i32 = arith.constant 0 : i32
    %c0_i32_0 = arith.constant 0 : i32
    %c0_i32_1 = arith.constant 0 : i32
    return %arg0, %c0_i32, %c0_i32_0 : i32, i32, i32
  }
}

</mosaic_0001>

<llo_original>
// kernel: residual_block_forward.1
$region0: #{residual_block_forward.1}
  #allocation0 [shape = 'u32[]', space=smem, size = 0x4, offset = 0x4, fixed_abs, tag = 'smem constant byte address 0x4 - core index']
  #allocation1 [shape = 'u32[144,128]{1,0:T(1,128)}', space=vmem, size = 0x12000, scoped, tag = 'internal scratch']
  #allocation2 [shape = 'f32[72,128]{1,0:T(8,128)}', space=vmem, size = 0x9000, scoped, tag = 'scratch operand']
  #allocation3 [shape = 'bf16[104,128]{1,0:T(8,128)(2,1)}', space=vmem, size = 0x6800, scoped, tag = 'scratch operand']
  %s0 = inlined_call_operand.vmem [shape: bf16[2,328,128], index: 0, kind: input, shape index: {}]
  %s1 = inlined_call_operand.vmem [shape: bf16[9,128,128], index: 1, kind: input, shape index: {}]
  %s2 = inlined_call_operand.vmem [shape: bf16[9,128,128], index: 2, kind: input, shape index: {}]
  %s3 = inlined_call_operand.vmem [shape: f32[1,128], index: 3, kind: input, shape index: {}]
  %s4 = inlined_call_operand.vmem [shape: f32[1,128], index: 4, kind: input, shape index: {}]
  %s5 = inlined_call_operand.vmem [shape: f32[72,1], index: 5, kind: input, shape index: {}]
  %s6 = inlined_call_operand.vmem [shape: bf16[128,128], index: 6, kind: input, shape index: {}]
  %s7 = inlined_call_operand.vmem [shape: bf16[2,72,128], index: 7, kind: output, shape index: {}]
  %s8 = sld [smem:[#allocation0]]
  $region61: #{residual_block_forward.1} parent=0
    _
  %s10 = ssub.s32 1, %s8
  %s11 = scalar_select 0, %s10, %s8
  loop: start=0, step=1, limit=4
  $region2: #{residual_block_forward.1} parent=0 // loop_pre_header
    _
  $region3: #{residual_block_forward.1} parent=0 // loop_header
    %s13 = sphi 0, %s17
    %p14 = scmp.ge.s32.totalorder %s13, 4
    %s23 = sphi 0, %s25
    %s26 = sphi 0, %s23
    %s27 = sphi 0, %s26
    %s43 = sphi 0, %s27
    %s47 = sphi 0, %s47
    %s49 = sphi 0, %s47
    %s50 = sphi 0, %s49
    %s64 = sphi 0, %s50
    %s68 = sphi 0, %s68
    %s70 = sphi 0, %s68
    %s71 = sphi 0, %s70
    %s85 = sphi 0, %s71
    %s89 = sphi 0, %s89
    %s91 = sphi 0, %s89
    %s92 = sphi 0, %s91
    %s106 = sphi 0, %s92
    %s110 = sphi 0, %s110
    %s112 = sphi 0, %s110
    %s113 = sphi 0, %s112
    %s127 = sphi 0, %s113
    %s131 = sphi 0, %s131
    %s133 = sphi 0, %s131
    %s134 = sphi 0, %s133
    %s148 = sphi 0, %s134
    %s152 = sphi 0, %s152
    %s154 = sphi 0, %s152
    %s155 = sphi 0, %s154
    %s169 = sphi 0, %s155
    %s175 = sphi 0, %s177
    %s178 = sphi 0, %s175
    %s179 = sphi 0, %s178
    %s195 = sphi 0, %s179
  $region4: #{residual_block_forward.1} parent=0 // loop_header_branch
    %16 = sbr.rel (%p14) target = $region8
  $region5: #{residual_block_forward.1} parent=0 // loop_body
    %s18 = ssub.s32 %s13, 1
    %s19 = ssub.s32 %s13, 2
    %s20 = sadd.s32 %s13, 1
    %s21 = ssub.s32 %s13, %s20
    %p22 = scmp.eq.s32.totalorder %s21, 0
    %s24 = sadd.s32 %s23, 1
    %s25 = scalar_select %p22, %s23, %s24
    %p28 = pneg %p22
    %p29 = scmp.eq.s32.totalorder %s13, 1
    %p30 = por %p28, %p29
    %p31 = scmp.ne.s32.totalorder %s23, %s26
    %p32 = scmp.eq.s32.totalorder %s13, 0
    %p33 = por %p31, %p32
    %p34 = scmp.ne.s32.totalorder %s23, %s26
    %p35 = scmp.eq.s32.totalorder %s18, 1
    %p36 = por %p34, %p35
    %p37 = scmp.ne.s32.totalorder %s26, %s27
    %p38 = scmp.eq.s32.totalorder %s18, 0
    %p39 = por %p37, %p38
    %p40 = scmp.ne.s32.totalorder %s26, %s27
    %p41 = scmp.eq.s32.totalorder %s19, 1
    %p42 = por %p40, %p41
    %p44 = scmp.ne.s32.totalorder %s27, %s43
    %p45 = scmp.eq.s32.totalorder %s19, 0
    %p46 = por %p44, %p45
    %s48 = sadd.s32 %s47, 1
    %p51 = scmp.eq.s32.totalorder %s13, 1
    %p52 = scmp.ne.s32.totalorder %s47, %s49
    %p53 = scmp.eq.s32.totalorder %s13, 0
    %p54 = por %p52, %p53
    %p55 = scmp.ne.s32.totalorder %s47, %s49
    %p56 = scmp.eq.s32.totalorder %s18, 1
    %p57 = por %p55, %p56
    %p58 = scmp.ne.s32.totalorder %s49, %s50
    %p59 = scmp.eq.s32.totalorder %s18, 0
    %p60 = por %p58, %p59
    %p61 = scmp.ne.s32.totalorder %s49, %s50
    %p62 = scmp.eq.s32.totalorder %s19, 1
    %p63 = por %p61, %p62
    %p65 = scmp.ne.s32.totalorder %s50, %s64
    %p66 = scmp.eq.s32.totalorder %s19, 0
    %p67 = por %p65, %p66
    %s69 = sadd.s32 %s68, 1
    %p72 = scmp.eq.s32.totalorder %s13, 1
    %p73 = scmp.ne.s32.totalorder %s68, %s70
    %p74 = scmp.eq.s32.totalorder %s13, 0
    %p75 = por %p73, %p74
    %p76 = scmp.ne.s32.totalorder %s68, %s70
    %p77 = scmp.eq.s32.totalorder %s18, 1
    %p78 = por %p76, %p77
    %p79 = scmp.ne.s32.totalorder %s70, %s71
    %p80 = scmp.eq.s32.totalorder %s18, 0
    %p81 = por %p79, %p80
    %p82 = scmp.ne.s32.totalorder %s70, %s71
    %p83 = scmp.eq.s32.totalorder %s19, 1
    %p84 = por %p82, %p83
    %p86 = scmp.ne.s32.totalorder %s71, %s85
    %p87 = scmp.eq.s32.totalorder %s19, 0
    %p88 = por %p86, %p87
    %s90 = sadd.s32 %s89, 1
    %p93 = scmp.eq.s32.totalorder %s13, 1
    %p94 = scmp.ne.s32.totalorder %s89, %s91
    %p95 = scmp.eq.s32.totalorder %s13, 0
    %p96 = por %p94, %p95
    %p97 = scmp.ne.s32.totalorder %s89, %s91
    %p98 = scmp.eq.s32.totalorder %s18, 1
    %p99 = por %p97, %p98
    %p100 = scmp.ne.s32.totalorder %s91, %s92
    %p101 = scmp.eq.s32.totalorder %s18, 0
    %p102 = por %p100, %p101
    %p103 = scmp.ne.s32.totalorder %s91, %s92
    %p104 = scmp.eq.s32.totalorder %s19, 1
    %p105 = por %p103, %p104
    %p107 = scmp.ne.s32.totalorder %s92, %s106
    %p108 = scmp.eq.s32.totalorder %s19, 0
    %p109 = por %p107, %p108
    %s111 = sadd.s32 %s110, 1
    %p114 = scmp.eq.s32.totalorder %s13, 1
    %p115 = scmp.ne.s32.totalorder %s110, %s112
    %p116 = scmp.eq.s32.totalorder %s13, 0
    %p117 = por %p115, %p116
    %p118 = scmp.ne.s32.totalorder %s110, %s112
    %p119 = scmp.eq.s32.totalorder %s18, 1
    %p120 = por %p118, %p119
    %p121 = scmp.ne.s32.totalorder %s112, %s113
    %p122 = scmp.eq.s32.totalorder %s18, 0
    %p123 = por %p121, %p122
    %p124 = scmp.ne.s32.totalorder %s112, %s113
    %p125 = scmp.eq.s32.totalorder %s19, 1
    %p126 = por %p124, %p125
    %p128 = scmp.ne.s32.totalorder %s113, %s127
    %p129 = scmp.eq.s32.totalorder %s19, 0
    %p130 = por %p128, %p129
    %s132 = sadd.s32 %s131, 1
    %p135 = scmp.eq.s32.totalorder %s13, 1
    %p136 = scmp.ne.s32.totalorder %s131, %s133
    %p137 = scmp.eq.s32.totalorder %s13, 0
    %p138 = por %p136, %p137
    %p139 = scmp.ne.s32.totalorder %s131, %s133
    %p140 = scmp.eq.s32.totalorder %s18, 1
    %p141 = por %p139, %p140
    %p142 = scmp.ne.s32.totalorder %s133, %s134
    %p143 = scmp.eq.s32.totalorder %s18, 0
    %p144 = por %p142, %p143
    %p145 = scmp.ne.s32.totalorder %s133, %s134
    %p146 = scmp.eq.s32.totalorder %s19, 1
    %p147 = por %p145, %p146
    %p149 = scmp.ne.s32.totalorder %s134, %s148
    %p150 = scmp.eq.s32.totalorder %s19, 0
    %p151 = por %p149, %p150
    %s153 = sadd.s32 %s152, 1
    %p156 = scmp.eq.s32.totalorder %s13, 1
    %p157 = scmp.ne.s32.totalorder %s152, %s154
    %p158 = scmp.eq.s32.totalorder %s13, 0
    %p159 = por %p157, %p158
    %p160 = scmp.ne.s32.totalorder %s152, %s154
    %p161 = scmp.eq.s32.totalorder %s18, 1
    %p162 = por %p160, %p161
    %p163 = scmp.ne.s32.totalorder %s154, %s155
    %p164 = scmp.eq.s32.totalorder %s18, 0
    %p165 = por %p163, %p164
    %p166 = scmp.ne.s32.totalorder %s154, %s155
    %p167 = scmp.eq.s32.totalorder %s19, 1
    %p168 = por %p166, %p167
    %p170 = scmp.ne.s32.totalorder %s155, %s169
    %p171 = scmp.eq.s32.totalorder %s19, 0
    %p172 = por %p170, %p171
    %s173 = ssub.s32 %s13, %s20
    %p174 = scmp.eq.s32.totalorder %s173, 0
    %s176 = sadd.s32 %s175, 1
    %s177 = scalar_select %p174, %s175, %s176
    %p180 = pneg %p174
    %p181 = scmp.eq.s32.totalorder %s13, 1
    %p182 = por %p180, %p181
    %p183 = scmp.ne.s32.totalorder %s175, %s178
    %p184 = scmp.eq.s32.totalorder %s13, 0
    %p185 = por %p183, %p184
    %p186 = scmp.ne.s32.totalorder %s175, %s178
    %p187 = scmp.eq.s32.totalorder %s18, 1
    %p188 = por %p186, %p187
    %p189 = scmp.ne.s32.totalorder %s178, %s179
    %p190 = scmp.eq.s32.totalorder %s18, 0
    %p191 = por %p189, %p190
    %p192 = scmp.ne.s32.totalorder %s178, %s179
    %p193 = scmp.eq.s32.totalorder %s19, 1
    %p194 = por %p192, %p193
    %p196 = scmp.ne.s32.totalorder %s179, %s195
    %p197 = scmp.eq.s32.totalorder %s19, 0
    %p198 = por %p196, %p197
    %p199 = scmp.le.s32.totalorder 1, %s13
    %p200 = scmp.lt.s32.totalorder %s13, 3
    %p201 = pnand %p199, %p200
    %p202 = pneg %p201
    // Predicated region
    $region9: #{residual_block_forward.1} parent=5 // pred_check
      _
    $region10: #{residual_block_forward.1} parent=5 // pred_check_branch
      %204 = sbr.rel (%p201) target = $region12
    $region11: #{residual_block_forward.1} parent=5 // pred_region
      %s205 = ssub.s32 %s13, 1
      // Predicated region
      $region13: #{residual_block_forward.1} parent=11 // pred_check
        %p206 = pneg %p60
      $region14: #{residual_block_forward.1} parent=11 // pred_check_branch
        %208 = sbr.rel (%p206) target = $region16
      $region15: #{residual_block_forward.1} parent=11 // pred_region
        _
      $region16: #{residual_block_forward.1} parent=11 // pred_fallthru
        _
      // Predicated region
      $region17: #{residual_block_forward.1} parent=11 // pred_check
        %p209 = pneg %p81
      $region18: #{residual_block_forward.1} parent=11 // pred_check_branch
        %211 = sbr.rel (%p209) target = $region20
      $region19: #{residual_block_forward.1} parent=11 // pred_region
        _
      $region20: #{residual_block_forward.1} parent=11 // pred_fallthru
        _
      // Predicated region
      $region21: #{residual_block_forward.1} parent=11 // pred_check
        %p212 = pneg %p102
      $region22: #{residual_block_forward.1} parent=11 // pred_check_branch
        %214 = sbr.rel (%p212) target = $region24
      $region23: #{residual_block_forward.1} parent=11 // pred_region
        _
      $region24: #{residual_block_forward.1} parent=11 // pred_fallthru
        _
      // Predicated region
      $region25: #{residual_block_forward.1} parent=11 // pred_check
        %p215 = pneg %p123
      $region26: #{residual_block_forward.1} parent=11 // pred_check_branch
        %217 = sbr.rel (%p215) target = $region28
      $region27: #{residual_block_forward.1} parent=11 // pred_region
        _
      $region28: #{residual_block_forward.1} parent=11 // pred_fallthru
        _
      // Predicated region
      $region29: #{residual_block_forward.1} parent=11 // pred_check
        %p218 = pneg %p144
      $region30: #{residual_block_forward.1} parent=11 // pred_check_branch
        %220 = sbr.rel (%p218) target = $region32
      $region31: #{residual_block_forward.1} parent=11 // pred_region
        _
      $region32: #{residual_block_forward.1} parent=11 // pred_fallthru
        _
      // Predicated region
      $region33: #{residual_block_forward.1} parent=11 // pred_check
        %p221 = pneg %p165
      $region34: #{residual_block_forward.1} parent=11 // pred_check_branch
        %223 = sbr.rel (%p221) target = $region36
      $region35: #{residual_block_forward.1} parent=11 // pred_region
        _
      $region36: #{residual_block_forward.1} parent=11 // pred_fallthru
        _
    $region12: #{residual_block_forward.1} parent=5 // pred_fallthru
      _
    %p224 = scmp.lt.s32.totalorder %s13, 2
    // Predicated region
    $region37: #{residual_block_forward.1} parent=5 // pred_check
      %p225 = pneg %p224
    $region38: #{residual_block_forward.1} parent=5 // pred_check_branch
      %227 = sbr.rel (%p225) target = $region40
    $region39: #{residual_block_forward.1} parent=5 // pred_region
      // Predicated region
      $region41: #{residual_block_forward.1} parent=39 // pred_check
        %p228 = pneg %p33
      $region42: #{residual_block_forward.1} parent=39 // pred_check_branch
        %230 = sbr.rel (%p228) target = $region44
      $region43: #{residual_block_forward.1} parent=39 // pred_region
        %p231 = scmp.lt.s32.totalorder %s13, 1
        %s232 = scalar_select %p231, %s13, 1
        %s233 = smul.addr %s232, 41
        %s234 = smul.addr %s233, 4
        %s235 = scalar_lea.vmem %s0, %s234
      $region44: #{residual_block_forward.1} parent=39 // pred_fallthru
        _
    $region40: #{residual_block_forward.1} parent=5 // pred_fallthru
      _
    %p236 = scmp.le.s32.totalorder 1, %s13
    %p237 = scmp.lt.s32.totalorder %s13, 3
    %p238 = pnand %p236, %p237
    %p239 = pneg %p238
    // Predicated region
    $region45: #{residual_block_forward.1} parent=5 // pred_check
      _
    $region46: #{residual_block_forward.1} parent=5 // pred_check_branch
      %241 = sbr.rel (%p238) target = $region48
    $region47: #{residual_block_forward.1} parent=5 // pred_region
      %s242 = ssub.s32 %s13, 1
      %p243 = scmp.lt.s32.totalorder %s18, 1
      %s244 = scalar_select %p243, %s18, 1
      %s245 = smul.addr %s244, 41
      %s246 = smul.addr %s245, 4
      %s247 = scalar_lea.vmem %s0, %s246
      %p248 = pneg %p39
      %p249 = pneg %p36
      %p250 = pneg %p60
      %p251 = pneg %p57
      %p252 = pneg %p81
      %p253 = pneg %p78
      %p254 = pneg %p102
      %p255 = pneg %p99
      %p256 = pneg %p123
      %p257 = pneg %p120
      %p258 = pneg %p144
      %p259 = pneg %p141
      %p260 = pneg %p165
      %p261 = pneg %p162
      %p262 = pneg %p191
      %p263 = pneg %p188
      %p264 = scmp.lt.s32.totalorder %s18, 1
      %s265 = scalar_select %p264, %s18, 1
      %s266 = smul.addr %s265, 9
      %s267 = smul.addr %s266, 4
      %s268 = scalar_lea.vmem %s7, %s267
      %p269 = scmp.lt.s32.totalorder %s18, 1
      %s270 = scalar_select %p269, %s18, 1
      %s271 = smul.addr %s270, 41
      %s272 = smul.addr %s271, 4
      %s273 = scalar_lea.vmem %s0, %s272
      %p274 = scmp.lt.s32.totalorder %s18, 1
      %s275 = scalar_select %p274, %s18, 1
      %s276 = smul.addr %s275, 9
      %s277 = smul.addr %s276, 4
      %s278 = scalar_lea.vmem %s7, %s277
      %280 = vst [vmem:[#allocation3] sm:$0xf] 0
      %281 = vst [vmem:[#allocation3 + $0x4] sm:$0xf] 0
      %282 = vst [vmem:[#allocation3 + $0x2c] sm:$0xf] 0
      %283 = vst [vmem:[#allocation3 + $0x30] sm:$0xf] 0
      %v284 = vld [vmem:[%s273] sm:$0xf]
      %v285 = vld [vmem:[%s273 + $0x4] sm:$0xf]
      %v286 = vld [vmem:[%s273 + $0x8] sm:$0xf]
      %v287 = vld [vmem:[%s273 + $0xc] sm:$0xf]
      %v288 = vld [vmem:[%s273 + $0x10] sm:$0xf]
      %v289 = vld [vmem:[%s273 + $0x14] sm:$0xf]
      %v290 = vld [vmem:[%s273 + $0x18] sm:$0xf]
      %v291 = vld [vmem:[%s273 + $0x1c] sm:$0xf]
      %v292 = vld [vmem:[%s273 + $0x20] sm:$0xf]
      %v293 = vld [vmem:[%s1] sm:$0xf]
      %v294 = vld [vmem:[%s1 + $0x4] sm:$0xf]
      %v295 = vld [vmem:[%s1 + $0x8] sm:$0xf]
      %v296 = vld [vmem:[%s1 + $0xc] sm:$0xf]
      %v297 = vld [vmem:[%s1 + $0x10] sm:$0xf]
      %v298 = vld [vmem:[%s1 + $0x14] sm:$0xf]
      %v299 = vld [vmem:[%s1 + $0x18] sm:$0xf]
      %v300 = vld [vmem:[%s1 + $0x1c] sm:$0xf]
      %v301 = vld [vmem:[%s1 + $0x20] sm:$0xf]
      %v302 = vld [vmem:[%s1 + $0x24] sm:$0xf]
      %v303 = vld [vmem:[%s1 + $0x28] sm:$0xf]
      %v304 = vld [vmem:[%s1 + $0x2c] sm:$0xf]
      %v305 = vld [vmem:[%s1 + $0x30] sm:$0xf]
      %v306 = vld [vmem:[%s1 + $0x34] sm:$0xf]
      %v307 = vld [vmem:[%s1 + $0x38] sm:$0xf]
      %v308 = vld [vmem:[%s1 + $0x3c] sm:$0xf]
      %v318 = vunpack.c.l.b16 %v284
      %v319 = vunpack.c.l.b16 %v285
      %v320 = vunpack.c.l.b16 %v286
      %v321 = vunpack.c.l.b16 %v287
      %v322 = vunpack.c.l.b16 %v288
      %v323 = vunpack.c.l.b16 %v289
      %v324 = vunpack.c.l.b16 %v290
      %v325 = vunpack.c.l.b16 %v291
      %v326 = vunpack.c.l.b16 %v292
      %v327 = vpack.c.b16 %v319, %v318
      %v328 = vpack.c.b16 %v321, %v320
      %v329 = vpack.c.b16 %v323, %v322
      %v330 = vpack.c.b16 %v325, %v324
      %v331 = vpack.c.b16 %v326, %v326
      %v353 = vunpack.c.l.b16 %v293
      %v354 = vunpack.c.l.b16 %v294
      %v355 = vunpack.c.l.b16 %v295
      %v356 = vunpack.c.l.b16 %v296
      %v357 = vunpack.c.l.b16 %v297
      %v358 = vunpack.c.l.b16 %v298
      %v359 = vunpack.c.l.b16 %v299
      %v360 = vunpack.c.l.b16 %v300
      %v361 = vunpack.c.l.b16 %v301
      %v362 = vunpack.c.l.b16 %v302
      %v363 = vunpack.c.l.b16 %v303
      %v364 = vunpack.c.l.b16 %v304
      %v365 = vunpack.c.l.b16 %v305
      %v366 = vunpack.c.l.b16 %v306
      %v367 = vunpack.c.l.b16 %v307
      %v368 = vunpack.c.l.b16 %v308
      %v369 = vpack.c.b16 %v354, %v353
      %v370 = vpack.c.b16 %v356, %v355
      %v371 = vpack.c.b16 %v358, %v357
      %v372 = vpack.c.b16 %v360, %v359
      %v373 = vpack.c.b16 %v362, %v361
      %v374 = vpack.c.b16 %v364, %v363
      %v375 = vpack.c.b16 %v366, %v365
      %v376 = vpack.c.b16 %v368, %v367
      %385 = vmatprep.subr.bf16.mxu0 0
      %386 = vmatpush1.bf16.msra.mxu0 %v369
      %387 = vmatprep.subr.bf16.mxu0 0
      %388 = vmatpush1.bf16.msra.mxu0 %v370
      %389 = vmatprep.subr.bf16.mxu0 0
      %390 = vmatpush1.bf16.msra.mxu0 %v371
      %391 = vmatprep.subr.bf16.mxu0 0
      %392 = vmatpush1.bf16.msra.mxu0 %v372
      %393 = vmatprep.subr.bf16.mxu0 0
      %394 = vmatpush1.bf16.msra.mxu0 %v373
      %395 = vmatprep.subr.bf16.mxu0 0
      %396 = vmatpush1.bf16.msra.mxu0 %v374
      %397 = vmatprep.subr.bf16.mxu0 0
      %398 = vmatpush1.bf16.msra.mxu0 %v375
      %399 = vmatprep.subr.bf16.mxu0 0
      %400 = vmatpush1.bf16.msra.mxu0 %v376
      %401 = vmatprep.subr.bf16.mxu0 0
      %402 = vmatpush1.bf16.msra.mxu0 0
      %403 = vmatprep.subr.bf16.mxu0 0
      %404 = vmatpush1.bf16.msra.mxu0 0
      %405 = vmatprep.subr.bf16.mxu0 0
      %406 = vmatpush1.bf16.msra.mxu0 0
      %407 = vmatprep.subr.bf16.mxu0 0
      %408 = vmatpush1.bf16.msra.mxu0 0
      %409 = vmatprep.subr.bf16.mxu0 0
      %410 = vmatpush1.bf16.msra.mxu0 0
      %411 = vmatprep.subr.bf16.mxu0 0
      %412 = vmatpush1.bf16.msra.mxu0 0
      %413 = vmatprep.subr.bf16.mxu0 0
      %414 = vmatpush1.bf16.msra.mxu0 0
      %415 = vmatprep.subr.bf16.mxu0 0
      %416 = vmatpush1.bf16.msra.mxu0 0
      %417 = vmatprep.mubr.bf16.mxu0 0
      %418 = vmatmul.mubr.bf16.gmra.mrb[0].mxu0 %v327
      %v419 = vpop.f32.mrb[0].mxu0
      %v420 = vadd.f32 0.0, %v419
      %v421 = vpop.f32.mrb[0].mxu0
      %v422 = vpop.f32.mrb[0].mxu0
      %v423 = vadd.f32 0.0, %v422
      %v424 = vpop.f32.mrb[0].mxu0
      %425 = vmatprep.mubr.bf16.mxu0 0
      %426 = vmatmul.mubr.bf16.gmra.mrb[0].mxu0 %v328
      %v427 = vpop.f32.mrb[0].mxu0
      %v428 = vadd.f32 0.0, %v427
      %v429 = vpop.f32.mrb[0].mxu0
      %v430 = vpop.f32.mrb[0].mxu0
      %v431 = vadd.f32 0.0, %v430
      %v432 = vpop.f32.mrb[0].mxu0
      %433 = vmatprep.mubr.bf16.mxu0 0
      %434 = vmatmul.mubr.bf16.gmra.mrb[0].mxu0 %v329
      %v435 = vpop.f32.mrb[0].mxu0
      %v436 = vadd.f32 0.0, %v435
      %v437 = vpop.f32.mrb[0].mxu0
      %v438 = vpop.f32.mrb[0].mxu0
      %v439 = vadd.f32 0.0, %v438
      %v440 = vpop.f32.mrb[0].mxu0
      %441 = vmatprep.mubr.bf16.mxu0 0
      %442 = vmatmul.mubr.bf16.gmra.mrb[0].mxu0 %v330
      %v443 = vpop.f32.mrb[0].mxu0
      %v444 = vadd.f32 0.0, %v443
      %v445 = vpop.f32.mrb[0].mxu0
      %v446 = vpop.f32.mrb[0].mxu0
      %v447 = vadd.f32 0.0, %v446
      %v448 = vpop.f32.mrb[0].mxu0
      %449 = vmatprep.mubr.bf16.mxu0 0
      %450 = vmatmul.mubr.bf16.gmra.mrb[0].mxu0 %v331
      %v451 = vpop.f32.mrb[0].mxu0
      %v452 = vadd.f32 0.0, %v451
      %v453 = vpop.f32.mrb[0].mxu0
      %v454 = vpop.f32.mrb[0].mxu0
      %v455 = vpop.f32.mrb[0].mxu0
      %456 = vdwg.mxu0
      %457 = vst [vmem:[#allocation2] sm:$0xff] %v420
      %458 = vst [vmem:[#allocation2 + $0x8] sm:$0xff] %v423
      %459 = vst [vmem:[#allocation2 + $0x10] sm:$0xff] %v428
      %460 = vst [vmem:[#allocation2 + $0x18] sm:$0xff] %v431
      %461 = vst [vmem:[#allocation2 + $0x20] sm:$0xff] %v436
      %462 = vst [vmem:[#allocation2 + $0x28] sm:$0xff] %v439
      %463 = vst [vmem:[#allocation2 + $0x30] sm:$0xff] %v444
      %464 = vst [vmem:[#allocation2 + $0x38] sm:$0xff] %v447
      %465 = vst [vmem:[#allocation2 + $0x40] sm:$0xff] %v452
      %v466 = vld [vmem:[#allocation2] sm:$0xff]
      %v467 = vld [vmem:[#allocation2 + $0x8] sm:$0xff]
      %v468 = vld [vmem:[#allocation2 + $0x10] sm:$0xff]
      %v469 = vld [vmem:[#allocation2 + $0x18] sm:$0xff]
      %v470 = vld [vmem:[#allocation2 + $0x20] sm:$0xff]
      %v471 = vld [vmem:[#allocation2 + $0x28] sm:$0xff]
      %v472 = vld [vmem:[#allocation2 + $0x30] sm:$0xff]
      %v473 = vld [vmem:[#allocation2 + $0x38] sm:$0xff]
      %v474 = vld [vmem:[#allocation2 + $0x40] sm:$0xff]
      %v475 = vld [vmem:[%s273 + $0x28] sm:$0xf]
      %v476 = vld [vmem:[%s273 + $0x2c] sm:$0xf]
      %v477 = vld [vmem:[%s273 + $0x30] sm:$0xf]
      %v478 = vld [vmem:[%s273 + $0x34] sm:$0xf]
      %v479 = vld [vmem:[%s273 + $0x38] sm:$0xf]
      %v480 = vld [vmem:[%s273 + $0x3c] sm:$0xf]
      %v481 = vld [vmem:[%s273 + $0x40] sm:$0xf]
      %v482 = vld [vmem:[%s273 + $0x44] sm:$0xf]
      %v483 = vld [vmem:[%s273 + $0x48] sm:$0xf]
      %v484 = vld [vmem:[%s273 + $0x4c] sm:$0x1]
      %s485 = scalar_lea.vmem %s1, 64
      %v486 = vld [vmem:[%s485] sm:$0xf]
      %v487 = vld [vmem:[%s485 + $0x4] sm:$0xf]
      %v488 = vld [vmem:[%s485 + $0x8] sm:$0xf]
      %v489 = vld [vmem:[%s485 + $0xc] sm:$0xf]
      %v490 = vld [vmem:[%s485 + $0x10] sm:$0xf]
      %v491 = vld [vmem:[%s485 + $0x14] sm:$0xf]
      %v492 = vld [vmem:[%s485 + $0x18] sm:$0xf]
      %v493 = vld [vmem:[%s485 + $0x1c] sm:$0xf]
      %v494 = vld [vmem:[%s485 + $0x20] sm:$0xf]
      %v495 = vld [vmem:[%s485 + $0x24] sm:$0xf]
      %v496 = vld [vmem:[%s485 + $0x28] sm:$0xf]
      %v497 = vld [vmem:[%s485 + $0x2c] sm:$0xf]
      %v498 = vld [vmem:[%s485 + $0x30] sm:$0xf]
      %v499 = vld [vmem:[%s485 + $0x34] sm:$0xf]
      %v500 = vld [vmem:[%s485 + $0x38] sm:$0xf]
      %v501 = vld [vmem:[%s485 + $0x3c] sm:$0xf]
      %v512 = vunpack.c.l.b16 %v475
      %v513 = vunpack.c.l.b16 %v476
      %v514 = vunpack.c.l.b16 %v477
      %v515 = vunpack.c.l.b16 %v478
      %v516 = vunpack.c.l.b16 %v479
      %v517 = vunpack.c.l.b16 %v480
      %v518 = vunpack.c.l.b16 %v481
      %v519 = vunpack.c.l.b16 %v482
      %v520 = vunpack.c.l.b16 %v483
      %v521 = vunpack.c.l.b16 %v484
      %v522 = vpack.c.b16 %v513, %v512
      %v523 = vpack.c.b16 %v515, %v514
      %v524 = vpack.c.b16 %v517, %v516
      %v525 = vpack.c.b16 %v519, %v518
      %v526 = vpack.c.b16 %v521, %v520
      %vm527 = vsmask.f32 7424
      %v529 = vshrl.u32 %v522, 16
      %v531 = vshll.u32 %v522, 16
      %v533 = vrot.slane %v531, 1
      %v534 = vor.u32 %v529, %v533
      %v536 = vshll.u32 %v523, 16
      %v538 = vrot.slane %v536, 1
      %v539 = vsel %vm527, %v534, %v538
      %v540 = vshrl.u32 %v523, 16
      %v542 = vor.u32 %v540, %v538
      %v544 = vshll.u32 %v524, 16
      %v546 = vrot.slane %v544, 1
      %v547 = vsel %vm527, %v542, %v546
      %v548 = vshrl.u32 %v524, 16
      %v550 = vor.u32 %v548, %v546
      %v552 = vshll.u32 %v525, 16
      %v554 = vrot.slane %v552, 1
      %v555 = vsel %vm527, %v550, %v554
      %v556 = vshrl.u32 %v525, 16
      %v558 = vor.u32 %v556, %v554
      %v560 = vshll.u32 %v526, 16
      %v562 = vrot.slane %v560, 1
      %v563 = vsel %vm527, %v558, %v562
      %v564 = vshrl.u32 %v526, 16
      %v566 = vor.u32 %v564, %v562
      %v588 = vunpack.c.l.b16 %v486
      %v589 = vunpack.c.l.b16 %v487
      %v590 = vunpack.c.l.b16 %v488
      %v591 = vunpack.c.l.b16 %v489
      %v592 = vunpack.c.l.b16 %v490
      %v593 = vunpack.c.l.b16 %v491
      %v594 = vunpack.c.l.b16 %v492
      %v595 = vunpack.c.l.b16 %v493
      %v596 = vunpack.c.l.b16 %v494
      %v597 = vunpack.c.l.b16 %v495
      %v598 = vunpack.c.l.b16 %v496
      %v599 = vunpack.c.l.b16 %v497
      %v600 = vunpack.c.l.b16 %v498
      %v601 = vunpack.c.l.b16 %v499
      %v602 = vunpack.c.l.b16 %v500
      %v603 = vunpack.c.l.b16 %v501
      %v604 = vpack.c.b16 %v589, %v588
      %v605 = vpack.c.b16 %v591, %v590
      %v606 = vpack.c.b16 %v593, %v592
      %v607 = vpack.c.b16 %v595, %v594
      %v608 = vpack.c.b16 %v597, %v596
      %v609 = vpack.c.b16 %v599, %v598
      %v610 = vpack.c.b16 %v601, %v600
      %v611 = vpack.c.b16 %v603, %v602
      %620 = vmatprep.subr.bf16.mxu0 0
      %621 = vmatpush1.bf16.msra.mxu0 %v604
      %622 = vmatprep.subr.bf16.mxu0 0
      %623 = vmatpush1.bf16.msra.mxu0 %v605
      %624 = vmatprep.subr.bf16.mxu0 0
      %625 = vmatpush1.bf16.msra.mxu0 %v606
      %626 = vmatprep.subr.bf16.mxu0 0
      %627 = vmatpush1.bf16.msra.mxu0 %v607
      %628 = vmatprep.subr.bf16.mxu0 0
      %629 = vmatpush1.bf16.msra.mxu0 %v608
      %630 = vmatprep.subr.bf16.mxu0 0
      %631 = vmatpush1.bf16.msra.mxu0 %v609
      %632 = vmatprep.subr.bf16.mxu0 0
      %633 = vmatpush1.bf16.msra.mxu0 %v610
      %634 = vmatprep.subr.bf16.mxu0 0
      %635 = vmatpush1.bf16.msra.mxu0 %v611
      %636 = vmatprep.subr.bf16.mxu0 0
      %637 = vmatpush1.bf16.msra.mxu0 0
      %638 = vmatprep.subr.bf16.mxu0 0
      %639 = vmatpush1.bf16.msra.mxu0 0
      %640 = vmatprep.subr.bf16.mxu0 0
      %641 = vmatpush1.bf16.msra.mxu0 0
      %642 = vmatprep.subr.bf16.mxu0 0
      %643 = vmatpush1.bf16.msra.mxu0 0
      %644 = vmatprep.subr.bf16.mxu0 0
      %645 = vmatpush1.bf16.msra.mxu0 0
      %646 = vmatprep.subr.bf16.mxu0 0
      %647 = vmatpush1.bf16.msra.mxu0 0
      %648 = vmatprep.subr.bf16.mxu0 0
      %649 = vmatpush1.bf16.msra.mxu0 0
      %650 = vmatprep.subr.bf16.mxu0 0
      %651 = vmatpush1.bf16.msra.mxu0 0
      %652 = vmatprep.mubr.bf16.mxu0 0
      %653 = vmatmul.mubr.bf16.gmra.mrb[0].mxu0 %v539
      %v654 = vpop.f32.mrb[0].mxu0
      %v655 = vadd.f32 0.0, %v654
      %v656 = vpop.f32.mrb[0].mxu0
      %v657 = vpop.f32.mrb[0].mxu0
      %v658 = vadd.f32 0.0, %v657
      %v659 = vpop.f32.mrb[0].mxu0
      %660 = vmatprep.mubr.bf16.mxu0 0
      %661 = vmatmul.mubr.bf16.gmra.mrb[0].mxu0 %v547
      %v662 = vpop.f32.mrb[0].mxu0
      %v663 = vadd.f32 0.0, %v662
      %v664 = vpop.f32.mrb[0].mxu0
      %v665 = vpop.f32.mrb[0].mxu0
      %v666 = vadd.f32 0.0, %v665
      %v667 = vpop.f32.mrb[0].mxu0
      %668 = vmatprep.mubr.bf16.mxu0 0
      %669 = vmatmul.mubr.bf16.gmra.mrb[0].mxu0 %v555
      %v670 = vpop.f32.mrb[0].mxu0
      %v671 = vadd.f32 0.0, %v670
      %v672 = vpop.f32.mrb[0].mxu0
      %v673 = vpop.f32.mrb[0].mxu0
      %v674 = vadd.f32 0.0, %v673
      %v675 = vpop.f32.mrb[0].mxu0
      %676 = vmatprep.mubr.bf16.mxu0 0
      %677 = vmatmul.mubr.bf16.gmra.mrb[0].mxu0 %v563
      %v678 = vpop.f32.mrb[0].mxu0
      %v679 = vadd.f32 0.0, %v678
      %v680 = vpop.f32.mrb[0].mxu0
      %v681 = vpop.f32.mrb[0].mxu0
      %v682 = vadd.f32 0.0, %v681
      %v683 = vpop.f32.mrb[0].mxu0
      %684 = vmatprep.mubr.bf16.mxu0 0
      %685 = vmatmul.mubr.bf16.gmra.mrb[0].mxu0 %v566
      %v686 = vpop.f32.mrb[0].mxu0
      %v687 = vadd.f32 0.0, %v686
      %v688 = vpop.f32.mrb[0].mxu0
      %v689 = vpop.f32.mrb[0].mxu0
      %v690 = vpop.f32.mrb[0].mxu0
      %691 = vdwg.mxu0
      %v692 = vadd.f32 %v466, %v655
      %v693 = vadd.f32 %v467, %v658
      %v694 = vadd.f32 %v468, %v663
      %v695 = vadd.f32 %v469, %v666
      %v696 = vadd.f32 %v470, %v671
      %v697 = vadd.f32 %v471, %v674
      %v698 = vadd.f32 %v472, %v679
      %v699 = vadd.f32 %v473, %v682
      %v700 = vadd.f32 %v474, %v687
      %701 = vst [vmem:[#allocation2] sm:$0xff] %v692
      %702 = vst [vmem:[#allocation2 + $0x8] sm:$0xff] %v693
      %703 = vst [vmem:[#allocation2 + $0x10] sm:$0xff] %v694
      %704 = vst [vmem:[#allocation2 + $0x18] sm:$0xff] %v695
      %705 = vst [vmem:[#allocation2 + $0x20] sm:$0xff] %v696
      %706 = vst [vmem:[#allocation2 + $0x28] sm:$0xff] %v697
      %707 = vst [vmem:[#allocation2 + $0x30] sm:$0xff] %v698
      %708 = vst [vmem:[#allocation2 + $0x38] sm:$0xff] %v699
      %709 = vst [vmem:[#allocation2 + $0x40] sm:$0xff] %v700
      %v710 = vld [vmem:[#allocation2] sm:$0xff]
      %v711 = vld [vmem:[#allocation2 + $0x8] sm:$0xff]
      %v712 = vld [vmem:[#allocation2 + $0x10] sm:$0xff]
      %v713 = vld [vmem:[#allocation2 + $0x18] sm:$0xff]
      %v714 = vld [vmem:[#allocation2 + $0x20] sm:$0xff]
      %v715 = vld [vmem:[#allocation2 + $0x28] sm:$0xff]
      %v716 = vld [vmem:[#allocation2 + $0x30] sm:$0xff]
      %v717 = vld [vmem:[#allocation2 + $0x38] sm:$0xff]
      %v718 = vld [vmem:[#allocation2 + $0x40] sm:$0xff]
      %v719 = vld [vmem:[%s273] sm:$0xf]
      %v720 = vld [vmem:[%s273 + $0x4] sm:$0xf]
      %v721 = vld [vmem:[%s273 + $0x8] sm:$0xf]
      %v722 = vld [vmem:[%s273 + $0xc] sm:$0xf]
      %v723 = vld [vmem:[%s273 + $0x10] sm:$0xf]
      %v724 = vld [vmem:[%s273 + $0x14] sm:$0xf]
      %v725 = vld [vmem:[%s273 + $0x18] sm:$0xf]
      %v726 = vld [vmem:[%s273 + $0x1c] sm:$0xf]
      %v727 = vld [vmem:[%s273 + $0x20] sm:$0xf]
      %v728 = vld [vmem:[%s273 + $0x24] sm:$0x1]
      %s729 = scalar_lea.vmem %s1, 128
      %v730 = vld [vmem:[%s729] sm:$0xf]
      %v731 = vld [vmem:[%s729 + $0x4] sm:$0xf]
      %v732 = vld [vmem:[%s729 + $0x8] sm:$0xf]
      %v733 = vld [vmem:[%s729 + $0xc] sm:$0xf]
      %v734 = vld [vmem:[%s729 + $0x10] sm:$0xf]
      %v735 = vld [vmem:[%s729 + $0x14] sm:$0xf]
      %v736 = vld [vmem:[%s729 + $0x18] sm:$0xf]
      %v737 = vld [vmem:[%s729 + $0x1c] sm:$0xf]
      %v738 = vld [vmem:[%s729 + $0x20] sm:$0xf]
      %v739 = vld [vmem:[%s729 + $0x24] sm:$0xf]
      %v740 = vld [vmem:[%s729 + $0x28] sm:$0xf]
      %v741 = vld [vmem:[%s729 + $0x2c] sm:$0xf]
      %v742 = vld [vmem:[%s729 + $0x30] sm:$0xf]
      %v743 = vld [vmem:[%s729 + $0x34] sm:$0xf]
      %v744 = vld [vmem:[%s729 + $0x38] sm:$0xf]
      %v745 = vld [vmem:[%s729 + $0x3c] sm:$0xf]
      %v756 = vunpack.c.l.b16 %v719
      %v757 = vunpack.c.l.b16 %v720
      %v758 = vunpack.c.l.b16 %v721
      %v759 = vunpack.c.l.b16 %v722
      %v760 = vunpack.c.l.b16 %v723
      %v761 = vunpack.c.l.b16 %v724
      %v762 = vunpack.c.l.b16 %v725
      %v763 = vunpack.c.l.b16 %v726
      %v764 = vunpack.c.l.b16 %v727
      %v765 = vunpack.c.l.b16 %v728
      %v766 = vpack.c.b16 %v757, %v756
      %v767 = vpack.c.b16 %v759, %v758
      %v768 = vpack.c.b16 %v761, %v760
      %v769 = vpack.c.b16 %v763, %v762
      %v770 = vpack.c.b16 %v765, %v764
      %v772 = vshrl.u32 %v766, 16
      %v774 = vshll.u32 %v766, 16
      %v776 = vrot.slane %v774, 1
      %v777 = vor.u32 %v772, %v776
      %v779 = vshll.u32 %v767, 16
      %v781 = vrot.slane %v779, 1
      %v782 = vsel %vm527, %v777, %v781
      %v783 = vshrl.u32 %v767, 16
      %v785 = vor.u32 %v783, %v781
      %v787 = vshll.u32 %v768, 16
      %v789 = vrot.slane %v787, 1
      %v790 = vsel %vm527, %v785, %v789
      %v791 = vshrl.u32 %v768, 16
      %v793 = vor.u32 %v791, %v789
      %v795 = vshll.u32 %v769, 16
      %v797 = vrot.slane %v795, 1
      %v798 = vsel %vm527, %v793, %v797
      %v799 = vshrl.u32 %v769, 16
      %v801 = vor.u32 %v799, %v797
      %v803 = vshll.u32 %v770, 16
      %v805 = vrot.slane %v803, 1
      %v806 = vsel %vm527, %v801, %v805
      %v807 = vshrl.u32 %v770, 16
      %v809 = vor.u32 %v807, %v805
      %v831 = vunpack.c.l.b16 %v730
      %v832 = vunpack.c.l.b16 %v731
      %v833 = vunpack.c.l.b16 %v732
      %v834 = vunpack.c.l.b16 %v733
      %v835 = vunpack.c.l.b16 %v734
      %v836 = vunpack.c.l.b16 %v735
      %v837 = vunpack.c.l.b16 %v736
      %v838 = vunpack.c.l.b16 %v737
      %v839 = vunpack.c.l.b16 %v738
      %v840 = vunpack.c.l.b16 %v739
      %v841 = vunpack.c.l.b16 %v740
      %v842 = vunpack.c.l.b16 %v741
      %v843 = vunpack.c.l.b16 %v742
      %v844 = vunpack.c.l.b16 %v743
      %v845 = vunpack.c.l.b16 %v744
      %v846 = vunpack.c.l.b16 %v745
      %v847 = vpack.c.b16 %v832, %v831
      %v848 = vpack.c.b16 %v834, %v833
      %v849 = vpack.c.b16 %v836, %v835
      %v850 = vpack.c.b16 %v838, %v837
      %v851 = vpack.c.b16 %v840, %v839
      %v852 = vpack.c.b16 %v842, %v841
      %v853 = vpack.c.b16 %v844, %v843
      %v854 = vpack.c.b16 %v846, %v845
      %863 = vmatprep.subr.bf16.mxu0 0
      %864 = vmatpush1.bf16.msra.mxu0 %v847
      %865 = vmatprep.subr.bf16.mxu0 0
      %866 = vmatpush1.bf16.msra.mxu0 %v848
      %867 = vmatprep.subr.bf16.mxu0 0
      %868 = vmatpush1.bf16.msra.mxu0 %v849
      %869 = vmatprep.subr.bf16.mxu0 0
      %870 = vmatpush1.bf16.msra.mxu0 %v850
      %871 = vmatprep.subr.bf16.mxu0 0
      %872 = vmatpush1.bf16.msra.mxu0 %v851
      %873 = vmatprep.subr.bf16.mxu0 0
      %874 = vmatpush1.bf16.msra.mxu0 %v852
      %875 = vmatprep.subr.bf16.mxu0 0
      %876 = vmatpush1.bf16.msra.mxu0 %v853
      %877 = vmatprep.subr.bf16.mxu0 0
      %878 = vmatpush1.bf16.msra.mxu0 %v854
      %879 = vmatprep.subr.bf16.mxu0 0
      %880 = vmatpush1.bf16.msra.mxu0 0
      %881 = vmatprep.subr.bf16.mxu0 0
      %882 = vmatpush1.bf16.msra.mxu0 0
      %883 = vmatprep.subr.bf16.mxu0 0
      %884 = vmatpush1.bf16.msra.mxu0 0
      %885 = vmatprep.subr.bf16.mxu0 0
      %886 = vmatpush1.bf16.msra.mxu0 0
      %887 = vmatprep.subr.bf16.mxu0 0
      %888 = vmatpush1.bf16.msra.mxu0 0
      %889 = vmatprep.subr.bf16.mxu0 0
      %890 = vmatpush1.bf16.msra.mxu0 0
      %891 = vmatprep.subr.bf16.mxu0 0
      %892 = vmatpush1.bf16.msra.mxu0 0
      %893 = vmatprep.subr.bf16.mxu0 0
      %894 = vmatpush1.bf16.msra.mxu0 0
      %895 = vmatprep.mubr.bf16.mxu0 0
      %896 = vmatmul.mubr.bf16.gmra.mrb[0].mxu0 %v782
      %v897 = vpop.f32.mrb[0].mxu0
      %v898 = vadd.f32 0.0, %v897
      %v899 = vpop.f32.mrb[0].mxu0
      %v900 = vpop.f32.mrb[0].mxu0
      %v901 = vadd.f32 0.0, %v900
      %v902 = vpop.f32.mrb[0].mxu0
      %903 = vmatprep.mubr.bf16.mxu0 0
      %904 = vmatmul.mubr.bf16.gmra.mrb[0].mxu0 %v790
      %v905 = vpop.f32.mrb[0].mxu0
      %v906 = vadd.f32 0.0, %v905
      %v907 = vpop.f32.mrb[0].mxu0
      %v908 = vpop.f32.mrb[0].mxu0
      %v909 = vadd.f32 0.0, %v908
      %v910 = vpop.f32.mrb[0].mxu0
      %911 = vmatprep.mubr.bf16.mxu0 0
      %912 = vmatmul.mubr.bf16.gmra.mrb[0].mxu0 %v798
      %v913 = vpop.f32.mrb[0].mxu0
      %v914 = vadd.f32 0.0, %v913
      %v915 = vpop.f32.mrb[0].mxu0
      %v916 = vpop.f32.mrb[0].mxu0
      %v917 = vadd.f32 0.0, %v916
      %v918 = vpop.f32.mrb[0].mxu0
      %919 = vmatprep.mubr.bf16.mxu0 0
      %920 = vmatmul.mubr.bf16.gmra.mrb[0].mxu0 %v806
      %v921 = vpop.f32.mrb[0].mxu0
      %v922 = vadd.f32 0.0, %v921
      %v923 = vpop.f32.mrb[0].mxu0
      %v924 = vpop.f32.mrb[0].mxu0
      %v925 = vadd.f32 0.0, %v924
      %v926 = vpop.f32.mrb[0].mxu0
      %927 = vmatprep.mubr.bf16.mxu0 0
      %928 = vmatmul.mubr.bf16.gmra.mrb[0].mxu0 %v809
      %v929 = vpop.f32.mrb[0].mxu0
      %v930 = vadd.f32 0.0, %v929
      %v931 = vpop.f32.mrb[0].mxu0
      %v932 = vpop.f32.mrb[0].mxu0
      %v933 = vpop.f32.mrb[0].mxu0
      %934 = vdwg.mxu0
      %v935 = vadd.f32 %v710, %v898
      %v936 = vadd.f32 %v711, %v901
      %v937 = vadd.f32 %v712, %v906
      %v938 = vadd.f32 %v713, %v909
      %v939 = vadd.f32 %v714, %v914
      %v940 = vadd.f32 %v715, %v917
      %v941 = vadd.f32 %v716, %v922
      %v942 = vadd.f32 %v717, %v925
      %v943 = vadd.f32 %v718, %v930
      %944 = vst [vmem:[#allocation2] sm:$0xff] %v935
      %945 = vst [vmem:[#allocation2 + $0x8] sm:$0xff] %v936
      %946 = vst [vmem:[#allocation2 + $0x10] sm:$0xff] %v937
      %947 = vst [vmem:[#allocation2 + $0x18] sm:$0xff] %v938
      %948 = vst [vmem:[#allocation2 + $0x20] sm:$0xff] %v939
      %949 = vst [vmem:[#allocation2 + $0x28] sm:$0xff] %v940
      %950 = vst [vmem:[#allocation2 + $0x30] sm:$0xff] %v941
      %951 = vst [vmem:[#allocation2 + $0x38] sm:$0xff] %v942
      %952 = vst [vmem:[#allocation2 + $0x40] sm:$0xff] %v943
      %v953 = vld [vmem:[#allocation2] sm:$0xff]
      %v954 = vld [vmem:[#allocation2 + $0x8] sm:$0xff]
      %v955 = vld [vmem:[#allocation2 + $0x10] sm:$0xff]
      %v956 = vld [vmem:[#allocation2 + $0x18] sm:$0xff]
      %v957 = vld [vmem:[#allocation2 + $0x20] sm:$0xff]
      %v958 = vld [vmem:[#allocation2 + $0x28] sm:$0xff]
      %v959 = vld [vmem:[#allocation2 + $0x30] sm:$0xff]
      %v960 = vld [vmem:[#allocation2 + $0x38] sm:$0xff]
      %v961 = vld [vmem:[#allocation2 + $0x40] sm:$0xff]
      %v962 = vld [vmem:[%s273 + $0x50] sm:$0xe]
      %v963 = vld [vmem:[%s273 + $0x54] sm:$0xf]
      %v964 = vld [vmem:[%s273 + $0x58] sm:$0xf]
      %v965 = vld [vmem:[%s273 + $0x5c] sm:$0xf]
      %v966 = vld [vmem:[%s273 + $0x60] sm:$0xf]
      %v967 = vld [vmem:[%s273 + $0x64] sm:$0xf]
      %v968 = vld [vmem:[%s273 + $0x68] sm:$0xf]
      %v969 = vld [vmem:[%s273 + $0x6c] sm:$0xf]
      %v970 = vld [vmem:[%s273 + $0x70] sm:$0xf]
      %v971 = vld [vmem:[%s273 + $0x74] sm:$0x1]
      %s972 = scalar_lea.vmem %s1, 192
      %v973 = vld [vmem:[%s972] sm:$0xf]
      %v974 = vld [vmem:[%s972 + $0x4] sm:$0xf]
      %v975 = vld [vmem:[%s972 + $0x8] sm:$0xf]
      %v976 = vld [vmem:[%s972 + $0xc] sm:$0xf]
      %v977 = vld [vmem:[%s972 + $0x10] sm:$0xf]
      %v978 = vld [vmem:[%s972 + $0x14] sm:$0xf]
      %v979 = vld [vmem:[%s972 + $0x18] sm:$0xf]
      %v980 = vld [vmem:[%s972 + $0x1c] sm:$0xf]
      %v981 = vld [vmem:[%s972 + $0x20] sm:$0xf]
      %v982 = vld [vmem:[%s972 + $0x24] sm:$0xf]
      %v983 = vld [vmem:[%s972 + $0x28] sm:$0xf]
      %v984 = vld [vmem:[%s972 + $0x2c] sm:$0xf]
      %v985 = vld [vmem:[%s972 + $0x30] sm:$0xf]
      %v986 = vld [vmem:[%s972 + $0x34] sm:$0xf]
      %v987 = vld [vmem:[%s972 + $0x38] sm:$0xf]
      %v988 = vld [vmem:[%s972 + $0x3c] sm:$0xf]
      %v999 = vunpack.c.l.b16 %v962
      %v1000 = vunpack.c.l.b16 %v963
      %v1001 = vunpack.c.l.b16 %v964
      %v1002 = vunpack.c.l.b16 %v965
      %v1003 = vunpack.c.l.b16 %v966
      %v1004 = vunpack.c.l.b16 %v967
      %v1005 = vunpack.c.l.b16 %v968
      %v1006 = vunpack.c.l.b16 %v969
      %v1007 = vunpack.c.l.b16 %v970
      %v1008 = vunpack.c.l.b16 %v971
      %v1009 = vpack.c.b16 %v1000, %v999
      %v1010 = vpack.c.b16 %v1002, %v1001
      %v1011 = vpack.c.b16 %v1004, %v1003
      %v1012 = vpack.c.b16 %v1006, %v1005
      %v1013 = vpack.c.b16 %v1008, %v1007
      %vm1014 = vcmask 1046528
      %v1015 = vrot.slane %v1009, 1
      %v1016 = vrot.slane %v1010, 1
      %v1017 = vsel %vm1014, %v1015, %v1016
      %v1018 = vrot.slane %v1011, 1
      %v1019 = vsel %vm1014, %v1016, %v1018
      %v1020 = vrot.slane %v1012, 1
      %v1021 = vsel %vm1014, %v1018, %v1020
      %v1022 = vrot.slane %v1013, 1
      %v1023 = vsel %vm1014, %v1020, %v1022
      %v1045 = vunpack.c.l.b16 %v973
      %v1046 = vunpack.c.l.b16 %v974
      %v1047 = vunpack.c.l.b16 %v975
      %v1048 = vunpack.c.l.b16 %v976
      %v1049 = vunpack.c.l.b16 %v977
      %v1050 = vunpack.c.l.b16 %v978
      %v1051 = vunpack.c.l.b16 %v979
      %v1052 = vunpack.c.l.b16 %v980
      %v1053 = vunpack.c.l.b16 %v981
      %v1054 = vunpack.c.l.b16 %v982
      %v1055 = vunpack.c.l.b16 %v983
      %v1056 = vunpack.c.l.b16 %v984
      %v1057 = vunpack.c.l.b16 %v985
      %v1058 = vunpack.c.l.b16 %v986
      %v1059 = vunpack.c.l.b16 %v987
      %v1060 = vunpack.c.l.b16 %v988
      %v1061 = vpack.c.b16 %v1046, %v1045
      %v1062 = vpack.c.b16 %v1048, %v1047
      %v1063 = vpack.c.b16 %v1050, %v1049
      %v1064 = vpack.c.b16 %v1052, %v1051
      %v1065 = vpack.c.b16 %v1054, %v1053
      %v1066 = vpack.c.b16 %v1056, %v1055
      %v1067 = vpack.c.b16 %v1058, %v1057
      %v1068 = vpack.c.b16 %v1060, %v1059
      %1077 = vmatprep.subr.bf16.mxu0 0
      %1078 = vmatpush1.bf16.msra.mxu0 %v1061
      %1079 = vmatprep.subr.bf16.mxu0 0
      %1080 = vmatpush1.bf16.msra.mxu0 %v1062
      %1081 = vmatprep.subr.bf16.mxu0 0
      %1082 = vmatpush1.bf16.msra.mxu0 %v1063
      %1083 = vmatprep.subr.bf16.mxu0 0
      %1084 = vmatpush1.bf16.msra.mxu0 %v1064
      %1085 = vmatprep.subr.bf16.mxu0 0
      %1086 = vmatpush1.bf16.msra.mxu0 %v1065
      %1087 = vmatprep.subr.bf16.mxu0 0
      %1088 = vmatpush1.bf16.msra.mxu0 %v1066
      %1089 = vmatprep.subr.bf16.mxu0 0
      %1090 = vmatpush1.bf16.msra.mxu0 %v1067
      %1091 = vmatprep.subr.bf16.mxu0 0
      %1092 = vmatpush1.bf16.msra.mxu0 %v1068
      %1093 = vmatprep.subr.bf16.mxu0 0
      %1094 = vmatpush1.bf16.msra.mxu0 0
      %1095 = vmatprep.subr.bf16.mxu0 0
      %1096 = vmatpush1.bf16.msra.mxu0 0
      %1097 = vmatprep.subr.bf16.mxu0 0
      %1098 = vmatpush1.bf16.msra.mxu0 0
      %1099 = vmatprep.subr.bf16.mxu0 0
      %1100 = vmatpush1.bf16.msra.mxu0 0
      %1101 = vmatprep.subr.bf16.mxu0 0
      %1102 = vmatpush1.bf16.msra.mxu0 0
      %1103 = vmatprep.subr.bf16.mxu0 0
      %1104 = vmatpush1.bf16.msra.mxu0 0
      %1105 = vmatprep.subr.bf16.mxu0 0
      %1106 = vmatpush1.bf16.msra.mxu0 0
      %1107 = vmatprep.subr.bf16.mxu0 0
      %1108 = vmatpush1.bf16.msra.mxu0 0
      %1109 = vmatprep.mubr.bf16.mxu0 0
      %1110 = vmatmul.mubr.bf16.gmra.mrb[0].mxu0 %v1017
      %v1111 = vpop.f32.mrb[0].mxu0
      %v1112 = vadd.f32 0.0, %v1111
      %v1113 = vpop.f32.mrb[0].mxu0
      %v1114 = vpop.f32.mrb[0].mxu0
      %v1115 = vadd.f32 0.0, %v1114
      %v1116 = vpop.f32.mrb[0].mxu0
      %1117 = vmatprep.mubr.bf16.mxu0 0
      %1118 = vmatmul.mubr.bf16.gmra.mrb[0].mxu0 %v1019
      %v1119 = vpop.f32.mrb[0].mxu0
      %v1120 = vadd.f32 0.0, %v1119
      %v1121 = vpop.f32.mrb[0].mxu0
      %v1122 = vpop.f32.mrb[0].mxu0
      %v1123 = vadd.f32 0.0, %v1122
      %v1124 = vpop.f32.mrb[0].mxu0
      %1125 = vmatprep.mubr.bf16.mxu0 0
      %1126 = vmatmul.mubr.bf16.gmra.mrb[0].mxu0 %v1021
      %v1127 = vpop.f32.mrb[0].mxu0
      %v1128 = vadd.f32 0.0, %v1127
      %v1129 = vpop.f32.mrb[0].mxu0
      %v1130 = vpop.f32.mrb[0].mxu0
      %v1131 = vadd.f32 0.0, %v1130
      %v1132 = vpop.f32.mrb[0].mxu0
      %1133 = vmatprep.mubr.bf16.mxu0 0
      %1134 = vmatmul.mubr.bf16.gmra.mrb[0].mxu0 %v1023
      %v1135 = vpop.f32.mrb[0].mxu0
      %v1136 = vadd.f32 0.0, %v1135
      %v1137 = vpop.f32.mrb[0].mxu0
      %v1138 = vpop.f32.mrb[0].mxu0
      %v1139 = vadd.f32 0.0, %v1138
      %v1140 = vpop.f32.mrb[0].mxu0
      %1141 = vmatprep.mubr.bf16.mxu0 0
      %1142 = vmatmul.mubr.bf16.gmra.mrb[0].mxu0 %v1022
      %v1143 = vpop.f32.mrb[0].mxu0
      %v1144 = vadd.f32 0.0, %v1143
      %v1145 = vpop.f32.mrb[0].mxu0
      %v1146 = vpop.f32.mrb[0].mxu0
      %v1147 = vpop.f32.mrb[0].mxu0
      %1148 = vdwg.mxu0
      %v1149 = vadd.f32 %v953, %v1112
      %v1150 = vadd.f32 %v954, %v1115
      %v1151 = vadd.f32 %v955, %v1120
      %v1152 = vadd.f32 %v956, %v1123
      %v1153 = vadd.f32 %v957, %v1128
      %v1154 = vadd.f32 %v958, %v1131
      %v1155 = vadd.f32 %v959, %v1136
      %v1156 = vadd.f32 %v960, %v1139
      %v1157 = vadd.f32 %v961, %v1144
      %1158 = vst [vmem:[#allocation2] sm:$0xff] %v1149
      %1159 = vst [vmem:[#allocation2 + $0x8] sm:$0xff] %v1150
      %1160 = vst [vmem:[#allocation2 + $0x10] sm:$0xff] %v1151
      %1161 = vst [vmem:[#allocation2 + $0x18] sm:$0xff] %v1152
      %1162 = vst [vmem:[#allocation2 + $0x20] sm:$0xff] %v1153
      %1163 = vst [vmem:[#allocation2 + $0x28] sm:$0xff] %v1154
      %1164 = vst [vmem:[#allocation2 + $0x30] sm:$0xff] %v1155
      %1165 = vst [vmem:[#allocation2 + $0x38] sm:$0xff] %v1156
      %1166 = vst [vmem:[#allocation2 + $0x40] sm:$0xff] %v1157
      %v1167 = vld [vmem:[#allocation2] sm:$0xff]
      %v1168 = vld [vmem:[#allocation2 + $0x8] sm:$0xff]
      %v1169 = vld [vmem:[#allocation2 + $0x10] sm:$0xff]
      %v1170 = vld [vmem:[#allocation2 + $0x18] sm:$0xff]
      %v1171 = vld [vmem:[#allocation2 + $0x20] sm:$0xff]
      %v1172 = vld [vmem:[#allocation2 + $0x28] sm:$0xff]
      %v1173 = vld [vmem:[#allocation2 + $0x30] sm:$0xff]
      %v1174 = vld [vmem:[#allocation2 + $0x38] sm:$0xff]
      %v1175 = vld [vmem:[#allocation2 + $0x40] sm:$0xff]
      %v1176 = vld [vmem:[%s273 + $0x78] sm:$0xe]
      %v1177 = vld [vmem:[%s273 + $0x7c] sm:$0xf]
      %v1178 = vld [vmem:[%s273 + $0x80] sm:$0xf]
      %v1179 = vld [vmem:[%s273 + $0x84] sm:$0xf]
      %v1180 = vld [vmem:[%s273 + $0x88] sm:$0xf]
      %v1181 = vld [vmem:[%s273 + $0x8c] sm:$0xf]
      %v1182 = vld [vmem:[%s273 + $0x90] sm:$0xf]
      %v1183 = vld [vmem:[%s273 + $0x94] sm:$0xf]
      %v1184 = vld [vmem:[%s273 + $0x98] sm:$0xf]
      %v1185 = vld [vmem:[%s273 + $0x9c] sm:$0x3]
      %s1186 = scalar_lea.vmem %s1, 256
      %v1187 = vld [vmem:[%s1186] sm:$0xf]
      %v1188 = vld [vmem:[%s1186 + $0x4] sm:$0xf]
      %v1189 = vld [vmem:[%s1186 + $0x8] sm:$0xf]
      %v1190 = vld [vmem:[%s1186 + $0xc] sm:$0xf]
      %v1191 = vld [vmem:[%s1186 + $0x10] sm:$0xf]
      %v1192 = vld [vmem:[%s1186 + $0x14] sm:$0xf]
      %v1193 = vld [vmem:[%s1186 + $0x18] sm:$0xf]
      %v1194 = vld [vmem:[%s1186 + $0x1c] sm:$0xf]
      %v1195 = vld [vmem:[%s1186 + $0x20] sm:$0xf]
      %v1196 = vld [vmem:[%s1186 + $0x24] sm:$0xf]
      %v1197 = vld [vmem:[%s1186 + $0x28] sm:$0xf]
      %v1198 = vld [vmem:[%s1186 + $0x2c] sm:$0xf]
      %v1199 = vld [vmem:[%s1186 + $0x30] sm:$0xf]
      %v1200 = vld [vmem:[%s1186 + $0x34] sm:$0xf]
      %v1201 = vld [vmem:[%s1186 + $0x38] sm:$0xf]
      %v1202 = vld [vmem:[%s1186 + $0x3c] sm:$0xf]
      %v1213 = vunpack.c.l.b16 %v1176
      %v1214 = vunpack.c.l.b16 %v1177
      %v1215 = vunpack.c.l.b16 %v1178
      %v1216 = vunpack.c.l.b16 %v1179
      %v1217 = vunpack.c.l.b16 %v1180
      %v1218 = vunpack.c.l.b16 %v1181
      %v1219 = vunpack.c.l.b16 %v1182
      %v1220 = vunpack.c.l.b16 %v1183
      %v1221 = vunpack.c.l.b16 %v1184
      %v1222 = vunpack.c.l.b16 %v1185
      %v1223 = vpack.c.b16 %v1214, %v1213
      %v1224 = vpack.c.b16 %v1216, %v1215
      %v1225 = vpack.c.b16 %v1218, %v1217
      %v1226 = vpack.c.b16 %v1220, %v1219
      %v1227 = vpack.c.b16 %v1222, %v1221
      %vm1228 = vsmask.f32 6400
      %v1230 = vshrl.u32 %v1223, 16
      %v1232 = vrot.slane %v1230, 1
      %v1233 = vshll.u32 %v1223, 16
      %v1235 = vrot.slane %v1233, 2
      %v1236 = vor.u32 %v1232, %v1235
      %v1238 = vshrl.u32 %v1224, 16
      %v1240 = vrot.slane %v1238, 1
      %v1241 = vshll.u32 %v1224, 16
      %v1243 = vrot.slane %v1241, 2
      %v1244 = vor.u32 %v1240, %v1243
      %v1245 = vsel %vm1228, %v1236, %v1244
      %v1247 = vshrl.u32 %v1225, 16
      %v1249 = vrot.slane %v1247, 1
      %v1250 = vshll.u32 %v1225, 16
      %v1252 = vrot.slane %v1250, 2
      %v1253 = vor.u32 %v1249, %v1252
      %v1254 = vsel %vm1228, %v1244, %v1253
      %v1256 = vshrl.u32 %v1226, 16
      %v1258 = vrot.slane %v1256, 1
      %v1259 = vshll.u32 %v1226, 16
      %v1261 = vrot.slane %v1259, 2
      %v1262 = vor.u32 %v1258, %v1261
      %v1263 = vsel %vm1228, %v1253, %v1262
      %v1265 = vshrl.u32 %v1227, 16
      %v1267 = vrot.slane %v1265, 1
      %v1268 = vshll.u32 %v1227, 16
      %v1270 = vrot.slane %v1268, 2
      %v1271 = vor.u32 %v1267, %v1270
      %v1272 = vsel %vm1228, %v1262, %v1271
      %v1294 = vunpack.c.l.b16 %v1187
      %v1295 = vunpack.c.l.b16 %v1188
      %v1296 = vunpack.c.l.b16 %v1189
      %v1297 = vunpack.c.l.b16 %v1190
      %v1298 = vunpack.c.l.b16 %v1191
      %v1299 = vunpack.c.l.b16 %v1192
      %v1300 = vunpack.c.l.b16 %v1193
      %v1301 = vunpack.c.l.b16 %v1194
      %v1302 = vunpack.c.l.b16 %v1195
      %v1303 = vunpack.c.l.b16 %v1196
      %v1304 = vunpack.c.l.b16 %v1197
      %v1305 = vunpack.c.l.b16 %v1198
      %v1306 = vunpack.c.l.b16 %v1199
      %v1307 = vunpack.c.l.b16 %v1200
      %v1308 = vunpack.c.l.b16 %v1201
      %v1309 = vunpack.c.l.b16 %v1202
      %v1310 = vpack.c.b16 %v1295, %v1294
      %v1311 = vpack.c.b16 %v1297, %v1296
      %v1312 = vpack.c.b16 %v1299, %v1298
      %v1313 = vpack.c.b16 %v1301, %v1300
      %v1314 = vpack.c.b16 %v1303, %v1302
      %v1315 = vpack.c.b16 %v1305, %v1304
      %v1316 = vpack.c.b16 %v1307, %v1306
      %v1317 = vpack.c.b16 %v1309, %v1308
      %1326 = vmatprep.subr.bf16.mxu0 0
      %1327 = vmatpush1.bf16.msra.mxu0 %v1310
      %1328 = vmatprep.subr.bf16.mxu0 0
      %1329 = vmatpush1.bf16.msra.mxu0 %v1311
      %1330 = vmatprep.subr.bf16.mxu0 0
      %1331 = vmatpush1.bf16.msra.mxu0 %v1312
      %1332 = vmatprep.subr.bf16.mxu0 0
      %1333 = vmatpush1.bf16.msra.mxu0 %v1313
      %1334 = vmatprep.subr.bf16.mxu0 0
      %1335 = vmatpush1.bf16.msra.mxu0 %v1314
      %1336 = vmatprep.subr.bf16.mxu0 0
      %1337 = vmatpush1.bf16.msra.mxu0 %v1315
      %1338 = vmatprep.subr.bf16.mxu0 0
      %1339 = vmatpush1.bf16.msra.mxu0 %v1316
      %1340 = vmatprep.subr.bf16.mxu0 0
      %1341 = vmatpush1.bf16.msra.mxu0 %v1317
      %1342 = vmatprep.subr.bf16.mxu0 0
      %1343 = vmatpush1.bf16.msra.mxu0 0
      %1344 = vmatprep.subr.bf16.mxu0 0
      %1345 = vmatpush1.bf16.msra.mxu0 0
      %1346 = vmatprep.subr.bf16.mxu0 0
      %1347 = vmatpush1.bf16.msra.mxu0 0
      %1348 = vmatprep.subr.bf16.mxu0 0
      %1349 = vmatpush1.bf16.msra.mxu0 0
      %1350 = vmatprep.subr.bf16.mxu0 0
      %1351 = vmatpush1.bf16.msra.mxu0 0
      %1352 = vmatprep.subr.bf16.mxu0 0
      %1353 = vmatpush1.bf16.msra.mxu0 0
      %1354 = vmatprep.subr.bf16.mxu0 0
      %1355 = vmatpush1.bf16.msra.mxu0 0
      %1356 = vmatprep.subr.bf16.mxu0 0
      %1357 = vmatpush1.bf16.msra.mxu0 0
      %1358 = vmatprep.mubr.bf16.mxu0 0
      %1359 = vmatmul.mubr.bf16.gmra.mrb[0].mxu0 %v1245
      %v1360 = vpop.f32.mrb[0].mxu0
      %v1361 = vadd.f32 0.0, %v1360
      %v1362 = vpop.f32.mrb[0].mxu0
      %v1363 = vpop.f32.mrb[0].mxu0
      %v1364 = vadd.f32 0.0, %v1363
      %v1365 = vpop.f32.mrb[0].mxu0
      %1366 = vmatprep.mubr.bf16.mxu0 0
      %1367 = vmatmul.mubr.bf16.gmra.mrb[0].mxu0 %v1254
      %v1368 = vpop.f32.mrb[0].mxu0
      %v1369 = vadd.f32 0.0, %v1368
      %v1370 = vpop.f32.mrb[0].mxu0
      %v1371 = vpop.f32.mrb[0].mxu0
      %v1372 = vadd.f32 0.0, %v1371
      %v1373 = vpop.f32.mrb[0].mxu0
      %1374 = vmatprep.mubr.bf16.mxu0 0
      %1375 = vmatmul.mubr.bf16.gmra.mrb[0].mxu0 %v1263
      %v1376 = vpop.f32.mrb[0].mxu0
      %v1377 = vadd.f32 0.0, %v1376
      %v1378 = vpop.f32.mrb[0].mxu0
      %v1379 = vpop.f32.mrb[0].mxu0
      %v1380 = vadd.f32 0.0, %v1379
      %v1381 = vpop.f32.mrb[0].mxu0
      %1382 = vmatprep.mubr.bf16.mxu0 0
      %1383 = vmatmul.mubr.bf16.gmra.mrb[0].mxu0 %v1272
      %v1384 = vpop.f32.mrb[0].mxu0
      %v1385 = vadd.f32 0.0, %v1384
      %v1386 = vpop.f32.mrb[0].mxu0
      %v1387 = vpop.f32.mrb[0].mxu0
      %v1388 = vadd.f32 0.0, %v1387
      %v1389 = vpop.f32.mrb[0].mxu0
      %1390 = vmatprep.mubr.bf16.mxu0 0
      %1391 = vmatmul.mubr.bf16.gmra.mrb[0].mxu0 %v1271
      %v1392 = vpop.f32.mrb[0].mxu0
      %v1393 = vadd.f32 0.0, %v1392
      %v1394 = vpop.f32.mrb[0].mxu0
      %v1395 = vpop.f32.mrb[0].mxu0
      %v1396 = vpop.f32.mrb[0].mxu0
      %1397 = vdwg.mxu0
      %v1398 = vadd.f32 %v1167, %v1361
      %v1399 = vadd.f32 %v1168, %v1364
      %v1400 = vadd.f32 %v1169, %v1369
      %v1401 = vadd.f32 %v1170, %v1372
      %v1402 = vadd.f32 %v1171, %v1377
      %v1403 = vadd.f32 %v1172, %v1380
      %v1404 = vadd.f32 %v1173, %v1385
      %v1405 = vadd.f32 %v1174, %v1388
      %v1406 = vadd.f32 %v1175, %v1393
      %1407 = vst [vmem:[#allocation2] sm:$0xff] %v1398
      %1408 = vst [vmem:[#allocation2 + $0x8] sm:$0xff] %v1399
      %1409 = vst [vmem:[#allocation2 + $0x10] sm:$0xff] %v1400
      %1410 = vst [vmem:[#allocation2 + $0x18] sm:$0xff] %v1401
      %1411 = vst [vmem:[#allocation2 + $0x20] sm:$0xff] %v1402
      %1412 = vst [vmem:[#allocation2 + $0x28] sm:$0xff] %v1403
      %1413 = vst [vmem:[#allocation2 + $0x30] sm:$0xff] %v1404
      %1414 = vst [vmem:[#allocation2 + $0x38] sm:$0xff] %v1405
      %1415 = vst [vmem:[#allocation2 + $0x40] sm:$0xff] %v1406
      %v1416 = vld [vmem:[#allocation2] sm:$0xff]
      %v1417 = vld [vmem:[#allocation2 + $0x8] sm:$0xff]
      %v1418 = vld [vmem:[#allocation2 + $0x10] sm:$0xff]
      %v1419 = vld [vmem:[#allocation2 + $0x18] sm:$0xff]
      %v1420 = vld [vmem:[#allocation2 + $0x20] sm:$0xff]
      %v1421 = vld [vmem:[#allocation2 + $0x28] sm:$0xff]
      %v1422 = vld [vmem:[#allocation2 + $0x30] sm:$0xff]
      %v1423 = vld [vmem:[#allocation2 + $0x38] sm:$0xff]
      %v1424 = vld [vmem:[#allocation2 + $0x40] sm:$0xff]
      %v1425 = vld [vmem:[%s273 + $0x50] sm:$0xe]
      %v1426 = vld [vmem:[%s273 + $0x54] sm:$0xf]
      %v1427 = vld [vmem:[%s273 + $0x58] sm:$0xf]
      %v1428 = vld [vmem:[%s273 + $0x5c] sm:$0xf]
      %v1429 = vld [vmem:[%s273 + $0x60] sm:$0xf]
      %v1430 = vld [vmem:[%s273 + $0x64] sm:$0xf]
      %v1431 = vld [vmem:[%s273 + $0x68] sm:$0xf]
      %v1432 = vld [vmem:[%s273 + $0x6c] sm:$0xf]
      %v1433 = vld [vmem:[%s273 + $0x70] sm:$0xf]
      %v1434 = vld [vmem:[%s273 + $0x74] sm:$0x3]
      %s1435 = scalar_lea.vmem %s1, 320
      %v1436 = vld [vmem:[%s1435] sm:$0xf]
      %v1437 = vld [vmem:[%s1435 + $0x4] sm:$0xf]
      %v1438 = vld [vmem:[%s1435 + $0x8] sm:$0xf]
      %v1439 = vld [vmem:[%s1435 + $0xc] sm:$0xf]
      %v1440 = vld [vmem:[%s1435 + $0x10] sm:$0xf]
      %v1441 = vld [vmem:[%s1435 + $0x14] sm:$0xf]
      %v1442 = vld [vmem:[%s1435 + $0x18] sm:$0xf]
      %v1443 = vld [vmem:[%s1435 + $0x1c] sm:$0xf]
      %v1444 = vld [vmem:[%s1435 + $0x20] sm:$0xf]
      %v1445 = vld [vmem:[%s1435 + $0x24] sm:$0xf]
      %v1446 = vld [vmem:[%s1435 + $0x28] sm:$0xf]
      %v1447 = vld [vmem:[%s1435 + $0x2c] sm:$0xf]
      %v1448 = vld [vmem:[%s1435 + $0x30] sm:$0xf]
      %v1449 = vld [vmem:[%s1435 + $0x34] sm:$0xf]
      %v1450 = vld [vmem:[%s1435 + $0x38] sm:$0xf]
      %v1451 = vld [vmem:[%s1435 + $0x3c] sm:$0xf]
      %v1462 = vunpack.c.l.b16 %v1425
      %v1463 = vunpack.c.l.b16 %v1426
      %v1464 = vunpack.c.l.b16 %v1427
      %v1465 = vunpack.c.l.b16 %v1428
      %v1466 = vunpack.c.l.b16 %v1429
      %v1467 = vunpack.c.l.b16 %v1430
      %v1468 = vunpack.c.l.b16 %v1431
      %v1469 = vunpack.c.l.b16 %v1432
      %v1470 = vunpack.c.l.b16 %v1433
      %v1471 = vunpack.c.l.b16 %v1434
      %v1472 = vpack.c.b16 %v1463, %v1462
      %v1473 = vpack.c.b16 %v1465, %v1464
      %v1474 = vpack.c.b16 %v1467, %v1466
      %v1475 = vpack.c.b16 %v1469, %v1468
      %v1476 = vpack.c.b16 %v1471, %v1470
      %v1478 = vshrl.u32 %v1472, 16
      %v1480 = vrot.slane %v1478, 1
      %v1481 = vshll.u32 %v1472, 16
      %v1483 = vrot.slane %v1481, 2
      %v1484 = vor.u32 %v1480, %v1483
      %v1486 = vshrl.u32 %v1473, 16
      %v1488 = vrot.slane %v1486, 1
      %v1489 = vshll.u32 %v1473, 16
      %v1491 = vrot.slane %v1489, 2
      %v1492 = vor.u32 %v1488, %v1491
      %v1493 = vsel %vm1228, %v1484, %v1492
      %v1495 = vshrl.u32 %v1474, 16
      %v1497 = vrot.slane %v1495, 1
      %v1498 = vshll.u32 %v1474, 16
      %v1500 = vrot.slane %v1498, 2
      %v1501 = vor.u32 %v1497, %v1500
      %v1502 = vsel %vm1228, %v1492, %v1501
      %v1504 = vshrl.u32 %v1475, 16
      %v1506 = vrot.slane %v1504, 1
      %v1507 = vshll.u32 %v1475, 16
      %v1509 = vrot.slane %v1507, 2
      %v1510 = vor.u32 %v1506, %v1509
      %v1511 = vsel %vm1228, %v1501, %v1510
      %v1513 = vshrl.u32 %v1476, 16
      %v1515 = vrot.slane %v1513, 1
      %v1516 = vshll.u32 %v1476, 16
      %v1518 = vrot.slane %v1516, 2
      %v1519 = vor.u32 %v1515, %v1518
      %v1520 = vsel %vm1228, %v1510, %v1519
      %v1542 = vunpack.c.l.b16 %v1436
      %v1543 = vunpack.c.l.b16 %v1437
      %v1544 = vunpack.c.l.b16 %v1438
      %v1545 = vunpack.c.l.b16 %v1439
      %v1546 = vunpack.c.l.b16 %v1440
      %v1547 = vunpack.c.l.b16 %v1441
      %v1548 = vunpack.c.l.b16 %v1442
      %v1549 = vunpack.c.l.b16 %v1443
      %v1550 = vunpack.c.l.b16 %v1444
      %v1551 = vunpack.c.l.b16 %v1445
      %v1552 = vunpack.c.l.b16 %v1446
      %v1553 = vunpack.c.l.b16 %v1447
      %v1554 = vunpack.c.l.b16 %v1448
      %v1555 = vunpack.c.l.b16 %v1449
      %v1556 = vunpack.c.l.b16 %v1450
      %v1557 = vunpack.c.l.b16 %v1451
      %v1558 = vpack.c.b16 %v1543, %v1542
      %v1559 = vpack.c.b16 %v1545, %v1544
      %v1560 = vpack.c.b16 %v1547, %v1546
      %v1561 = vpack.c.b16 %v1549, %v1548
      %v1562 = vpack.c.b16 %v1551, %v1550
      %v1563 = vpack.c.b16 %v1553, %v1552
      %v1564 = vpack.c.b16 %v1555, %v1554
      %v1565 = vpack.c.b16 %v1557, %v1556
      %1574 = vmatprep.subr.bf16.mxu0 0
      %1575 = vmatpush1.bf16.msra.mxu0 %v1558
      %1576 = vmatprep.subr.bf16.mxu0 0
      %1577 = vmatpush1.bf16.msra.mxu0 %v1559
      %1578 = vmatprep.subr.bf16.mxu0 0
      %1579 = vmatpush1.bf16.msra.mxu0 %v1560
      %1580 = vmatprep.subr.bf16.mxu0 0
      %1581 = vmatpush1.bf16.msra.mxu0 %v1561
      %1582 = vmatprep.subr.bf16.mxu0 0
      %1583 = vmatpush1.bf16.msra.mxu0 %v1562
      %1584 = vmatprep.subr.bf16.mxu0 0
      %1585 = vmatpush1.bf16.msra.mxu0 %v1563
      %1586 = vmatprep.subr.bf16.mxu0 0
      %1587 = vmatpush1.bf16.msra.mxu0 %v1564
      %1588 = vmatprep.subr.bf16.mxu0 0
      %1589 = vmatpush1.bf16.msra.mxu0 %v1565
      %1590 = vmatprep.subr.bf16.mxu0 0
      %1591 = vmatpush1.bf16.msra.mxu0 0
      %1592 = vmatprep.subr.bf16.mxu0 0
      %1593 = vmatpush1.bf16.msra.mxu0 0
      %1594 = vmatprep.subr.bf16.mxu0 0
      %1595 = vmatpush1.bf16.msra.mxu0 0
      %1596 = vmatprep.subr.bf16.mxu0 0
      %1597 = vmatpush1.bf16.msra.mxu0 0
      %1598 = vmatprep.subr.bf16.mxu0 0
      %1599 = vmatpush1.bf16.msra.mxu0 0
      %1600 = vmatprep.subr.bf16.mxu0 0
      %1601 = vmatpush1.bf16.msra.mxu0 0
      %1602 = vmatprep.subr.bf16.mxu0 0
      %1603 = vmatpush1.bf16.msra.mxu0 0
      %1604 = vmatprep.subr.bf16.mxu0 0
      %1605 = vmatpush1.bf16.msra.mxu0 0
      %1606 = vmatprep.mubr.bf16.mxu0 0
      %1607 = vmatmul.mubr.bf16.gmra.mrb[0].mxu0 %v1493
      %v1608 = vpop.f32.mrb[0].mxu0
      %v1609 = vadd.f32 0.0, %v1608
      %v1610 = vpop.f32.mrb[0].mxu0
      %v1611 = vpop.f32.mrb[0].mxu0
      %v1612 = vadd.f32 0.0, %v1611
      %v1613 = vpop.f32.mrb[0].mxu0
      %1614 = vmatprep.mubr.bf16.mxu0 0
      %1615 = vmatmul.mubr.bf16.gmra.mrb[0].mxu0 %v1502
      %v1616 = vpop.f32.mrb[0].mxu0
      %v1617 = vadd.f32 0.0, %v1616
      %v1618 = vpop.f32.mrb[0].mxu0
      %v1619 = vpop.f32.mrb[0].mxu0
      %v1620 = vadd.f32 0.0, %v1619
      %v1621 = vpop.f32.mrb[0].mxu0
      %1622 = vmatprep.mubr.bf16.mxu0 0
      %1623 = vmatmul.mubr.bf16.gmra.mrb[0].mxu0 %v1511
      %v1624 = vpop.f32.mrb[0].mxu0
      %v1625 = vadd.f32 0.0, %v1624
      %v1626 = vpop.f32.mrb[0].mxu0
      %v1627 = vpop.f32.mrb[0].mxu0
      %v1628 = vadd.f32 0.0, %v1627
      %v1629 = vpop.f32.mrb[0].mxu0
      %1630 = vmatprep.mubr.bf16.mxu0 0
      %1631 = vmatmul.mubr.bf16.gmra.mrb[0].mxu0 %v1520
      %v1632 = vpop.f32.mrb[0].mxu0
      %v1633 = vadd.f32 0.0, %v1632
      %v1634 = vpop.f32.mrb[0].mxu0
      %v1635 = vpop.f32.mrb[0].mxu0
      %v1636 = vadd.f32 0.0, %v1635
      %v1637 = vpop.f32.mrb[0].mxu0
      %1638 = vmatprep.mubr.bf16.mxu0 0
      %1639 = vmatmul.mubr.bf16.gmra.mrb[0].mxu0 %v1519
      %v1640 = vpop.f32.mrb[0].mxu0
      %v1641 = vadd.f32 0.0, %v1640
      %v1642 = vpop.f32.mrb[0].mxu0
      %v1643 = vpop.f32.mrb[0].mxu0
      %v1644 = vpop.f32.mrb[0].mxu0
      %1645 = vdwg.mxu0
      %v1646 = vadd.f32 %v1416, %v1609
      %v1647 = vadd.f32 %v1417, %v1612
      %v1648 = vadd.f32 %v1418, %v1617
      %v1649 = vadd.f32 %v1419, %v1620
      %v1650 = vadd.f32 %v1420, %v1625
      %v1651 = vadd.f32 %v1421, %v1628
      %v1652 = vadd.f32 %v1422, %v1633
      %v1653 = vadd.f32 %v1423, %v1636
      %v1654 = vadd.f32 %v1424, %v1641
      %1655 = vst [vmem:[#allocation2] sm:$0xff] %v1646
      %1656 = vst [vmem:[#allocation2 + $0x8] sm:$0xff] %v1647
      %1657 = vst [vmem:[#allocation2 + $0x10] sm:$0xff] %v1648
      %1658 = vst [vmem:[#allocation2 + $0x18] sm:$0xff] %v1649
      %1659 = vst [vmem:[#allocation2 + $0x20] sm:$0xff] %v1650
      %1660 = vst [vmem:[#allocation2 + $0x28] sm:$0xff] %v1651
      %1661 = vst [vmem:[#allocation2 + $0x30] sm:$0xff] %v1652
      %1662 = vst [vmem:[#allocation2 + $0x38] sm:$0xff] %v1653
      %1663 = vst [vmem:[#allocation2 + $0x40] sm:$0xff] %v1654
      %v1664 = vld [vmem:[#allocation2] sm:$0xff]
      %v1665 = vld [vmem:[#allocation2 + $0x8] sm:$0xff]
      %v1666 = vld [vmem:[#allocation2 + $0x10] sm:$0xff]
      %v1667 = vld [vmem:[#allocation2 + $0x18] sm:$0xff]
      %v1668 = vld [vmem:[#allocation2 + $0x20] sm:$0xff]
      %v1669 = vld [vmem:[#allocation2 + $0x28] sm:$0xff]
      %v1670 = vld [vmem:[#allocation2 + $0x30] sm:$0xff]
      %v1671 = vld [vmem:[#allocation2 + $0x38] sm:$0xff]
      %v1672 = vld [vmem:[#allocation2 + $0x40] sm:$0xff]
      %v1673 = vld [vmem:[%s273 + $0x4] sm:$0xf]
      %v1674 = vld [vmem:[%s273 + $0x8] sm:$0xf]
      %v1675 = vld [vmem:[%s273 + $0xc] sm:$0xf]
      %v1676 = vld [vmem:[%s273 + $0x10] sm:$0xf]
      %v1677 = vld [vmem:[%s273 + $0x14] sm:$0xf]
      %v1678 = vld [vmem:[%s273 + $0x18] sm:$0xf]
      %v1679 = vld [vmem:[%s273 + $0x1c] sm:$0xf]
      %v1680 = vld [vmem:[%s273 + $0x20] sm:$0xf]
      %v1681 = vld [vmem:[%s273 + $0x24] sm:$0xf]
      %v1682 = vld [vmem:[%s273 + $0x28] sm:$0x1]
      %s1683 = scalar_lea.vmem %s1, 384
      %v1684 = vld [vmem:[%s1683] sm:$0xf]
      %v1685 = vld [vmem:[%s1683 + $0x4] sm:$0xf]
      %v1686 = vld [vmem:[%s1683 + $0x8] sm:$0xf]
      %v1687 = vld [vmem:[%s1683 + $0xc] sm:$0xf]
      %v1688 = vld [vmem:[%s1683 + $0x10] sm:$0xf]
      %v1689 = vld [vmem:[%s1683 + $0x14] sm:$0xf]
      %v1690 = vld [vmem:[%s1683 + $0x18] sm:$0xf]
      %v1691 = vld [vmem:[%s1683 + $0x1c] sm:$0xf]
      %v1692 = vld [vmem:[%s1683 + $0x20] sm:$0xf]
      %v1693 = vld [vmem:[%s1683 + $0x24] sm:$0xf]
      %v1694 = vld [vmem:[%s1683 + $0x28] sm:$0xf]
      %v1695 = vld [vmem:[%s1683 + $0x2c] sm:$0xf]
      %v1696 = vld [vmem:[%s1683 + $0x30] sm:$0xf]
      %v1697 = vld [vmem:[%s1683 + $0x34] sm:$0xf]
      %v1698 = vld [vmem:[%s1683 + $0x38] sm:$0xf]
      %v1699 = vld [vmem:[%s1683 + $0x3c] sm:$0xf]
      %v1710 = vunpack.c.l.b16 %v1673
      %v1711 = vunpack.c.l.b16 %v1674
      %v1712 = vunpack.c.l.b16 %v1675
      %v1713 = vunpack.c.l.b16 %v1676
      %v1714 = vunpack.c.l.b16 %v1677
      %v1715 = vunpack.c.l.b16 %v1678
      %v1716 = vunpack.c.l.b16 %v1679
      %v1717 = vunpack.c.l.b16 %v1680
      %v1718 = vunpack.c.l.b16 %v1681
      %v1719 = vunpack.c.l.b16 %v1682
      %v1720 = vpack.c.b16 %v1711, %v1710
      %v1721 = vpack.c.b16 %v1713, %v1712
      %v1722 = vpack.c.b16 %v1715, %v1714
      %v1723 = vpack.c.b16 %v1717, %v1716
      %v1724 = vpack.c.b16 %v1719, %v1718
      %v1726 = vshrl.u32 %v1720, 16
      %v1728 = vshll.u32 %v1720, 16
      %v1730 = vrot.slane %v1728, 1
      %v1731 = vor.u32 %v1726, %v1730
      %v1733 = vshll.u32 %v1721, 16
      %v1735 = vrot.slane %v1733, 1
      %v1736 = vsel %vm527, %v1731, %v1735
      %v1737 = vshrl.u32 %v1721, 16
      %v1739 = vor.u32 %v1737, %v1735
      %v1741 = vshll.u32 %v1722, 16
      %v1743 = vrot.slane %v1741, 1
      %v1744 = vsel %vm527, %v1739, %v1743
      %v1745 = vshrl.u32 %v1722, 16
      %v1747 = vor.u32 %v1745, %v1743
      %v1749 = vshll.u32 %v1723, 16
      %v1751 = vrot.slane %v1749, 1
      %v1752 = vsel %vm527, %v1747, %v1751
      %v1753 = vshrl.u32 %v1723, 16
      %v1755 = vor.u32 %v1753, %v1751
      %v1757 = vshll.u32 %v1724, 16
      %v1759 = vrot.slane %v1757, 1
      %v1760 = vsel %vm527, %v1755, %v1759
      %v1761 = vshrl.u32 %v1724, 16
      %v1763 = vor.u32 %v1761, %v1759
      %v1785 = vunpack.c.l.b16 %v1684
      %v1786 = vunpack.c.l.b16 %v1685
      %v1787 = vunpack.c.l.b16 %v1686
      %v1788 = vunpack.c.l.b16 %v1687
      %v1789 = vunpack.c.l.b16 %v1688
      %v1790 = vunpack.c.l.b16 %v1689
      %v1791 = vunpack.c.l.b16 %v1690
      %v1792 = vunpack.c.l.b16 %v1691
      %v1793 = vunpack.c.l.b16 %v1692
      %v1794 = vunpack.c.l.b16 %v1693
      %v1795 = vunpack.c.l.b16 %v1694
      %v1796 = vunpack.c.l.b16 %v1695
      %v1797 = vunpack.c.l.b16 %v1696
      %v1798 = vunpack.c.l.b16 %v1697
      %v1799 = vunpack.c.l.b16 %v1698
      %v1800 = vunpack.c.l.b16 %v1699
      %v1801 = vpack.c.b16 %v1786, %v1785
      %v1802 = vpack.c.b16 %v1788, %v1787
      %v1803 = vpack.c.b16 %v1790, %v1789
      %v1804 = vpack.c.b16 %v1792, %v1791
      %v1805 = vpack.c.b16 %v1794, %v1793
      %v1806 = vpack.c.b16 %v1796, %v1795
      %v1807 = vpack.c.b16 %v1798, %v1797
      %v1808 = vpack.c.b16 %v1800, %v1799
      %1817 = vmatprep.subr.bf16.mxu0 0
      %1818 = vmatpush1.bf16.msra.mxu0 %v1801
      %1819 = vmatprep.subr.bf16.mxu0 0
      %1820 = vmatpush1.bf16.msra.mxu0 %v1802
      %1821 = vmatprep.subr.bf16.mxu0 0
      %1822 = vmatpush1.bf16.msra.mxu0 %v1803
      %1823 = vmatprep.subr.bf16.mxu0 0
      %1824 = vmatpush1.bf16.msra.mxu0 %v1804
      %1825 = vmatprep.subr.bf16.mxu0 0
      %1826 = vmatpush1.bf16.msra.mxu0 %v1805
      %1827 = vmatprep.subr.bf16.mxu0 0
      %1828 = vmatpush1.bf16.msra.mxu0 %v1806
      %1829 = vmatprep.subr.bf16.mxu0 0
      %1830 = vmatpush1.bf16.msra.mxu0 %v1807
      %1831 = vmatprep.subr.bf16.mxu0 0
      %1832 = vmatpush1.bf16.msra.mxu0 %v1808
      %1833 = vmatprep.subr.bf16.mxu0 0
      %1834 = vmatpush1.bf16.msra.mxu0 0
      %1835 = vmatprep.subr.bf16.mxu0 0
      %1836 = vmatpush1.bf16.msra.mxu0 0
      %1837 = vmatprep.subr.bf16.mxu0 0
      %1838 = vmatpush1.bf16.msra.mxu0 0
      %1839 = vmatprep.subr.bf16.mxu0 0
      %1840 = vmatpush1.bf16.msra.mxu0 0
      %1841 = vmatprep.subr.bf16.mxu0 0
      %1842 = vmatpush1.bf16.msra.mxu0 0
      %1843 = vmatprep.subr.bf16.mxu0 0
      %1844 = vmatpush1.bf16.msra.mxu0 0
      %1845 = vmatprep.subr.bf16.mxu0 0
      %1846 = vmatpush1.bf16.msra.mxu0 0
      %1847 = vmatprep.subr.bf16.mxu0 0
      %1848 = vmatpush1.bf16.msra.mxu0 0
      %1849 = vmatprep.mubr.bf16.mxu0 0
      %1850 = vmatmul.mubr.bf16.gmra.mrb[0].mxu0 %v1736
      %v1851 = vpop.f32.mrb[0].mxu0
      %v1852 = vadd.f32 0.0, %v1851
      %v1853 = vpop.f32.mrb[0].mxu0
      %v1854 = vpop.f32.mrb[0].mxu0
      %v1855 = vadd.f32 0.0, %v1854
      %v1856 = vpop.f32.mrb[0].mxu0
      %1857 = vmatprep.mubr.bf16.mxu0 0
      %1858 = vmatmul.mubr.bf16.gmra.mrb[0].mxu0 %v1744
      %v1859 = vpop.f32.mrb[0].mxu0
      %v1860 = vadd.f32 0.0, %v1859
      %v1861 = vpop.f32.mrb[0].mxu0
      %v1862 = vpop.f32.mrb[0].mxu0
      %v1863 = vadd.f32 0.0, %v1862
      %v1864 = vpop.f32.mrb[0].mxu0
      %1865 = vmatprep.mubr.bf16.mxu0 0
      %1866 = vmatmul.mubr.bf16.gmra.mrb[0].mxu0 %v1752
      %v1867 = vpop.f32.mrb[0].mxu0
      %v1868 = vadd.f32 0.0, %v1867
      %v1869 = vpop.f32.mrb[0].mxu0
      %v1870 = vpop.f32.mrb[0].mxu0
      %v1871 = vadd.f32 0.0, %v1870
      %v1872 = vpop.f32.mrb[0].mxu0
      %1873 = vmatprep.mubr.bf16.mxu0 0
      %1874 = vmatmul.mubr.bf16.gmra.mrb[0].mxu0 %v1760
      %v1875 = vpop.f32.mrb[0].mxu0
      %v1876 = vadd.f32 0.0, %v1875
      %v1877 = vpop.f32.mrb[0].mxu0
      %v1878 = vpop.f32.mrb[0].mxu0
      %v1879 = vadd.f32 0.0, %v1878
      %v1880 = vpop.f32.mrb[0].mxu0
      %1881 = vmatprep.mubr.bf16.mxu0 0
      %1882 = vmatmul.mubr.bf16.gmra.mrb[0].mxu0 %v1763
      %v1883 = vpop.f32.mrb[0].mxu0
      %v1884 = vadd.f32 0.0, %v1883
      %v1885 = vpop.f32.mrb[0].mxu0
      %v1886 = vpop.f32.mrb[0].mxu0
      %v1887 = vpop.f32.mrb[0].mxu0
      %1888 = vdwg.mxu0
      %v1889 = vadd.f32 %v1664, %v1852
      %v1890 = vadd.f32 %v1665, %v1855
      %v1891 = vadd.f32 %v1666, %v1860
      %v1892 = vadd.f32 %v1667, %v1863
      %v1893 = vadd.f32 %v1668, %v1868
      %v1894 = vadd.f32 %v1669, %v1871
      %v1895 = vadd.f32 %v1670, %v1876
      %v1896 = vadd.f32 %v1671, %v1879
      %v1897 = vadd.f32 %v1672, %v1884
      %1898 = vst [vmem:[#allocation2] sm:$0xff] %v1889
      %1899 = vst [vmem:[#allocation2 + $0x8] sm:$0xff] %v1890
      %1900 = vst [vmem:[#allocation2 + $0x10] sm:$0xff] %v1891
      %1901 = vst [vmem:[#allocation2 + $0x18] sm:$0xff] %v1892
      %1902 = vst [vmem:[#allocation2 + $0x20] sm:$0xff] %v1893
      %1903 = vst [vmem:[#allocation2 + $0x28] sm:$0xff] %v1894
      %1904 = vst [vmem:[#allocation2 + $0x30] sm:$0xff] %v1895
      %1905 = vst [vmem:[#allocation2 + $0x38] sm:$0xff] %v1896
      %1906 = vst [vmem:[#allocation2 + $0x40] sm:$0xff] %v1897
      %v1907 = vld [vmem:[#allocation2] sm:$0xff]
      %v1908 = vld [vmem:[#allocation2 + $0x8] sm:$0xff]
      %v1909 = vld [vmem:[#allocation2 + $0x10] sm:$0xff]
      %v1910 = vld [vmem:[#allocation2 + $0x18] sm:$0xff]
      %v1911 = vld [vmem:[#allocation2 + $0x20] sm:$0xff]
      %v1912 = vld [vmem:[#allocation2 + $0x28] sm:$0xff]
      %v1913 = vld [vmem:[#allocation2 + $0x30] sm:$0xff]
      %v1914 = vld [vmem:[#allocation2 + $0x38] sm:$0xff]
      %v1915 = vld [vmem:[#allocation2 + $0x40] sm:$0xff]
      %v1916 = vld [vmem:[%s273 + $0x2c] sm:$0xe]
      %v1917 = vld [vmem:[%s273 + $0x30] sm:$0xf]
      %v1918 = vld [vmem:[%s273 + $0x34] sm:$0xf]
      %v1919 = vld [vmem:[%s273 + $0x38] sm:$0xf]
      %v1920 = vld [vmem:[%s273 + $0x3c] sm:$0xf]
      %v1921 = vld [vmem:[%s273 + $0x40] sm:$0xf]
      %v1922 = vld [vmem:[%s273 + $0x44] sm:$0xf]
      %v1923 = vld [vmem:[%s273 + $0x48] sm:$0xf]
      %v1924 = vld [vmem:[%s273 + $0x4c] sm:$0xf]
      %v1925 = vld [vmem:[%s273 + $0x50] sm:$0x1]
      %s1926 = scalar_lea.vmem %s1, 448
      %v1927 = vld [vmem:[%s1926] sm:$0xf]
      %v1928 = vld [vmem:[%s1926 + $0x4] sm:$0xf]
      %v1929 = vld [vmem:[%s1926 + $0x8] sm:$0xf]
      %v1930 = vld [vmem:[%s1926 + $0xc] sm:$0xf]
      %v1931 = vld [vmem:[%s1926 + $0x10] sm:$0xf]
      %v1932 = vld [vmem:[%s1926 + $0x14] sm:$0xf]
      %v1933 = vld [vmem:[%s1926 + $0x18] sm:$0xf]
      %v1934 = vld [vmem:[%s1926 + $0x1c] sm:$0xf]
      %v1935 = vld [vmem:[%s1926 + $0x20] sm:$0xf]
      %v1936 = vld [vmem:[%s1926 + $0x24] sm:$0xf]
      %v1937 = vld [vmem:[%s1926 + $0x28] sm:$0xf]
      %v1938 = vld [vmem:[%s1926 + $0x2c] sm:$0xf]
      %v1939 = vld [vmem:[%s1926 + $0x30] sm:$0xf]
      %v1940 = vld [vmem:[%s1926 + $0x34] sm:$0xf]
      %v1941 = vld [vmem:[%s1926 + $0x38] sm:$0xf]
      %v1942 = vld [vmem:[%s1926 + $0x3c] sm:$0xf]
      %v1953 = vunpack.c.l.b16 %v1916
      %v1954 = vunpack.c.l.b16 %v1917
      %v1955 = vunpack.c.l.b16 %v1918
      %v1956 = vunpack.c.l.b16 %v1919
      %v1957 = vunpack.c.l.b16 %v1920
      %v1958 = vunpack.c.l.b16 %v1921
      %v1959 = vunpack.c.l.b16 %v1922
      %v1960 = vunpack.c.l.b16 %v1923
      %v1961 = vunpack.c.l.b16 %v1924
      %v1962 = vunpack.c.l.b16 %v1925
      %v1963 = vpack.c.b16 %v1954, %v1953
      %v1964 = vpack.c.b16 %v1956, %v1955
      %v1965 = vpack.c.b16 %v1958, %v1957
      %v1966 = vpack.c.b16 %v1960, %v1959
      %v1967 = vpack.c.b16 %v1962, %v1961
      %v1968 = vrot.slane %v1963, 1
      %v1969 = vrot.slane %v1964, 1
      %v1970 = vsel %vm1014, %v1968, %v1969
      %v1971 = vrot.slane %v1965, 1
      %v1972 = vsel %vm1014, %v1969, %v1971
      %v1973 = vrot.slane %v1966, 1
      %v1974 = vsel %vm1014, %v1971, %v1973
      %v1975 = vrot.slane %v1967, 1
      %v1976 = vsel %vm1014, %v1973, %v1975
      %v1998 = vunpack.c.l.b16 %v1927
      %v1999 = vunpack.c.l.b16 %v1928
      %v2000 = vunpack.c.l.b16 %v1929
      %v2001 = vunpack.c.l.b16 %v1930
      %v2002 = vunpack.c.l.b16 %v1931
      %v2003 = vunpack.c.l.b16 %v1932
      %v2004 = vunpack.c.l.b16 %v1933
      %v2005 = vunpack.c.l.b16 %v1934
      %v2006 = vunpack.c.l.b16 %v1935
      %v2007 = vunpack.c.l.b16 %v1936
      %v2008 = vunpack.c.l.b16 %v1937
      %v2009 = vunpack.c.l.b16 %v1938
      %v2010 = vunpack.c.l.b16 %v1939
      %v2011 = vunpack.c.l.b16 %v1940
      %v2012 = vunpack.c.l.b16 %v1941
      %v2013 = vunpack.c.l.b16 %v1942
      %v2014 = vpack.c.b16 %v1999, %v1998
      %v2015 = vpack.c.b16 %v2001, %v2000
      %v2016 = vpack.c.b16 %v2003, %v2002
      %v2017 = vpack.c.b16 %v2005, %v2004
      %v2018 = vpack.c.b16 %v2007, %v2006
      %v2019 = vpack.c.b16 %v2009, %v2008
      %v2020 = vpack.c.b16 %v2011, %v2010
      %v2021 = vpack.c.b16 %v2013, %v2012
      %2030 = vmatprep.subr.bf16.mxu0 0
      %2031 = vmatpush1.bf16.msra.mxu0 %v2014
      %2032 = vmatprep.subr.bf16.mxu0 0
      %2033 = vmatpush1.bf16.msra.mxu0 %v2015
      %2034 = vmatprep.subr.bf16.mxu0 0
      %2035 = vmatpush1.bf16.msra.mxu0 %v2016
      %2036 = vmatprep.subr.bf16.mxu0 0
      %2037 = vmatpush1.bf16.msra.mxu0 %v2017
      %2038 = vmatprep.subr.bf16.mxu0 0
      %2039 = vmatpush1.bf16.msra.mxu0 %v2018
      %2040 = vmatprep.subr.bf16.mxu0 0
      %2041 = vmatpush1.bf16.msra.mxu0 %v2019
      %2042 = vmatprep.subr.bf16.mxu0 0
      %2043 = vmatpush1.bf16.msra.mxu0 %v2020
      %2044 = vmatprep.subr.bf16.mxu0 0
      %2045 = vmatpush1.bf16.msra.mxu0 %v2021
      %2046 = vmatprep.subr.bf16.mxu0 0
      %2047 = vmatpush1.bf16.msra.mxu0 0
      %2048 = vmatprep.subr.bf16.mxu0 0
      %2049 = vmatpush1.bf16.msra.mxu0 0
      %2050 = vmatprep.subr.bf16.mxu0 0
      %2051 = vmatpush1.bf16.msra.mxu0 0
      %2052 = vmatprep.subr.bf16.mxu0 0
      %2053 = vmatpush1.bf16.msra.mxu0 0
      %2054 = vmatprep.subr.bf16.mxu0 0
      %2055 = vmatpush1.bf16.msra.mxu0 0
      %2056 = vmatprep.subr.bf16.mxu0 0
      %2057 = vmatpush1.bf16.msra.mxu0 0
      %2058 = vmatprep.subr.bf16.mxu0 0
      %2059 = vmatpush1.bf16.msra.mxu0 0
      %2060 = vmatprep.subr.bf16.mxu0 0
      %2061 = vmatpush1.bf16.msra.mxu0 0
      %2062 = vmatprep.mubr.bf16.mxu0 0
      %2063 = vmatmul.mubr.bf16.gmra.mrb[0].mxu0 %v1970
      %v2064 = vpop.f32.mrb[0].mxu0
      %v2065 = vadd.f32 0.0, %v2064
      %v2066 = vpop.f32.mrb[0].mxu0
      %v2067 = vpop.f32.mrb[0].mxu0
      %v2068 = vadd.f32 0.0, %v2067
      %v2069 = vpop.f32.mrb[0].mxu0
      %2070 = vmatprep.mubr.bf16.mxu0 0
      %2071 = vmatmul.mubr.bf16.gmra.mrb[0].mxu0 %v1972
      %v2072 = vpop.f32.mrb[0].mxu0
      %v2073 = vadd.f32 0.0, %v2072
      %v2074 = vpop.f32.mrb[0].mxu0
      %v2075 = vpop.f32.mrb[0].mxu0
      %v2076 = vadd.f32 0.0, %v2075
      %v2077 = vpop.f32.mrb[0].mxu0
      %2078 = vmatprep.mubr.bf16.mxu0 0
      %2079 = vmatmul.mubr.bf16.gmra.mrb[0].mxu0 %v1974
      %v2080 = vpop.f32.mrb[0].mxu0
      %v2081 = vadd.f32 0.0, %v2080
      %v2082 = vpop.f32.mrb[0].mxu0
      %v2083 = vpop.f32.mrb[0].mxu0
      %v2084 = vadd.f32 0.0, %v2083
      %v2085 = vpop.f32.mrb[0].mxu0
      %2086 = vmatprep.mubr.bf16.mxu0 0
      %2087 = vmatmul.mubr.bf16.gmra.mrb[0].mxu0 %v1976
      %v2088 = vpop.f32.mrb[0].mxu0
      %v2089 = vadd.f32 0.0, %v2088
      %v2090 = vpop.f32.mrb[0].mxu0
      %v2091 = vpop.f32.mrb[0].mxu0
      %v2092 = vadd.f32 0.0, %v2091
      %v2093 = vpop.f32.mrb[0].mxu0
      %2094 = vmatprep.mubr.bf16.mxu0 0
      %2095 = vmatmul.mubr.bf16.gmra.mrb[0].mxu0 %v1975
      %v2096 = vpop.f32.mrb[0].mxu0
      %v2097 = vadd.f32 0.0, %v2096
      %v2098 = vpop.f32.mrb[0].mxu0
      %v2099 = vpop.f32.mrb[0].mxu0
      %v2100 = vpop.f32.mrb[0].mxu0
      %2101 = vdwg.mxu0
      %v2102 = vadd.f32 %v1907, %v2065
      %v2103 = vadd.f32 %v1908, %v2068
      %v2104 = vadd.f32 %v1909, %v2073
      %v2105 = vadd.f32 %v1910, %v2076
      %v2106 = vadd.f32 %v1911, %v2081
      %v2107 = vadd.f32 %v1912, %v2084
      %v2108 = vadd.f32 %v1913, %v2089
      %v2109 = vadd.f32 %v1914, %v2092
      %v2110 = vadd.f32 %v1915, %v2097
      %2111 = vst [vmem:[#allocation2] sm:$0xff] %v2102
      %2112 = vst [vmem:[#allocation2 + $0x8] sm:$0xff] %v2103
      %2113 = vst [vmem:[#allocation2 + $0x10] sm:$0xff] %v2104
      %2114 = vst [vmem:[#allocation2 + $0x18] sm:$0xff] %v2105
      %2115 = vst [vmem:[#allocation2 + $0x20] sm:$0xff] %v2106
      %2116 = vst [vmem:[#allocation2 + $0x28] sm:$0xff] %v2107
      %2117 = vst [vmem:[#allocation2 + $0x30] sm:$0xff] %v2108
      %2118 = vst [vmem:[#allocation2 + $0x38] sm:$0xff] %v2109
      %2119 = vst [vmem:[#allocation2 + $0x40] sm:$0xff] %v2110
      %v2120 = vld [vmem:[#allocation2] sm:$0xff]
      %v2121 = vld [vmem:[#allocation2 + $0x8] sm:$0xff]
      %v2122 = vld [vmem:[#allocation2 + $0x10] sm:$0xff]
      %v2123 = vld [vmem:[#allocation2 + $0x18] sm:$0xff]
      %v2124 = vld [vmem:[#allocation2 + $0x20] sm:$0xff]
      %v2125 = vld [vmem:[#allocation2 + $0x28] sm:$0xff]
      %v2126 = vld [vmem:[#allocation2 + $0x30] sm:$0xff]
      %v2127 = vld [vmem:[#allocation2 + $0x38] sm:$0xff]
      %v2128 = vld [vmem:[#allocation2 + $0x40] sm:$0xff]
      %v2129 = vld [vmem:[%s273 + $0x4] sm:$0xe]
      %v2130 = vld [vmem:[%s273 + $0x8] sm:$0xf]
      %v2131 = vld [vmem:[%s273 + $0xc] sm:$0xf]
      %v2132 = vld [vmem:[%s273 + $0x10] sm:$0xf]
      %v2133 = vld [vmem:[%s273 + $0x14] sm:$0xf]
      %v2134 = vld [vmem:[%s273 + $0x18] sm:$0xf]
      %v2135 = vld [vmem:[%s273 + $0x1c] sm:$0xf]
      %v2136 = vld [vmem:[%s273 + $0x20] sm:$0xf]
      %v2137 = vld [vmem:[%s273 + $0x24] sm:$0xf]
      %v2138 = vld [vmem:[%s273 + $0x28] sm:$0x1]
      %s2139 = scalar_lea.vmem %s1, 512
      %v2140 = vld [vmem:[%s2139] sm:$0xf]
      %v2141 = vld [vmem:[%s2139 + $0x4] sm:$0xf]
      %v2142 = vld [vmem:[%s2139 + $0x8] sm:$0xf]
      %v2143 = vld [vmem:[%s2139 + $0xc] sm:$0xf]
      %v2144 = vld [vmem:[%s2139 + $0x10] sm:$0xf]
      %v2145 = vld [vmem:[%s2139 + $0x14] sm:$0xf]
      %v2146 = vld [vmem:[%s2139 + $0x18] sm:$0xf]
      %v2147 = vld [vmem:[%s2139 + $0x1c] sm:$0xf]
      %v2148 = vld [vmem:[%s2139 + $0x20] sm:$0xf]
      %v2149 = vld [vmem:[%s2139 + $0x24] sm:$0xf]
      %v2150 = vld [vmem:[%s2139 + $0x28] sm:$0xf]
      %v2151 = vld [vmem:[%s2139 + $0x2c] sm:$0xf]
      %v2152 = vld [vmem:[%s2139 + $0x30] sm:$0xf]
      %v2153 = vld [vmem:[%s2139 + $0x34] sm:$0xf]
      %v2154 = vld [vmem:[%s2139 + $0x38] sm:$0xf]
      %v2155 = vld [vmem:[%s2139 + $0x3c] sm:$0xf]
      %v2166 = vunpack.c.l.b16 %v2129
      %v2167 = vunpack.c.l.b16 %v2130
      %v2168 = vunpack.c.l.b16 %v2131
      %v2169 = vunpack.c.l.b16 %v2132
      %v2170 = vunpack.c.l.b16 %v2133
      %v2171 = vunpack.c.l.b16 %v2134
      %v2172 = vunpack.c.l.b16 %v2135
      %v2173 = vunpack.c.l.b16 %v2136
      %v2174 = vunpack.c.l.b16 %v2137
      %v2175 = vunpack.c.l.b16 %v2138
      %v2176 = vpack.c.b16 %v2167, %v2166
      %v2177 = vpack.c.b16 %v2169, %v2168
      %v2178 = vpack.c.b16 %v2171, %v2170
      %v2179 = vpack.c.b16 %v2173, %v2172
      %v2180 = vpack.c.b16 %v2175, %v2174
      %v2181 = vrot.slane %v2176, 1
      %v2182 = vrot.slane %v2177, 1
      %v2183 = vsel %vm1014, %v2181, %v2182
      %v2184 = vrot.slane %v2178, 1
      %v2185 = vsel %vm1014, %v2182, %v2184
      %v2186 = vrot.slane %v2179, 1
      %v2187 = vsel %vm1014, %v2184, %v2186
      %v2188 = vrot.slane %v2180, 1
      %v2189 = vsel %vm1014, %v2186, %v2188
      %v2211 = vunpack.c.l.b16 %v2140
      %v2212 = vunpack.c.l.b16 %v2141
      %v2213 = vunpack.c.l.b16 %v2142
      %v2214 = vunpack.c.l.b16 %v2143
      %v2215 = vunpack.c.l.b16 %v2144
      %v2216 = vunpack.c.l.b16 %v2145
      %v2217 = vunpack.c.l.b16 %v2146
      %v2218 = vunpack.c.l.b16 %v2147
      %v2219 = vunpack.c.l.b16 %v2148
      %v2220 = vunpack.c.l.b16 %v2149
      %v2221 = vunpack.c.l.b16 %v2150
      %v2222 = vunpack.c.l.b16 %v2151
      %v2223 = vunpack.c.l.b16 %v2152
      %v2224 = vunpack.c.l.b16 %v2153
      %v2225 = vunpack.c.l.b16 %v2154
      %v2226 = vunpack.c.l.b16 %v2155
      %v2227 = vpack.c.b16 %v2212, %v2211
      %v2228 = vpack.c.b16 %v2214, %v2213
      %v2229 = vpack.c.b16 %v2216, %v2215
      %v2230 = vpack.c.b16 %v2218, %v2217
      %v2231 = vpack.c.b16 %v2220, %v2219
      %v2232 = vpack.c.b16 %v2222, %v2221
      %v2233 = vpack.c.b16 %v2224, %v2223
      %v2234 = vpack.c.b16 %v2226, %v2225
      %2243 = vmatprep.subr.bf16.mxu0 0
      %2244 = vmatpush1.bf16.msra.mxu0 %v2227
      %2245 = vmatprep.subr.bf16.mxu0 0
      %2246 = vmatpush1.bf16.msra.mxu0 %v2228
      %2247 = vmatprep.subr.bf16.mxu0 0
      %2248 = vmatpush1.bf16.msra.mxu0 %v2229
      %2249 = vmatprep.subr.bf16.mxu0 0
      %2250 = vmatpush1.bf16.msra.mxu0 %v2230
      %2251 = vmatprep.subr.bf16.mxu0 0
      %2252 = vmatpush1.bf16.msra.mxu0 %v2231
      %2253 = vmatprep.subr.bf16.mxu0 0
      %2254 = vmatpush1.bf16.msra.mxu0 %v2232
      %2255 = vmatprep.subr.bf16.mxu0 0
      %2256 = vmatpush1.bf16.msra.mxu0 %v2233
      %2257 = vmatprep.subr.bf16.mxu0 0
      %2258 = vmatpush1.bf16.msra.mxu0 %v2234
      %2259 = vmatprep.subr.bf16.mxu0 0
      %2260 = vmatpush1.bf16.msra.mxu0 0
      %2261 = vmatprep.subr.bf16.mxu0 0
      %2262 = vmatpush1.bf16.msra.mxu0 0
      %2263 = vmatprep.subr.bf16.mxu0 0
      %2264 = vmatpush1.bf16.msra.mxu0 0
      %2265 = vmatprep.subr.bf16.mxu0 0
      %2266 = vmatpush1.bf16.msra.mxu0 0
      %2267 = vmatprep.subr.bf16.mxu0 0
      %2268 = vmatpush1.bf16.msra.mxu0 0
      %2269 = vmatprep.subr.bf16.mxu0 0
      %2270 = vmatpush1.bf16.msra.mxu0 0
      %2271 = vmatprep.subr.bf16.mxu0 0
      %2272 = vmatpush1.bf16.msra.mxu0 0
      %2273 = vmatprep.subr.bf16.mxu0 0
      %2274 = vmatpush1.bf16.msra.mxu0 0
      %2275 = vmatprep.mubr.bf16.mxu0 0
      %2276 = vmatmul.mubr.bf16.gmra.mrb[0].mxu0 %v2183
      %v2277 = vpop.f32.mrb[0].mxu0
      %v2278 = vadd.f32 0.0, %v2277
      %v2279 = vpop.f32.mrb[0].mxu0
      %v2280 = vpop.f32.mrb[0].mxu0
      %v2281 = vadd.f32 0.0, %v2280
      %v2282 = vpop.f32.mrb[0].mxu0
      %2283 = vmatprep.mubr.bf16.mxu0 0
      %2284 = vmatmul.mubr.bf16.gmra.mrb[0].mxu0 %v2185
      %v2285 = vpop.f32.mrb[0].mxu0
      %v2286 = vadd.f32 0.0, %v2285
      %v2287 = vpop.f32.mrb[0].mxu0
      %v2288 = vpop.f32.mrb[0].mxu0
      %v2289 = vadd.f32 0.0, %v2288
      %v2290 = vpop.f32.mrb[0].mxu0
      %2291 = vmatprep.mubr.bf16.mxu0 0
      %2292 = vmatmul.mubr.bf16.gmra.mrb[0].mxu0 %v2187
      %v2293 = vpop.f32.mrb[0].mxu0
      %v2294 = vadd.f32 0.0, %v2293
      %v2295 = vpop.f32.mrb[0].mxu0
      %v2296 = vpop.f32.mrb[0].mxu0
      %v2297 = vadd.f32 0.0, %v2296
      %v2298 = vpop.f32.mrb[0].mxu0
      %2299 = vmatprep.mubr.bf16.mxu0 0
      %2300 = vmatmul.mubr.bf16.gmra.mrb[0].mxu0 %v2189
      %v2301 = vpop.f32.mrb[0].mxu0
      %v2302 = vadd.f32 0.0, %v2301
      %v2303 = vpop.f32.mrb[0].mxu0
      %v2304 = vpop.f32.mrb[0].mxu0
      %v2305 = vadd.f32 0.0, %v2304
      %v2306 = vpop.f32.mrb[0].mxu0
      %2307 = vmatprep.mubr.bf16.mxu0 0
      %2308 = vmatmul.mubr.bf16.gmra.mrb[0].mxu0 %v2188
      %v2309 = vpop.f32.mrb[0].mxu0
      %v2310 = vadd.f32 0.0, %v2309
      %v2311 = vpop.f32.mrb[0].mxu0
      %v2312 = vpop.f32.mrb[0].mxu0
      %v2313 = vpop.f32.mrb[0].mxu0
      %2314 = vdwg.mxu0
      %v2315 = vadd.f32 %v2120, %v2278
      %v2316 = vadd.f32 %v2121, %v2281
      %v2317 = vadd.f32 %v2122, %v2286
      %v2318 = vadd.f32 %v2123, %v2289
      %v2319 = vadd.f32 %v2124, %v2294
      %v2320 = vadd.f32 %v2125, %v2297
      %v2321 = vadd.f32 %v2126, %v2302
      %v2322 = vadd.f32 %v2127, %v2305
      %v2323 = vadd.f32 %v2128, %v2310
      %2324 = vst [vmem:[#allocation2] sm:$0xff] %v2315
      %2325 = vst [vmem:[#allocation2 + $0x8] sm:$0xff] %v2316
      %2326 = vst [vmem:[#allocation2 + $0x10] sm:$0xff] %v2317
      %2327 = vst [vmem:[#allocation2 + $0x18] sm:$0xff] %v2318
      %2328 = vst [vmem:[#allocation2 + $0x20] sm:$0xff] %v2319
      %2329 = vst [vmem:[#allocation2 + $0x28] sm:$0xff] %v2320
      %2330 = vst [vmem:[#allocation2 + $0x30] sm:$0xff] %v2321
      %2331 = vst [vmem:[#allocation2 + $0x38] sm:$0xff] %v2322
      %2332 = vst [vmem:[#allocation2 + $0x40] sm:$0xff] %v2323
      %v2333 = vld [vmem:[#allocation2] sm:$0xff]
      %v2334 = vld [vmem:[#allocation2 + $0x8] sm:$0xff]
      %v2335 = vld [vmem:[#allocation2 + $0x10] sm:$0xff]
      %v2336 = vld [vmem:[#allocation2 + $0x18] sm:$0xff]
      %v2337 = vld [vmem:[#allocation2 + $0x20] sm:$0xff]
      %v2338 = vld [vmem:[#allocation2 + $0x28] sm:$0xff]
      %v2339 = vld [vmem:[#allocation2 + $0x30] sm:$0xff]
      %v2340 = vld [vmem:[#allocation2 + $0x38] sm:$0xff]
      %v2341 = vld [vmem:[#allocation2 + $0x40] sm:$0xff]
      %v2342 = vld [vmem:[%s3] sm:$0x1]
      %v2344 = vlaneseq
      %v2345 = vshrl.u32 %v2344, 7
      %v2346 = vsub.s32 0, %v2345
      %v2347 = vrot.slane %v2342, %v2346
      %v2349 = vadd.f32 %v2333, %v2347
      %v2350 = vadd.f32 %v2334, %v2347
      %v2351 = vadd.f32 %v2335, %v2347
      %v2352 = vadd.f32 %v2336, %v2347
      %v2353 = vadd.f32 %v2337, %v2347
      %v2354 = vadd.f32 %v2338, %v2347
      %v2355 = vadd.f32 %v2339, %v2347
      %v2356 = vadd.f32 %v2340, %v2347
      %v2357 = vadd.f32 %v2341, %v2347
      %v2358 = vmax.f32 %v2349, 0.0
      %v2359 = vmax.f32 %v2350, 0.0
      %v2360 = vmax.f32 %v2351, 0.0
      %v2361 = vmax.f32 %v2352, 0.0
      %v2362 = vmax.f32 %v2353, 0.0
      %v2363 = vmax.f32 %v2354, 0.0
      %v2364 = vmax.f32 %v2355, 0.0
      %v2365 = vmax.f32 %v2356, 0.0
      %v2366 = vmax.f32 %v2357, 0.0
      %v2367 = vld [vmem:[%s5] sm:$0xff]
      %v2368 = vld [vmem:[%s5 + $0x8] sm:$0xff]
      %v2369 = vld [vmem:[%s5 + $0x10] sm:$0xff]
      %v2370 = vld [vmem:[%s5 + $0x18] sm:$0xff]
      %v2371 = vld [vmem:[%s5 + $0x20] sm:$0xff]
      %v2372 = vld [vmem:[%s5 + $0x28] sm:$0xff]
      %v2373 = vld [vmem:[%s5 + $0x30] sm:$0xff]
      %v2374 = vld [vmem:[%s5 + $0x38] sm:$0xff]
      %v2375 = vld [vmem:[%s5 + $0x40] sm:$0xff]
      %2377 = vset.pattern.permute.xlu0 0
      %2378 = vperm.xlu0 %2377, %v2367
      %v2379 = vpop.permute.xlu0 %2378
      %2382 = vset.pattern.permute.xlu0 0
      %2383 = vperm.xlu0 %2382, %v2368
      %v2384 = vpop.permute.xlu0 %2383
      %2387 = vset.pattern.permute.xlu0 0
      %2388 = vperm.xlu0 %2387, %v2369
      %v2389 = vpop.permute.xlu0 %2388
      %2392 = vset.pattern.permute.xlu0 0
      %2393 = vperm.xlu0 %2392, %v2370
      %v2394 = vpop.permute.xlu0 %2393
      %2397 = vset.pattern.permute.xlu0 0
      %2398 = vperm.xlu0 %2397, %v2371
      %v2399 = vpop.permute.xlu0 %2398
      %2402 = vset.pattern.permute.xlu0 0
      %2403 = vperm.xlu0 %2402, %v2372
      %v2404 = vpop.permute.xlu0 %2403
      %2407 = vset.pattern.permute.xlu0 0
      %2408 = vperm.xlu0 %2407, %v2373
      %v2409 = vpop.permute.xlu0 %2408
      %2412 = vset.pattern.permute.xlu0 0
      %2413 = vperm.xlu0 %2412, %v2374
      %v2414 = vpop.permute.xlu0 %2413
      %2417 = vset.pattern.permute.xlu0 0
      %2418 = vperm.xlu0 %2417, %v2375
      %v2419 = vpop.permute.xlu0 %2418
      %v2421 = vmul.f32 %v2358, %v2379
      %v2422 = vmul.f32 %v2359, %v2384
      %v2423 = vmul.f32 %v2360, %v2389
      %v2424 = vmul.f32 %v2361, %v2394
      %v2425 = vmul.f32 %v2362, %v2399
      %v2426 = vmul.f32 %v2363, %v2404
      %v2427 = vmul.f32 %v2364, %v2409
      %v2428 = vmul.f32 %v2365, %v2414
      %v2429 = vmul.f32 %v2366, %v2419
      %v2430 = vpack.c.bf16 %v2422, %v2421
      %v2431 = vpack.c.bf16 %v2424, %v2423
      %v2432 = vpack.c.bf16 %v2426, %v2425
      %v2433 = vpack.c.bf16 %v2428, %v2427
      %v2434 = vpack.c.bf16 %v2429, %v2429
      %v2440 = vunpack.c.l.b16 %v2430
      %v2441 = vunpack.c.h.b16 %v2430
      %v2442 = vunpack.c.l.b16 %v2431
      %v2443 = vunpack.c.h.b16 %v2431
      %v2444 = vunpack.c.l.b16 %v2432
      %v2445 = vunpack.c.h.b16 %v2432
      %v2446 = vunpack.c.l.b16 %v2433
      %v2447 = vunpack.c.h.b16 %v2433
      %v2448 = vunpack.c.l.b16 %v2434
      %v2449 = vpack.c.b16 %v2440, %v2440
      %v2450 = vpack.c.b16 %v2441, %v2441
      %v2451 = vpack.c.b16 %v2442, %v2442
      %v2452 = vpack.c.b16 %v2443, %v2443
      %v2453 = vpack.c.b16 %v2444, %v2444
      %v2454 = vpack.c.b16 %v2445, %v2445
      %v2455 = vpack.c.b16 %v2446, %v2446
      %v2456 = vpack.c.b16 %v2447, %v2447
      %v2457 = vpack.c.b16 %v2448, %v2448
      %2467 = vst [vmem:[#allocation3 + $0x8] sm:$0xf] %v2449
      %2468 = vst [vmem:[#allocation3 + $0xc] sm:$0xf] %v2450
      %2469 = vst [vmem:[#allocation3 + $0x10] sm:$0xf] %v2451
      %2470 = vst [vmem:[#allocation3 + $0x14] sm:$0xf] %v2452
      %2471 = vst [vmem:[#allocation3 + $0x18] sm:$0xf] %v2453
      %2472 = vst [vmem:[#allocation3 + $0x1c] sm:$0xf] %v2454
      %2473 = vst [vmem:[#allocation3 + $0x20] sm:$0xf] %v2455
      %2474 = vst [vmem:[#allocation3 + $0x24] sm:$0xf] %v2456
      %2475 = vst [vmem:[#allocation3 + $0x28] sm:$0xf] %v2457
      %v2476 = vld [vmem:[%s273 + $0x78] sm:$0xe]
      %v2477 = vld [vmem:[%s273 + $0x7c] sm:$0xf]
      %v2478 = vld [vmem:[%s273 + $0x80] sm:$0xf]
      %v2479 = vld [vmem:[%s273 + $0x84] sm:$0xf]
      %v2480 = vld [vmem:[%s273 + $0x88] sm:$0xf]
      %v2481 = vld [vmem:[%s273 + $0x8c] sm:$0xf]
      %v2482 = vld [vmem:[%s273 + $0x90] sm:$0xf]
      %v2483 = vld [vmem:[%s273 + $0x94] sm:$0xf]
      %v2484 = vld [vmem:[%s273 + $0x98] sm:$0xf]
      %v2485 = vld [vmem:[%s273 + $0x9c] sm:$0x3]
      %v2486 = vld [vmem:[%s6] sm:$0xf]
      %v2487 = vld [vmem:[%s6 + $0x4] sm:$0xf]
      %v2488 = vld [vmem:[%s6 + $0x8] sm:$0xf]
      %v2489 = vld [vmem:[%s6 + $0xc] sm:$0xf]
      %v2490 = vld [vmem:[%s6 + $0x10] sm:$0xf]
      %v2491 = vld [vmem:[%s6 + $0x14] sm:$0xf]
      %v2492 = vld [vmem:[%s6 + $0x18] sm:$0xf]
      %v2493 = vld [vmem:[%s6 + $0x1c] sm:$0xf]
      %v2494 = vld [vmem:[%s6 + $0x20] sm:$0xf]
      %v2495 = vld [vmem:[%s6 + $0x24] sm:$0xf]
      %v2496 = vld [vmem:[%s6 + $0x28] sm:$0xf]
      %v2497 = vld [vmem:[%s6 + $0x2c] sm:$0xf]
      %v2498 = vld [vmem:[%s6 + $0x30] sm:$0xf]
      %v2499 = vld [vmem:[%s6 + $0x34] sm:$0xf]
      %v2500 = vld [vmem:[%s6 + $0x38] sm:$0xf]
      %v2501 = vld [vmem:[%s6 + $0x3c] sm:$0xf]
      %v2512 = vunpack.c.l.b16 %v2476
      %v2513 = vunpack.c.l.b16 %v2477
      %v2514 = vunpack.c.l.b16 %v2478
      %v2515 = vunpack.c.l.b16 %v2479
      %v2516 = vunpack.c.l.b16 %v2480
      %v2517 = vunpack.c.l.b16 %v2481
      %v2518 = vunpack.c.l.b16 %v2482
      %v2519 = vunpack.c.l.b16 %v2483
      %v2520 = vunpack.c.l.b16 %v2484
      %v2521 = vunpack.c.l.b16 %v2485
      %v2522 = vpack.c.b16 %v2513, %v2512
      %v2523 = vpack.c.b16 %v2515, %v2514
      %v2524 = vpack.c.b16 %v2517, %v2516
      %v2525 = vpack.c.b16 %v2519, %v2518
      %v2526 = vpack.c.b16 %v2521, %v2520
      %v2528 = vshrl.u32 %v2522, 16
      %v2530 = vrot.slane %v2528, 1
      %v2531 = vshll.u32 %v2522, 16
      %v2533 = vrot.slane %v2531, 2
      %v2534 = vor.u32 %v2530, %v2533
      %v2536 = vshrl.u32 %v2523, 16
      %v2538 = vrot.slane %v2536, 1
      %v2539 = vshll.u32 %v2523, 16
      %v2541 = vrot.slane %v2539, 2
      %v2542 = vor.u32 %v2538, %v2541
      %v2543 = vsel %vm1228, %v2534, %v2542
      %v2545 = vshrl.u32 %v2524, 16
      %v2547 = vrot.slane %v2545, 1
      %v2548 = vshll.u32 %v2524, 16
      %v2550 = vrot.slane %v2548, 2
      %v2551 = vor.u32 %v2547, %v2550
      %v2552 = vsel %vm1228, %v2542, %v2551
      %v2554 = vshrl.u32 %v2525, 16
      %v2556 = vrot.slane %v2554, 1
      %v2557 = vshll.u32 %v2525, 16
      %v2559 = vrot.slane %v2557, 2
      %v2560 = vor.u32 %v2556, %v2559
      %v2561 = vsel %vm1228, %v2551, %v2560
      %v2563 = vshrl.u32 %v2526, 16
      %v2565 = vrot.slane %v2563, 1
      %v2566 = vshll.u32 %v2526, 16
      %v2568 = vrot.slane %v2566, 2
      %v2569 = vor.u32 %v2565, %v2568
      %v2570 = vsel %vm1228, %v2560, %v2569
      %v2592 = vunpack.c.l.b16 %v2486
      %v2593 = vunpack.c.l.b16 %v2487
      %v2594 = vunpack.c.l.b16 %v2488
      %v2595 = vunpack.c.l.b16 %v2489
      %v2596 = vunpack.c.l.b16 %v2490
      %v2597 = vunpack.c.l.b16 %v2491
      %v2598 = vunpack.c.l.b16 %v2492
      %v2599 = vunpack.c.l.b16 %v2493
      %v2600 = vunpack.c.l.b16 %v2494
      %v2601 = vunpack.c.l.b16 %v2495
      %v2602 = vunpack.c.l.b16 %v2496
      %v2603 = vunpack.c.l.b16 %v2497
      %v2604 = vunpack.c.l.b16 %v2498
      %v2605 = vunpack.c.l.b16 %v2499
      %v2606 = vunpack.c.l.b16 %v2500
      %v2607 = vunpack.c.l.b16 %v2501
      %v2608 = vpack.c.b16 %v2593, %v2592
      %v2609 = vpack.c.b16 %v2595, %v2594
      %v2610 = vpack.c.b16 %v2597, %v2596
      %v2611 = vpack.c.b16 %v2599, %v2598
      %v2612 = vpack.c.b16 %v2601, %v2600
      %v2613 = vpack.c.b16 %v2603, %v2602
      %v2614 = vpack.c.b16 %v2605, %v2604
      %v2615 = vpack.c.b16 %v2607, %v2606
      %2624 = vmatprep.subr.bf16.mxu0 0
      %2625 = vmatpush1.bf16.msra.mxu0 %v2608
      %2626 = vmatprep.subr.bf16.mxu0 0
      %2627 = vmatpush1.bf16.msra.mxu0 %v2609
      %2628 = vmatprep.subr.bf16.mxu0 0
      %2629 = vmatpush1.bf16.msra.mxu0 %v2610
      %2630 = vmatprep.subr.bf16.mxu0 0
      %2631 = vmatpush1.bf16.msra.mxu0 %v2611
      %2632 = vmatprep.subr.bf16.mxu0 0
      %2633 = vmatpush1.bf16.msra.mxu0 %v2612
      %2634 = vmatprep.subr.bf16.mxu0 0
      %2635 = vmatpush1.bf16.msra.mxu0 %v2613
      %2636 = vmatprep.subr.bf16.mxu0 0
      %2637 = vmatpush1.bf16.msra.mxu0 %v2614
      %2638 = vmatprep.subr.bf16.mxu0 0
      %2639 = vmatpush1.bf16.msra.mxu0 %v2615
      %2640 = vmatprep.subr.bf16.mxu0 0
      %2641 = vmatpush1.bf16.msra.mxu0 0
      %2642 = vmatprep.subr.bf16.mxu0 0
      %2643 = vmatpush1.bf16.msra.mxu0 0
      %2644 = vmatprep.subr.bf16.mxu0 0
      %2645 = vmatpush1.bf16.msra.mxu0 0
      %2646 = vmatprep.subr.bf16.mxu0 0
      %2647 = vmatpush1.bf16.msra.mxu0 0
      %2648 = vmatprep.subr.bf16.mxu0 0
      %2649 = vmatpush1.bf16.msra.mxu0 0
      %2650 = vmatprep.subr.bf16.mxu0 0
      %2651 = vmatpush1.bf16.msra.mxu0 0
      %2652 = vmatprep.subr.bf16.mxu0 0
      %2653 = vmatpush1.bf16.msra.mxu0 0
      %2654 = vmatprep.subr.bf16.mxu0 0
      %2655 = vmatpush1.bf16.msra.mxu0 0
      %2656 = vmatprep.mubr.bf16.mxu0 0
      %2657 = vmatmul.mubr.bf16.gmra.mrb[0].mxu0 %v2543
      %v2658 = vpop.f32.mrb[0].mxu0
      %v2659 = vadd.f32 0.0, %v2658
      %v2660 = vpop.f32.mrb[0].mxu0
      %v2661 = vpop.f32.mrb[0].mxu0
      %v2662 = vadd.f32 0.0, %v2661
      %v2663 = vpop.f32.mrb[0].mxu0
      %2664 = vmatprep.mubr.bf16.mxu0 0
      %2665 = vmatmul.mubr.bf16.gmra.mrb[0].mxu0 %v2552
      %v2666 = vpop.f32.mrb[0].mxu0
      %v2667 = vadd.f32 0.0, %v2666
      %v2668 = vpop.f32.mrb[0].mxu0
      %v2669 = vpop.f32.mrb[0].mxu0
      %v2670 = vadd.f32 0.0, %v2669
      %v2671 = vpop.f32.mrb[0].mxu0
      %2672 = vmatprep.mubr.bf16.mxu0 0
      %2673 = vmatmul.mubr.bf16.gmra.mrb[0].mxu0 %v2561
      %v2674 = vpop.f32.mrb[0].mxu0
      %v2675 = vadd.f32 0.0, %v2674
      %v2676 = vpop.f32.mrb[0].mxu0
      %v2677 = vpop.f32.mrb[0].mxu0
      %v2678 = vadd.f32 0.0, %v2677
      %v2679 = vpop.f32.mrb[0].mxu0
      %2680 = vmatprep.mubr.bf16.mxu0 0
      %2681 = vmatmul.mubr.bf16.gmra.mrb[0].mxu0 %v2570
      %v2682 = vpop.f32.mrb[0].mxu0
      %v2683 = vadd.f32 0.0, %v2682
      %v2684 = vpop.f32.mrb[0].mxu0
      %v2685 = vpop.f32.mrb[0].mxu0
      %v2686 = vadd.f32 0.0, %v2685
      %v2687 = vpop.f32.mrb[0].mxu0
      %2688 = vmatprep.mubr.bf16.mxu0 0
      %2689 = vmatmul.mubr.bf16.gmra.mrb[0].mxu0 %v2569
      %v2690 = vpop.f32.mrb[0].mxu0
      %v2691 = vadd.f32 0.0, %v2690
      %v2692 = vpop.f32.mrb[0].mxu0
      %v2693 = vpop.f32.mrb[0].mxu0
      %v2694 = vpop.f32.mrb[0].mxu0
      %2695 = vdwg.mxu0
      %2696 = vst [vmem:[#allocation2] sm:$0xff] %v2659
      %2697 = vst [vmem:[#allocation2 + $0x8] sm:$0xff] %v2662
      %2698 = vst [vmem:[#allocation2 + $0x10] sm:$0xff] %v2667
      %2699 = vst [vmem:[#allocation2 + $0x18] sm:$0xff] %v2670
      %2700 = vst [vmem:[#allocation2 + $0x20] sm:$0xff] %v2675
      %2701 = vst [vmem:[#allocation2 + $0x28] sm:$0xff] %v2678
      %2702 = vst [vmem:[#allocation2 + $0x30] sm:$0xff] %v2683
      %2703 = vst [vmem:[#allocation2 + $0x38] sm:$0xff] %v2686
      %2704 = vst [vmem:[#allocation2 + $0x40] sm:$0xff] %v2691
      %v2705 = vld [vmem:[#allocation2] sm:$0xff]
      %v2706 = vld [vmem:[#allocation2 + $0x8] sm:$0xff]
      %v2707 = vld [vmem:[#allocation2 + $0x10] sm:$0xff]
      %v2708 = vld [vmem:[#allocation2 + $0x18] sm:$0xff]
      %v2709 = vld [vmem:[#allocation2 + $0x20] sm:$0xff]
      %v2710 = vld [vmem:[#allocation2 + $0x28] sm:$0xff]
      %v2711 = vld [vmem:[#allocation2 + $0x30] sm:$0xff]
      %v2712 = vld [vmem:[#allocation2 + $0x38] sm:$0xff]
      %v2713 = vld [vmem:[#allocation2 + $0x40] sm:$0xff]
      %v2714 = vld [vmem:[#allocation3] sm:$0x8]
      %v2715 = vld [vmem:[#allocation3 + $0x4] sm:$0xf]
      %v2716 = vld [vmem:[#allocation3 + $0x8] sm:$0xf]
      %v2717 = vld [vmem:[#allocation3 + $0xc] sm:$0xf]
      %v2718 = vld [vmem:[#allocation3 + $0x10] sm:$0xf]
      %v2719 = vld [vmem:[#allocation3 + $0x14] sm:$0xf]
      %v2720 = vld [vmem:[#allocation3 + $0x18] sm:$0xf]
      %v2721 = vld [vmem:[#allocation3 + $0x1c] sm:$0xf]
      %v2722 = vld [vmem:[#allocation3 + $0x20] sm:$0xf]
      %v2723 = vld [vmem:[#allocation3 + $0x24] sm:$0x7]
      %v2724 = vld [vmem:[%s2] sm:$0xf]
      %v2725 = vld [vmem:[%s2 + $0x4] sm:$0xf]
      %v2726 = vld [vmem:[%s2 + $0x8] sm:$0xf]
      %v2727 = vld [vmem:[%s2 + $0xc] sm:$0xf]
      %v2728 = vld [vmem:[%s2 + $0x10] sm:$0xf]
      %v2729 = vld [vmem:[%s2 + $0x14] sm:$0xf]
      %v2730 = vld [vmem:[%s2 + $0x18] sm:$0xf]
      %v2731 = vld [vmem:[%s2 + $0x1c] sm:$0xf]
      %v2732 = vld [vmem:[%s2 + $0x20] sm:$0xf]
      %v2733 = vld [vmem:[%s2 + $0x24] sm:$0xf]
      %v2734 = vld [vmem:[%s2 + $0x28] sm:$0xf]
      %v2735 = vld [vmem:[%s2 + $0x2c] sm:$0xf]
      %v2736 = vld [vmem:[%s2 + $0x30] sm:$0xf]
      %v2737 = vld [vmem:[%s2 + $0x34] sm:$0xf]
      %v2738 = vld [vmem:[%s2 + $0x38] sm:$0xf]
      %v2739 = vld [vmem:[%s2 + $0x3c] sm:$0xf]
      %v2750 = vunpack.c.l.b16 %v2714
      %v2751 = vunpack.c.l.b16 %v2715
      %v2752 = vunpack.c.l.b16 %v2716
      %v2753 = vunpack.c.l.b16 %v2717
      %v2754 = vunpack.c.l.b16 %v2718
      %v2755 = vunpack.c.l.b16 %v2719
      %v2756 = vunpack.c.l.b16 %v2720
      %v2757 = vunpack.c.l.b16 %v2721
      %v2758 = vunpack.c.l.b16 %v2722
      %v2759 = vunpack.c.l.b16 %v2723
      %v2760 = vpack.c.b16 %v2751, %v2750
      %v2761 = vpack.c.b16 %v2753, %v2752
      %v2762 = vpack.c.b16 %v2755, %v2754
      %v2763 = vpack.c.b16 %v2757, %v2756
      %v2764 = vpack.c.b16 %v2759, %v2758
      %vm2765 = vcmask 1044480
      %v2766 = vrot.slane %v2760, 3
      %v2767 = vrot.slane %v2761, 3
      %v2768 = vsel %vm2765, %v2766, %v2767
      %v2769 = vrot.slane %v2762, 3
      %v2770 = vsel %vm2765, %v2767, %v2769
      %v2771 = vrot.slane %v2763, 3
      %v2772 = vsel %vm2765, %v2769, %v2771
      %v2773 = vrot.slane %v2764, 3
      %v2774 = vsel %vm2765, %v2771, %v2773
      %v2796 = vunpack.c.l.b16 %v2724
      %v2797 = vunpack.c.l.b16 %v2725
      %v2798 = vunpack.c.l.b16 %v2726
      %v2799 = vunpack.c.l.b16 %v2727
      %v2800 = vunpack.c.l.b16 %v2728
      %v2801 = vunpack.c.l.b16 %v2729
      %v2802 = vunpack.c.l.b16 %v2730
      %v2803 = vunpack.c.l.b16 %v2731
      %v2804 = vunpack.c.l.b16 %v2732
      %v2805 = vunpack.c.l.b16 %v2733
      %v2806 = vunpack.c.l.b16 %v2734
      %v2807 = vunpack.c.l.b16 %v2735
      %v2808 = vunpack.c.l.b16 %v2736
      %v2809 = vunpack.c.l.b16 %v2737
      %v2810 = vunpack.c.l.b16 %v2738
      %v2811 = vunpack.c.l.b16 %v2739
      %v2812 = vpack.c.b16 %v2797, %v2796
      %v2813 = vpack.c.b16 %v2799, %v2798
      %v2814 = vpack.c.b16 %v2801, %v2800
      %v2815 = vpack.c.b16 %v2803, %v2802
      %v2816 = vpack.c.b16 %v2805, %v2804
      %v2817 = vpack.c.b16 %v2807, %v2806
      %v2818 = vpack.c.b16 %v2809, %v2808
      %v2819 = vpack.c.b16 %v2811, %v2810
      %2828 = vmatprep.subr.bf16.mxu0 0
      %2829 = vmatpush1.bf16.msra.mxu0 %v2812
      %2830 = vmatprep.subr.bf16.mxu0 0
      %2831 = vmatpush1.bf16.msra.mxu0 %v2813
      %2832 = vmatprep.subr.bf16.mxu0 0
      %2833 = vmatpush1.bf16.msra.mxu0 %v2814
      %2834 = vmatprep.subr.bf16.mxu0 0
      %2835 = vmatpush1.bf16.msra.mxu0 %v2815
      %2836 = vmatprep.subr.bf16.mxu0 0
      %2837 = vmatpush1.bf16.msra.mxu0 %v2816
      %2838 = vmatprep.subr.bf16.mxu0 0
      %2839 = vmatpush1.bf16.msra.mxu0 %v2817
      %2840 = vmatprep.subr.bf16.mxu0 0
      %2841 = vmatpush1.bf16.msra.mxu0 %v2818
      %2842 = vmatprep.subr.bf16.mxu0 0
      %2843 = vmatpush1.bf16.msra.mxu0 %v2819
      %2844 = vmatprep.subr.bf16.mxu0 0
      %2845 = vmatpush1.bf16.msra.mxu0 0
      %2846 = vmatprep.subr.bf16.mxu0 0
      %2847 = vmatpush1.bf16.msra.mxu0 0
      %2848 = vmatprep.subr.bf16.mxu0 0
      %2849 = vmatpush1.bf16.msra.mxu0 0
      %2850 = vmatprep.subr.bf16.mxu0 0
      %2851 = vmatpush1.bf16.msra.mxu0 0
      %2852 = vmatprep.subr.bf16.mxu0 0
      %2853 = vmatpush1.bf16.msra.mxu0 0
      %2854 = vmatprep.subr.bf16.mxu0 0
      %2855 = vmatpush1.bf16.msra.mxu0 0
      %2856 = vmatprep.subr.bf16.mxu0 0
      %2857 = vmatpush1.bf16.msra.mxu0 0
      %2858 = vmatprep.subr.bf16.mxu0 0
      %2859 = vmatpush1.bf16.msra.mxu0 0
      %2860 = vmatprep.mubr.bf16.mxu0 0
      %2861 = vmatmul.mubr.bf16.gmra.mrb[0].mxu0 %v2768
      %v2862 = vpop.f32.mrb[0].mxu0
      %v2863 = vadd.f32 0.0, %v2862
      %v2864 = vpop.f32.mrb[0].mxu0
      %v2865 = vpop.f32.mrb[0].mxu0
      %v2866 = vadd.f32 0.0, %v2865
      %v2867 = vpop.f32.mrb[0].mxu0
      %2868 = vmatprep.mubr.bf16.mxu0 0
      %2869 = vmatmul.mubr.bf16.gmra.mrb[0].mxu0 %v2770
      %v2870 = vpop.f32.mrb[0].mxu0
      %v2871 = vadd.f32 0.0, %v2870
      %v2872 = vpop.f32.mrb[0].mxu0
      %v2873 = vpop.f32.mrb[0].mxu0
      %v2874 = vadd.f32 0.0, %v2873
      %v2875 = vpop.f32.mrb[0].mxu0
      %2876 = vmatprep.mubr.bf16.mxu0 0
      %2877 = vmatmul.mubr.bf16.gmra.mrb[0].mxu0 %v2772
      %v2878 = vpop.f32.mrb[0].mxu0
      %v2879 = vadd.f32 0.0, %v2878
      %v2880 = vpop.f32.mrb[0].mxu0
      %v2881 = vpop.f32.mrb[0].mxu0
      %v2882 = vadd.f32 0.0, %v2881
      %v2883 = vpop.f32.mrb[0].mxu0
      %2884 = vmatprep.mubr.bf16.mxu0 0
      %2885 = vmatmul.mubr.bf16.gmra.mrb[0].mxu0 %v2774
      %v2886 = vpop.f32.mrb[0].mxu0
      %v2887 = vadd.f32 0.0, %v2886
      %v2888 = vpop.f32.mrb[0].mxu0
      %v2889 = vpop.f32.mrb[0].mxu0
      %v2890 = vadd.f32 0.0, %v2889
      %v2891 = vpop.f32.mrb[0].mxu0
      %2892 = vmatprep.mubr.bf16.mxu0 0
      %2893 = vmatmul.mubr.bf16.gmra.mrb[0].mxu0 %v2773
      %v2894 = vpop.f32.mrb[0].mxu0
      %v2895 = vadd.f32 0.0, %v2894
      %v2896 = vpop.f32.mrb[0].mxu0
      %v2897 = vpop.f32.mrb[0].mxu0
      %v2898 = vpop.f32.mrb[0].mxu0
      %2899 = vdwg.mxu0
      %v2900 = vadd.f32 %v2705, %v2863
      %v2901 = vadd.f32 %v2706, %v2866
      %v2902 = vadd.f32 %v2707, %v2871
      %v2903 = vadd.f32 %v2708, %v2874
      %v2904 = vadd.f32 %v2709, %v2879
      %v2905 = vadd.f32 %v2710, %v2882
      %v2906 = vadd.f32 %v2711, %v2887
      %v2907 = vadd.f32 %v2712, %v2890
      %v2908 = vadd.f32 %v2713, %v2895
      %2909 = vst [vmem:[#allocation2] sm:$0xff] %v2900
      %2910 = vst [vmem:[#allocation2 + $0x8] sm:$0xff] %v2901
      %2911 = vst [vmem:[#allocation2 + $0x10] sm:$0xff] %v2902
      %2912 = vst [vmem:[#allocation2 + $0x18] sm:$0xff] %v2903
      %2913 = vst [vmem:[#allocation2 + $0x20] sm:$0xff] %v2904
      %2914 = vst [vmem:[#allocation2 + $0x28] sm:$0xff] %v2905
      %2915 = vst [vmem:[#allocation2 + $0x30] sm:$0xff] %v2906
      %2916 = vst [vmem:[#allocation2 + $0x38] sm:$0xff] %v2907
      %2917 = vst [vmem:[#allocation2 + $0x40] sm:$0xff] %v2908
      %v2918 = vld [vmem:[#allocation2] sm:$0xff]
      %v2919 = vld [vmem:[#allocation2 + $0x8] sm:$0xff]
      %v2920 = vld [vmem:[#allocation2 + $0x10] sm:$0xff]
      %v2921 = vld [vmem:[#allocation2 + $0x18] sm:$0xff]
      %v2922 = vld [vmem:[#allocation2 + $0x20] sm:$0xff]
      %v2923 = vld [vmem:[#allocation2 + $0x28] sm:$0xff]
      %v2924 = vld [vmem:[#allocation2 + $0x30] sm:$0xff]
      %v2925 = vld [vmem:[#allocation2 + $0x38] sm:$0xff]
      %v2926 = vld [vmem:[#allocation2 + $0x40] sm:$0xff]
      %v2927 = vld [vmem:[#allocation3] sm:$0x8]
      %v2928 = vld [vmem:[#allocation3 + $0x4] sm:$0xf]
      %v2929 = vld [vmem:[#allocation3 + $0x8] sm:$0xf]
      %v2930 = vld [vmem:[#allocation3 + $0xc] sm:$0xf]
      %v2931 = vld [vmem:[#allocation3 + $0x10] sm:$0xf]
      %v2932 = vld [vmem:[#allocation3 + $0x14] sm:$0xf]
      %v2933 = vld [vmem:[#allocation3 + $0x18] sm:$0xf]
      %v2934 = vld [vmem:[#allocation3 + $0x1c] sm:$0xf]
      %v2935 = vld [vmem:[#allocation3 + $0x20] sm:$0xf]
      %v2936 = vld [vmem:[#allocation3 + $0x24] sm:$0xf]
      %s2937 = scalar_lea.vmem %s2, 64
      %v2938 = vld [vmem:[%s2937] sm:$0xf]
      %v2939 = vld [vmem:[%s2937 + $0x4] sm:$0xf]
      %v2940 = vld [vmem:[%s2937 + $0x8] sm:$0xf]
      %v2941 = vld [vmem:[%s2937 + $0xc] sm:$0xf]
      %v2942 = vld [vmem:[%s2937 + $0x10] sm:$0xf]
      %v2943 = vld [vmem:[%s2937 + $0x14] sm:$0xf]
      %v2944 = vld [vmem:[%s2937 + $0x18] sm:$0xf]
      %v2945 = vld [vmem:[%s2937 + $0x1c] sm:$0xf]
      %v2946 = vld [vmem:[%s2937 + $0x20] sm:$0xf]
      %v2947 = vld [vmem:[%s2937 + $0x24] sm:$0xf]
      %v2948 = vld [vmem:[%s2937 + $0x28] sm:$0xf]
      %v2949 = vld [vmem:[%s2937 + $0x2c] sm:$0xf]
      %v2950 = vld [vmem:[%s2937 + $0x30] sm:$0xf]
      %v2951 = vld [vmem:[%s2937 + $0x34] sm:$0xf]
      %v2952 = vld [vmem:[%s2937 + $0x38] sm:$0xf]
      %v2953 = vld [vmem:[%s2937 + $0x3c] sm:$0xf]
      %v2964 = vunpack.c.l.b16 %v2927
      %v2965 = vunpack.c.l.b16 %v2928
      %v2966 = vunpack.c.l.b16 %v2929
      %v2967 = vunpack.c.l.b16 %v2930
      %v2968 = vunpack.c.l.b16 %v2931
      %v2969 = vunpack.c.l.b16 %v2932
      %v2970 = vunpack.c.l.b16 %v2933
      %v2971 = vunpack.c.l.b16 %v2934
      %v2972 = vunpack.c.l.b16 %v2935
      %v2973 = vunpack.c.l.b16 %v2936
      %v2974 = vpack.c.b16 %v2965, %v2964
      %v2975 = vpack.c.b16 %v2967, %v2966
      %v2976 = vpack.c.b16 %v2969, %v2968
      %v2977 = vpack.c.b16 %v2971, %v2970
      %v2978 = vpack.c.b16 %v2973, %v2972
      %vm2979 = vsmask.f32 4352
      %v2981 = vshrl.u32 %v2974, 16
      %v2983 = vrot.slane %v2981, 3
      %v2984 = vshll.u32 %v2974, 16
      %v2986 = vrot.slane %v2984, 4
      %v2987 = vor.u32 %v2983, %v2986
      %v2989 = vshrl.u32 %v2975, 16
      %v2991 = vrot.slane %v2989, 3
      %v2992 = vshll.u32 %v2975, 16
      %v2994 = vrot.slane %v2992, 4
      %v2995 = vor.u32 %v2991, %v2994
      %v2996 = vsel %vm2979, %v2987, %v2995
      %v2998 = vshrl.u32 %v2976, 16
      %v3000 = vrot.slane %v2998, 3
      %v3001 = vshll.u32 %v2976, 16
      %v3003 = vrot.slane %v3001, 4
      %v3004 = vor.u32 %v3000, %v3003
      %v3005 = vsel %vm2979, %v2995, %v3004
      %v3007 = vshrl.u32 %v2977, 16
      %v3009 = vrot.slane %v3007, 3
      %v3010 = vshll.u32 %v2977, 16
      %v3012 = vrot.slane %v3010, 4
      %v3013 = vor.u32 %v3009, %v3012
      %v3014 = vsel %vm2979, %v3004, %v3013
      %v3016 = vshrl.u32 %v2978, 16
      %v3018 = vrot.slane %v3016, 3
      %v3019 = vshll.u32 %v2978, 16
      %v3021 = vrot.slane %v3019, 4
      %v3022 = vor.u32 %v3018, %v3021
      %v3023 = vsel %vm2979, %v3013, %v3022
      %v3045 = vunpack.c.l.b16 %v2938
      %v3046 = vunpack.c.l.b16 %v2939
      %v3047 = vunpack.c.l.b16 %v2940
      %v3048 = vunpack.c.l.b16 %v2941
      %v3049 = vunpack.c.l.b16 %v2942
      %v3050 = vunpack.c.l.b16 %v2943
      %v3051 = vunpack.c.l.b16 %v2944
      %v3052 = vunpack.c.l.b16 %v2945
      %v3053 = vunpack.c.l.b16 %v2946
      %v3054 = vunpack.c.l.b16 %v2947
      %v3055 = vunpack.c.l.b16 %v2948
      %v3056 = vunpack.c.l.b16 %v2949
      %v3057 = vunpack.c.l.b16 %v2950
      %v3058 = vunpack.c.l.b16 %v2951
      %v3059 = vunpack.c.l.b16 %v2952
      %v3060 = vunpack.c.l.b16 %v2953
      %v3061 = vpack.c.b16 %v3046, %v3045
      %v3062 = vpack.c.b16 %v3048, %v3047
      %v3063 = vpack.c.b16 %v3050, %v3049
      %v3064 = vpack.c.b16 %v3052, %v3051
      %v3065 = vpack.c.b16 %v3054, %v3053
      %v3066 = vpack.c.b16 %v3056, %v3055
      %v3067 = vpack.c.b16 %v3058, %v3057
      %v3068 = vpack.c.b16 %v3060, %v3059
      %3077 = vmatprep.subr.bf16.mxu0 0
      %3078 = vmatpush1.bf16.msra.mxu0 %v3061
      %3079 = vmatprep.subr.bf16.mxu0 0
      %3080 = vmatpush1.bf16.msra.mxu0 %v3062
      %3081 = vmatprep.subr.bf16.mxu0 0
      %3082 = vmatpush1.bf16.msra.mxu0 %v3063
      %3083 = vmatprep.subr.bf16.mxu0 0
      %3084 = vmatpush1.bf16.msra.mxu0 %v3064
      %3085 = vmatprep.subr.bf16.mxu0 0
      %3086 = vmatpush1.bf16.msra.mxu0 %v3065
      %3087 = vmatprep.subr.bf16.mxu0 0
      %3088 = vmatpush1.bf16.msra.mxu0 %v3066
      %3089 = vmatprep.subr.bf16.mxu0 0
      %3090 = vmatpush1.bf16.msra.mxu0 %v3067
      %3091 = vmatprep.subr.bf16.mxu0 0
      %3092 = vmatpush1.bf16.msra.mxu0 %v3068
      %3093 = vmatprep.subr.bf16.mxu0 0
      %3094 = vmatpush1.bf16.msra.mxu0 0
      %3095 = vmatprep.subr.bf16.mxu0 0
      %3096 = vmatpush1.bf16.msra.mxu0 0
      %3097 = vmatprep.subr.bf16.mxu0 0
      %3098 = vmatpush1.bf16.msra.mxu0 0
      %3099 = vmatprep.subr.bf16.mxu0 0
      %3100 = vmatpush1.bf16.msra.mxu0 0
      %3101 = vmatprep.subr.bf16.mxu0 0
      %3102 = vmatpush1.bf16.msra.mxu0 0
      %3103 = vmatprep.subr.bf16.mxu0 0
      %3104 = vmatpush1.bf16.msra.mxu0 0
      %3105 = vmatprep.subr.bf16.mxu0 0
      %3106 = vmatpush1.bf16.msra.mxu0 0
      %3107 = vmatprep.subr.bf16.mxu0 0
      %3108 = vmatpush1.bf16.msra.mxu0 0
      %3109 = vmatprep.mubr.bf16.mxu0 0
      %3110 = vmatmul.mubr.bf16.gmra.mrb[0].mxu0 %v2996
      %v3111 = vpop.f32.mrb[0].mxu0
      %v3112 = vadd.f32 0.0, %v3111
      %v3113 = vpop.f32.mrb[0].mxu0
      %v3114 = vpop.f32.mrb[0].mxu0
      %v3115 = vadd.f32 0.0, %v3114
      %v3116 = vpop.f32.mrb[0].mxu0
      %3117 = vmatprep.mubr.bf16.mxu0 0
      %3118 = vmatmul.mubr.bf16.gmra.mrb[0].mxu0 %v3005
      %v3119 = vpop.f32.mrb[0].mxu0
      %v3120 = vadd.f32 0.0, %v3119
      %v3121 = vpop.f32.mrb[0].mxu0
      %v3122 = vpop.f32.mrb[0].mxu0
      %v3123 = vadd.f32 0.0, %v3122
      %v3124 = vpop.f32.mrb[0].mxu0
      %3125 = vmatprep.mubr.bf16.mxu0 0
      %3126 = vmatmul.mubr.bf16.gmra.mrb[0].mxu0 %v3014
      %v3127 = vpop.f32.mrb[0].mxu0
      %v3128 = vadd.f32 0.0, %v3127
      %v3129 = vpop.f32.mrb[0].mxu0
      %v3130 = vpop.f32.mrb[0].mxu0
      %v3131 = vadd.f32 0.0, %v3130
      %v3132 = vpop.f32.mrb[0].mxu0
      %3133 = vmatprep.mubr.bf16.mxu0 0
      %3134 = vmatmul.mubr.bf16.gmra.mrb[0].mxu0 %v3023
      %v3135 = vpop.f32.mrb[0].mxu0
      %v3136 = vadd.f32 0.0, %v3135
      %v3137 = vpop.f32.mrb[0].mxu0
      %v3138 = vpop.f32.mrb[0].mxu0
      %v3139 = vadd.f32 0.0, %v3138
      %v3140 = vpop.f32.mrb[0].mxu0
      %3141 = vmatprep.mubr.bf16.mxu0 0
      %3142 = vmatmul.mubr.bf16.gmra.mrb[0].mxu0 %v3022
      %v3143 = vpop.f32.mrb[0].mxu0
      %v3144 = vadd.f32 0.0, %v3143
      %v3145 = vpop.f32.mrb[0].mxu0
      %v3146 = vpop.f32.mrb[0].mxu0
      %v3147 = vpop.f32.mrb[0].mxu0
      %3148 = vdwg.mxu0
      %v3149 = vadd.f32 %v2918, %v3112
      %v3150 = vadd.f32 %v2919, %v3115
      %v3151 = vadd.f32 %v2920, %v3120
      %v3152 = vadd.f32 %v2921, %v3123
      %v3153 = vadd.f32 %v2922, %v3128
      %v3154 = vadd.f32 %v2923, %v3131
      %v3155 = vadd.f32 %v2924, %v3136
      %v3156 = vadd.f32 %v2925, %v3139
      %v3157 = vadd.f32 %v2926, %v3144
      %3158 = vst [vmem:[#allocation2] sm:$0xff] %v3149
      %3159 = vst [vmem:[#allocation2 + $0x8] sm:$0xff] %v3150
      %3160 = vst [vmem:[#allocation2 + $0x10] sm:$0xff] %v3151
      %3161 = vst [vmem:[#allocation2 + $0x18] sm:$0xff] %v3152
      %3162 = vst [vmem:[#allocation2 + $0x20] sm:$0xff] %v3153
      %3163 = vst [vmem:[#allocation2 + $0x28] sm:$0xff] %v3154
      %3164 = vst [vmem:[#allocation2 + $0x30] sm:$0xff] %v3155
      %3165 = vst [vmem:[#allocation2 + $0x38] sm:$0xff] %v3156
      %3166 = vst [vmem:[#allocation2 + $0x40] sm:$0xff] %v3157
      %v3167 = vld [vmem:[#allocation2] sm:$0xff]
      %v3168 = vld [vmem:[#allocation2 + $0x8] sm:$0xff]
      %v3169 = vld [vmem:[#allocation2 + $0x10] sm:$0xff]
      %v3170 = vld [vmem:[#allocation2 + $0x18] sm:$0xff]
      %v3171 = vld [vmem:[#allocation2 + $0x20] sm:$0xff]
      %v3172 = vld [vmem:[#allocation2 + $0x28] sm:$0xff]
      %v3173 = vld [vmem:[#allocation2 + $0x30] sm:$0xff]
      %v3174 = vld [vmem:[#allocation2 + $0x38] sm:$0xff]
      %v3175 = vld [vmem:[#allocation2 + $0x40] sm:$0xff]
      %v3176 = vld [vmem:[#allocation3 + $0x4] sm:$0xf]
      %v3177 = vld [vmem:[#allocation3 + $0x8] sm:$0xf]
      %v3178 = vld [vmem:[#allocation3 + $0xc] sm:$0xf]
      %v3179 = vld [vmem:[#allocation3 + $0x10] sm:$0xf]
      %v3180 = vld [vmem:[#allocation3 + $0x14] sm:$0xf]
      %v3181 = vld [vmem:[#allocation3 + $0x18] sm:$0xf]
      %v3182 = vld [vmem:[#allocation3 + $0x1c] sm:$0xf]
      %v3183 = vld [vmem:[#allocation3 + $0x20] sm:$0xf]
      %v3184 = vld [vmem:[#allocation3 + $0x24] sm:$0xf]
      %s3185 = scalar_lea.vmem %s2, 128
      %v3186 = vld [vmem:[%s3185] sm:$0xf]
      %v3187 = vld [vmem:[%s3185 + $0x4] sm:$0xf]
      %v3188 = vld [vmem:[%s3185 + $0x8] sm:$0xf]
      %v3189 = vld [vmem:[%s3185 + $0xc] sm:$0xf]
      %v3190 = vld [vmem:[%s3185 + $0x10] sm:$0xf]
      %v3191 = vld [vmem:[%s3185 + $0x14] sm:$0xf]
      %v3192 = vld [vmem:[%s3185 + $0x18] sm:$0xf]
      %v3193 = vld [vmem:[%s3185 + $0x1c] sm:$0xf]
      %v3194 = vld [vmem:[%s3185 + $0x20] sm:$0xf]
      %v3195 = vld [vmem:[%s3185 + $0x24] sm:$0xf]
      %v3196 = vld [vmem:[%s3185 + $0x28] sm:$0xf]
      %v3197 = vld [vmem:[%s3185 + $0x2c] sm:$0xf]
      %v3198 = vld [vmem:[%s3185 + $0x30] sm:$0xf]
      %v3199 = vld [vmem:[%s3185 + $0x34] sm:$0xf]
      %v3200 = vld [vmem:[%s3185 + $0x38] sm:$0xf]
      %v3201 = vld [vmem:[%s3185 + $0x3c] sm:$0xf]
      %v3211 = vunpack.c.l.b16 %v3176
      %v3212 = vunpack.c.l.b16 %v3177
      %v3213 = vunpack.c.l.b16 %v3178
      %v3214 = vunpack.c.l.b16 %v3179
      %v3215 = vunpack.c.l.b16 %v3180
      %v3216 = vunpack.c.l.b16 %v3181
      %v3217 = vunpack.c.l.b16 %v3182
      %v3218 = vunpack.c.l.b16 %v3183
      %v3219 = vunpack.c.l.b16 %v3184
      %v3220 = vpack.c.b16 %v3212, %v3211
      %v3221 = vpack.c.b16 %v3214, %v3213
      %v3222 = vpack.c.b16 %v3216, %v3215
      %v3223 = vpack.c.b16 %v3218, %v3217
      %v3224 = vpack.c.b16 %v3219, %v3219
      %v3246 = vunpack.c.l.b16 %v3186
      %v3247 = vunpack.c.l.b16 %v3187
      %v3248 = vunpack.c.l.b16 %v3188
      %v3249 = vunpack.c.l.b16 %v3189
      %v3250 = vunpack.c.l.b16 %v3190
      %v3251 = vunpack.c.l.b16 %v3191
      %v3252 = vunpack.c.l.b16 %v3192
      %v3253 = vunpack.c.l.b16 %v3193
      %v3254 = vunpack.c.l.b16 %v3194
      %v3255 = vunpack.c.l.b16 %v3195
      %v3256 = vunpack.c.l.b16 %v3196
      %v3257 = vunpack.c.l.b16 %v3197
      %v3258 = vunpack.c.l.b16 %v3198
      %v3259 = vunpack.c.l.b16 %v3199
      %v3260 = vunpack.c.l.b16 %v3200
      %v3261 = vunpack.c.l.b16 %v3201
      %v3262 = vpack.c.b16 %v3247, %v3246
      %v3263 = vpack.c.b16 %v3249, %v3248
      %v3264 = vpack.c.b16 %v3251, %v3250
      %v3265 = vpack.c.b16 %v3253, %v3252
      %v3266 = vpack.c.b16 %v3255, %v3254
      %v3267 = vpack.c.b16 %v3257, %v3256
      %v3268 = vpack.c.b16 %v3259, %v3258
      %v3269 = vpack.c.b16 %v3261, %v3260
      %3278 = vmatprep.subr.bf16.mxu0 0
      %3279 = vmatpush1.bf16.msra.mxu0 %v3262
      %3280 = vmatprep.subr.bf16.mxu0 0
      %3281 = vmatpush1.bf16.msra.mxu0 %v3263
      %3282 = vmatprep.subr.bf16.mxu0 0
      %3283 = vmatpush1.bf16.msra.mxu0 %v3264
      %3284 = vmatprep.subr.bf16.mxu0 0
      %3285 = vmatpush1.bf16.msra.mxu0 %v3265
      %3286 = vmatprep.subr.bf16.mxu0 0
      %3287 = vmatpush1.bf16.msra.mxu0 %v3266
      %3288 = vmatprep.subr.bf16.mxu0 0
      %3289 = vmatpush1.bf16.msra.mxu0 %v3267
      %3290 = vmatprep.subr.bf16.mxu0 0
      %3291 = vmatpush1.bf16.msra.mxu0 %v3268
      %3292 = vmatprep.subr.bf16.mxu0 0
      %3293 = vmatpush1.bf16.msra.mxu0 %v3269
      %3294 = vmatprep.subr.bf16.mxu0 0
      %3295 = vmatpush1.bf16.msra.mxu0 0
      %3296 = vmatprep.subr.bf16.mxu0 0
      %3297 = vmatpush1.bf16.msra.mxu0 0
      %3298 = vmatprep.subr.bf16.mxu0 0
      %3299 = vmatpush1.bf16.msra.mxu0 0
      %3300 = vmatprep.subr.bf16.mxu0 0
      %3301 = vmatpush1.bf16.msra.mxu0 0
      %3302 = vmatprep.subr.bf16.mxu0 0
      %3303 = vmatpush1.bf16.msra.mxu0 0
      %3304 = vmatprep.subr.bf16.mxu0 0
      %3305 = vmatpush1.bf16.msra.mxu0 0
      %3306 = vmatprep.subr.bf16.mxu0 0
      %3307 = vmatpush1.bf16.msra.mxu0 0
      %3308 = vmatprep.subr.bf16.mxu0 0
      %3309 = vmatpush1.bf16.msra.mxu0 0
      %3310 = vmatprep.mubr.bf16.mxu0 0
      %3311 = vmatmul.mubr.bf16.gmra.mrb[0].mxu0 %v3220
      %v3312 = vpop.f32.mrb[0].mxu0
      %v3313 = vadd.f32 0.0, %v3312
      %v3314 = vpop.f32.mrb[0].mxu0
      %v3315 = vpop.f32.mrb[0].mxu0
      %v3316 = vadd.f32 0.0, %v3315
      %v3317 = vpop.f32.mrb[0].mxu0
      %3318 = vmatprep.mubr.bf16.mxu0 0
      %3319 = vmatmul.mubr.bf16.gmra.mrb[0].mxu0 %v3221
      %v3320 = vpop.f32.mrb[0].mxu0
      %v3321 = vadd.f32 0.0, %v3320
      %v3322 = vpop.f32.mrb[0].mxu0
      %v3323 = vpop.f32.mrb[0].mxu0
      %v3324 = vadd.f32 0.0, %v3323
      %v3325 = vpop.f32.mrb[0].mxu0
      %3326 = vmatprep.mubr.bf16.mxu0 0
      %3327 = vmatmul.mubr.bf16.gmra.mrb[0].mxu0 %v3222
      %v3328 = vpop.f32.mrb[0].mxu0
      %v3329 = vadd.f32 0.0, %v3328
      %v3330 = vpop.f32.mrb[0].mxu0
      %v3331 = vpop.f32.mrb[0].mxu0
      %v3332 = vadd.f32 0.0, %v3331
      %v3333 = vpop.f32.mrb[0].mxu0
      %3334 = vmatprep.mubr.bf16.mxu0 0
      %3335 = vmatmul.mubr.bf16.gmra.mrb[0].mxu0 %v3223
      %v3336 = vpop.f32.mrb[0].mxu0
      %v3337 = vadd.f32 0.0, %v3336
      %v3338 = vpop.f32.mrb[0].mxu0
      %v3339 = vpop.f32.mrb[0].mxu0
      %v3340 = vadd.f32 0.0, %v3339
      %v3341 = vpop.f32.mrb[0].mxu0
      %3342 = vmatprep.mubr.bf16.mxu0 0
      %3343 = vmatmul.mubr.bf16.gmra.mrb[0].mxu0 %v3224
      %v3344 = vpop.f32.mrb[0].mxu0
      %v3345 = vadd.f32 0.0, %v3344
      %v3346 = vpop.f32.mrb[0].mxu0
      %v3347 = vpop.f32.mrb[0].mxu0
      %v3348 = vpop.f32.mrb[0].mxu0
      %3349 = vdwg.mxu0
      %v3350 = vadd.f32 %v3167, %v3313
      %v3351 = vadd.f32 %v3168, %v3316
      %v3352 = vadd.f32 %v3169, %v3321
      %v3353 = vadd.f32 %v3170, %v3324
      %v3354 = vadd.f32 %v3171, %v3329
      %v3355 = vadd.f32 %v3172, %v3332
      %v3356 = vadd.f32 %v3173, %v3337
      %v3357 = vadd.f32 %v3174, %v3340
      %v3358 = vadd.f32 %v3175, %v3345
      %3359 = vst [vmem:[#allocation2] sm:$0xff] %v3350
      %3360 = vst [vmem:[#allocation2 + $0x8] sm:$0xff] %v3351
      %3361 = vst [vmem:[#allocation2 + $0x10] sm:$0xff] %v3352
      %3362 = vst [vmem:[#allocation2 + $0x18] sm:$0xff] %v3353
      %3363 = vst [vmem:[#allocation2 + $0x20] sm:$0xff] %v3354
      %3364 = vst [vmem:[#allocation2 + $0x28] sm:$0xff] %v3355
      %3365 = vst [vmem:[#allocation2 + $0x30] sm:$0xff] %v3356
      %3366 = vst [vmem:[#allocation2 + $0x38] sm:$0xff] %v3357
      %3367 = vst [vmem:[#allocation2 + $0x40] sm:$0xff] %v3358
      %v3368 = vld [vmem:[#allocation2] sm:$0xff]
      %v3369 = vld [vmem:[#allocation2 + $0x8] sm:$0xff]
      %v3370 = vld [vmem:[#allocation2 + $0x10] sm:$0xff]
      %v3371 = vld [vmem:[#allocation2 + $0x18] sm:$0xff]
      %v3372 = vld [vmem:[#allocation2 + $0x20] sm:$0xff]
      %v3373 = vld [vmem:[#allocation2 + $0x28] sm:$0xff]
      %v3374 = vld [vmem:[#allocation2 + $0x30] sm:$0xff]
      %v3375 = vld [vmem:[#allocation2 + $0x38] sm:$0xff]
      %v3376 = vld [vmem:[#allocation2 + $0x40] sm:$0xff]
      %v3377 = vld [vmem:[#allocation3 + $0x4] sm:$0x8]
      %v3378 = vld [vmem:[#allocation3 + $0x8] sm:$0xf]
      %v3379 = vld [vmem:[#allocation3 + $0xc] sm:$0xf]
      %v3380 = vld [vmem:[#allocation3 + $0x10] sm:$0xf]
      %v3381 = vld [vmem:[#allocation3 + $0x14] sm:$0xf]
      %v3382 = vld [vmem:[#allocation3 + $0x18] sm:$0xf]
      %v3383 = vld [vmem:[#allocation3 + $0x1c] sm:$0xf]
      %v3384 = vld [vmem:[#allocation3 + $0x20] sm:$0xf]
      %v3385 = vld [vmem:[#allocation3 + $0x24] sm:$0xf]
      %v3386 = vld [vmem:[#allocation3 + $0x28] sm:$0xf]
      %s3387 = scalar_lea.vmem %s2, 192
      %v3388 = vld [vmem:[%s3387] sm:$0xf]
      %v3389 = vld [vmem:[%s3387 + $0x4] sm:$0xf]
      %v3390 = vld [vmem:[%s3387 + $0x8] sm:$0xf]
      %v3391 = vld [vmem:[%s3387 + $0xc] sm:$0xf]
      %v3392 = vld [vmem:[%s3387 + $0x10] sm:$0xf]
      %v3393 = vld [vmem:[%s3387 + $0x14] sm:$0xf]
      %v3394 = vld [vmem:[%s3387 + $0x18] sm:$0xf]
      %v3395 = vld [vmem:[%s3387 + $0x1c] sm:$0xf]
      %v3396 = vld [vmem:[%s3387 + $0x20] sm:$0xf]
      %v3397 = vld [vmem:[%s3387 + $0x24] sm:$0xf]
      %v3398 = vld [vmem:[%s3387 + $0x28] sm:$0xf]
      %v3399 = vld [vmem:[%s3387 + $0x2c] sm:$0xf]
      %v3400 = vld [vmem:[%s3387 + $0x30] sm:$0xf]
      %v3401 = vld [vmem:[%s3387 + $0x34] sm:$0xf]
      %v3402 = vld [vmem:[%s3387 + $0x38] sm:$0xf]
      %v3403 = vld [vmem:[%s3387 + $0x3c] sm:$0xf]
      %v3414 = vunpack.c.l.b16 %v3377
      %v3415 = vunpack.c.l.b16 %v3378
      %v3416 = vunpack.c.l.b16 %v3379
      %v3417 = vunpack.c.l.b16 %v3380
      %v3418 = vunpack.c.l.b16 %v3381
      %v3419 = vunpack.c.l.b16 %v3382
      %v3420 = vunpack.c.l.b16 %v3383
      %v3421 = vunpack.c.l.b16 %v3384
      %v3422 = vunpack.c.l.b16 %v3385
      %v3423 = vunpack.c.l.b16 %v3386
      %v3424 = vpack.c.b16 %v3415, %v3414
      %v3425 = vpack.c.b16 %v3417, %v3416
      %v3426 = vpack.c.b16 %v3419, %v3418
      %v3427 = vpack.c.b16 %v3421, %v3420
      %v3428 = vpack.c.b16 %v3423, %v3422
      %v3430 = vshrl.u32 %v3424, 16
      %v3432 = vrot.slane %v3430, 3
      %v3433 = vshll.u32 %v3424, 16
      %v3435 = vrot.slane %v3433, 4
      %v3436 = vor.u32 %v3432, %v3435
      %v3438 = vshrl.u32 %v3425, 16
      %v3440 = vrot.slane %v3438, 3
      %v3441 = vshll.u32 %v3425, 16
      %v3443 = vrot.slane %v3441, 4
      %v3444 = vor.u32 %v3440, %v3443
      %v3445 = vsel %vm2979, %v3436, %v3444
      %v3447 = vshrl.u32 %v3426, 16
      %v3449 = vrot.slane %v3447, 3
      %v3450 = vshll.u32 %v3426, 16
      %v3452 = vrot.slane %v3450, 4
      %v3453 = vor.u32 %v3449, %v3452
      %v3454 = vsel %vm2979, %v3444, %v3453
      %v3456 = vshrl.u32 %v3427, 16
      %v3458 = vrot.slane %v3456, 3
      %v3459 = vshll.u32 %v3427, 16
      %v3461 = vrot.slane %v3459, 4
      %v3462 = vor.u32 %v3458, %v3461
      %v3463 = vsel %vm2979, %v3453, %v3462
      %v3465 = vshrl.u32 %v3428, 16
      %v3467 = vrot.slane %v3465, 3
      %v3468 = vshll.u32 %v3428, 16
      %v3470 = vrot.slane %v3468, 4
      %v3471 = vor.u32 %v3467, %v3470
      %v3472 = vsel %vm2979, %v3462, %v3471
      %v3494 = vunpack.c.l.b16 %v3388
      %v3495 = vunpack.c.l.b16 %v3389
      %v3496 = vunpack.c.l.b16 %v3390
      %v3497 = vunpack.c.l.b16 %v3391
      %v3498 = vunpack.c.l.b16 %v3392
      %v3499 = vunpack.c.l.b16 %v3393
      %v3500 = vunpack.c.l.b16 %v3394
      %v3501 = vunpack.c.l.b16 %v3395
      %v3502 = vunpack.c.l.b16 %v3396
      %v3503 = vunpack.c.l.b16 %v3397
      %v3504 = vunpack.c.l.b16 %v3398
      %v3505 = vunpack.c.l.b16 %v3399
      %v3506 = vunpack.c.l.b16 %v3400
      %v3507 = vunpack.c.l.b16 %v3401
      %v3508 = vunpack.c.l.b16 %v3402
      %v3509 = vunpack.c.l.b16 %v3403
      %v3510 = vpack.c.b16 %v3495, %v3494
      %v3511 = vpack.c.b16 %v3497, %v3496
      %v3512 = vpack.c.b16 %v3499, %v3498
      %v3513 = vpack.c.b16 %v3501, %v3500
      %v3514 = vpack.c.b16 %v3503, %v3502
      %v3515 = vpack.c.b16 %v3505, %v3504
      %v3516 = vpack.c.b16 %v3507, %v3506
      %v3517 = vpack.c.b16 %v3509, %v3508
      %3526 = vmatprep.subr.bf16.mxu0 0
      %3527 = vmatpush1.bf16.msra.mxu0 %v3510
      %3528 = vmatprep.subr.bf16.mxu0 0
      %3529 = vmatpush1.bf16.msra.mxu0 %v3511
      %3530 = vmatprep.subr.bf16.mxu0 0
      %3531 = vmatpush1.bf16.msra.mxu0 %v3512
      %3532 = vmatprep.subr.bf16.mxu0 0
      %3533 = vmatpush1.bf16.msra.mxu0 %v3513
      %3534 = vmatprep.subr.bf16.mxu0 0
      %3535 = vmatpush1.bf16.msra.mxu0 %v3514
      %3536 = vmatprep.subr.bf16.mxu0 0
      %3537 = vmatpush1.bf16.msra.mxu0 %v3515
      %3538 = vmatprep.subr.bf16.mxu0 0
      %3539 = vmatpush1.bf16.msra.mxu0 %v3516
      %3540 = vmatprep.subr.bf16.mxu0 0
      %3541 = vmatpush1.bf16.msra.mxu0 %v3517
      %3542 = vmatprep.subr.bf16.mxu0 0
      %3543 = vmatpush1.bf16.msra.mxu0 0
      %3544 = vmatprep.subr.bf16.mxu0 0
      %3545 = vmatpush1.bf16.msra.mxu0 0
      %3546 = vmatprep.subr.bf16.mxu0 0
      %3547 = vmatpush1.bf16.msra.mxu0 0
      %3548 = vmatprep.subr.bf16.mxu0 0
      %3549 = vmatpush1.bf16.msra.mxu0 0
      %3550 = vmatprep.subr.bf16.mxu0 0
      %3551 = vmatpush1.bf16.msra.mxu0 0
      %3552 = vmatprep.subr.bf16.mxu0 0
      %3553 = vmatpush1.bf16.msra.mxu0 0
      %3554 = vmatprep.subr.bf16.mxu0 0
      %3555 = vmatpush1.bf16.msra.mxu0 0
      %3556 = vmatprep.subr.bf16.mxu0 0
      %3557 = vmatpush1.bf16.msra.mxu0 0
      %3558 = vmatprep.mubr.bf16.mxu0 0
      %3559 = vmatmul.mubr.bf16.gmra.mrb[0].mxu0 %v3445
      %v3560 = vpop.f32.mrb[0].mxu0
      %v3561 = vadd.f32 0.0, %v3560
      %v3562 = vpop.f32.mrb[0].mxu0
      %v3563 = vpop.f32.mrb[0].mxu0
      %v3564 = vadd.f32 0.0, %v3563
      %v3565 = vpop.f32.mrb[0].mxu0
      %3566 = vmatprep.mubr.bf16.mxu0 0
      %3567 = vmatmul.mubr.bf16.gmra.mrb[0].mxu0 %v3454
      %v3568 = vpop.f32.mrb[0].mxu0
      %v3569 = vadd.f32 0.0, %v3568
      %v3570 = vpop.f32.mrb[0].mxu0
      %v3571 = vpop.f32.mrb[0].mxu0
      %v3572 = vadd.f32 0.0, %v3571
      %v3573 = vpop.f32.mrb[0].mxu0
      %3574 = vmatprep.mubr.bf16.mxu0 0
      %3575 = vmatmul.mubr.bf16.gmra.mrb[0].mxu0 %v3463
      %v3576 = vpop.f32.mrb[0].mxu0
      %v3577 = vadd.f32 0.0, %v3576
      %v3578 = vpop.f32.mrb[0].mxu0
      %v3579 = vpop.f32.mrb[0].mxu0
      %v3580 = vadd.f32 0.0, %v3579
      %v3581 = vpop.f32.mrb[0].mxu0
      %3582 = vmatprep.mubr.bf16.mxu0 0
      %3583 = vmatmul.mubr.bf16.gmra.mrb[0].mxu0 %v3472
      %v3584 = vpop.f32.mrb[0].mxu0
      %v3585 = vadd.f32 0.0, %v3584
      %v3586 = vpop.f32.mrb[0].mxu0
      %v3587 = vpop.f32.mrb[0].mxu0
      %v3588 = vadd.f32 0.0, %v3587
      %v3589 = vpop.f32.mrb[0].mxu0
      %3590 = vmatprep.mubr.bf16.mxu0 0
      %3591 = vmatmul.mubr.bf16.gmra.mrb[0].mxu0 %v3471
      %v3592 = vpop.f32.mrb[0].mxu0
      %v3593 = vadd.f32 0.0, %v3592
      %v3594 = vpop.f32.mrb[0].mxu0
      %v3595 = vpop.f32.mrb[0].mxu0
      %v3596 = vpop.f32.mrb[0].mxu0
      %3597 = vdwg.mxu0
      %v3598 = vadd.f32 %v3368, %v3561
      %v3599 = vadd.f32 %v3369, %v3564
      %v3600 = vadd.f32 %v3370, %v3569
      %v3601 = vadd.f32 %v3371, %v3572
      %v3602 = vadd.f32 %v3372, %v3577
      %v3603 = vadd.f32 %v3373, %v3580
      %v3604 = vadd.f32 %v3374, %v3585
      %v3605 = vadd.f32 %v3375, %v3588
      %v3606 = vadd.f32 %v3376, %v3593
      %3607 = vst [vmem:[#allocation2] sm:$0xff] %v3598
      %3608 = vst [vmem:[#allocation2 + $0x8] sm:$0xff] %v3599
      %3609 = vst [vmem:[#allocation2 + $0x10] sm:$0xff] %v3600
      %3610 = vst [vmem:[#allocation2 + $0x18] sm:$0xff] %v3601
      %3611 = vst [vmem:[#allocation2 + $0x20] sm:$0xff] %v3602
      %3612 = vst [vmem:[#allocation2 + $0x28] sm:$0xff] %v3603
      %3613 = vst [vmem:[#allocation2 + $0x30] sm:$0xff] %v3604
      %3614 = vst [vmem:[#allocation2 + $0x38] sm:$0xff] %v3605
      %3615 = vst [vmem:[#allocation2 + $0x40] sm:$0xff] %v3606
      %v3616 = vld [vmem:[#allocation2] sm:$0xff]
      %v3617 = vld [vmem:[#allocation2 + $0x8] sm:$0xff]
      %v3618 = vld [vmem:[#allocation2 + $0x10] sm:$0xff]
      %v3619 = vld [vmem:[#allocation2 + $0x18] sm:$0xff]
      %v3620 = vld [vmem:[#allocation2 + $0x20] sm:$0xff]
      %v3621 = vld [vmem:[#allocation2 + $0x28] sm:$0xff]
      %v3622 = vld [vmem:[#allocation2 + $0x30] sm:$0xff]
      %v3623 = vld [vmem:[#allocation2 + $0x38] sm:$0xff]
      %v3624 = vld [vmem:[#allocation2 + $0x40] sm:$0xff]
      %v3625 = vld [vmem:[#allocation3 + $0x8] sm:$0xf]
      %v3626 = vld [vmem:[#allocation3 + $0xc] sm:$0xf]
      %v3627 = vld [vmem:[#allocation3 + $0x10] sm:$0xf]
      %v3628 = vld [vmem:[#allocation3 + $0x14] sm:$0xf]
      %v3629 = vld [vmem:[#allocation3 + $0x18] sm:$0xf]
      %v3630 = vld [vmem:[#allocation3 + $0x1c] sm:$0xf]
      %v3631 = vld [vmem:[#allocation3 + $0x20] sm:$0xf]
      %v3632 = vld [vmem:[#allocation3 + $0x24] sm:$0xf]
      %v3633 = vld [vmem:[#allocation3 + $0x28] sm:$0xf]
      %s3634 = scalar_lea.vmem %s2, 256
      %v3635 = vld [vmem:[%s3634] sm:$0xf]
      %v3636 = vld [vmem:[%s3634 + $0x4] sm:$0xf]
      %v3637 = vld [vmem:[%s3634 + $0x8] sm:$0xf]
      %v3638 = vld [vmem:[%s3634 + $0xc] sm:$0xf]
      %v3639 = vld [vmem:[%s3634 + $0x10] sm:$0xf]
      %v3640 = vld [vmem:[%s3634 + $0x14] sm:$0xf]
      %v3641 = vld [vmem:[%s3634 + $0x18] sm:$0xf]
      %v3642 = vld [vmem:[%s3634 + $0x1c] sm:$0xf]
      %v3643 = vld [vmem:[%s3634 + $0x20] sm:$0xf]
      %v3644 = vld [vmem:[%s3634 + $0x24] sm:$0xf]
      %v3645 = vld [vmem:[%s3634 + $0x28] sm:$0xf]
      %v3646 = vld [vmem:[%s3634 + $0x2c] sm:$0xf]
      %v3647 = vld [vmem:[%s3634 + $0x30] sm:$0xf]
      %v3648 = vld [vmem:[%s3634 + $0x34] sm:$0xf]
      %v3649 = vld [vmem:[%s3634 + $0x38] sm:$0xf]
      %v3650 = vld [vmem:[%s3634 + $0x3c] sm:$0xf]
      %v3660 = vunpack.c.l.b16 %v3625
      %v3661 = vunpack.c.l.b16 %v3626
      %v3662 = vunpack.c.l.b16 %v3627
      %v3663 = vunpack.c.l.b16 %v3628
      %v3664 = vunpack.c.l.b16 %v3629
      %v3665 = vunpack.c.l.b16 %v3630
      %v3666 = vunpack.c.l.b16 %v3631
      %v3667 = vunpack.c.l.b16 %v3632
      %v3668 = vunpack.c.l.b16 %v3633
      %v3669 = vpack.c.b16 %v3661, %v3660
      %v3670 = vpack.c.b16 %v3663, %v3662
      %v3671 = vpack.c.b16 %v3665, %v3664
      %v3672 = vpack.c.b16 %v3667, %v3666
      %v3673 = vpack.c.b16 %v3668, %v3668
      %v3695 = vunpack.c.l.b16 %v3635
      %v3696 = vunpack.c.l.b16 %v3636
      %v3697 = vunpack.c.l.b16 %v3637
      %v3698 = vunpack.c.l.b16 %v3638
      %v3699 = vunpack.c.l.b16 %v3639
      %v3700 = vunpack.c.l.b16 %v3640
      %v3701 = vunpack.c.l.b16 %v3641
      %v3702 = vunpack.c.l.b16 %v3642
      %v3703 = vunpack.c.l.b16 %v3643
      %v3704 = vunpack.c.l.b16 %v3644
      %v3705 = vunpack.c.l.b16 %v3645
      %v3706 = vunpack.c.l.b16 %v3646
      %v3707 = vunpack.c.l.b16 %v3647
      %v3708 = vunpack.c.l.b16 %v3648
      %v3709 = vunpack.c.l.b16 %v3649
      %v3710 = vunpack.c.l.b16 %v3650
      %v3711 = vpack.c.b16 %v3696, %v3695
      %v3712 = vpack.c.b16 %v3698, %v3697
      %v3713 = vpack.c.b16 %v3700, %v3699
      %v3714 = vpack.c.b16 %v3702, %v3701
      %v3715 = vpack.c.b16 %v3704, %v3703
      %v3716 = vpack.c.b16 %v3706, %v3705
      %v3717 = vpack.c.b16 %v3708, %v3707
      %v3718 = vpack.c.b16 %v3710, %v3709
      %3727 = vmatprep.subr.bf16.mxu0 0
      %3728 = vmatpush1.bf16.msra.mxu0 %v3711
      %3729 = vmatprep.subr.bf16.mxu0 0
      %3730 = vmatpush1.bf16.msra.mxu0 %v3712
      %3731 = vmatprep.subr.bf16.mxu0 0
      %3732 = vmatpush1.bf16.msra.mxu0 %v3713
      %3733 = vmatprep.subr.bf16.mxu0 0
      %3734 = vmatpush1.bf16.msra.mxu0 %v3714
      %3735 = vmatprep.subr.bf16.mxu0 0
      %3736 = vmatpush1.bf16.msra.mxu0 %v3715
      %3737 = vmatprep.subr.bf16.mxu0 0
      %3738 = vmatpush1.bf16.msra.mxu0 %v3716
      %3739 = vmatprep.subr.bf16.mxu0 0
      %3740 = vmatpush1.bf16.msra.mxu0 %v3717
      %3741 = vmatprep.subr.bf16.mxu0 0
      %3742 = vmatpush1.bf16.msra.mxu0 %v3718
      %3743 = vmatprep.subr.bf16.mxu0 0
      %3744 = vmatpush1.bf16.msra.mxu0 0
      %3745 = vmatprep.subr.bf16.mxu0 0
      %3746 = vmatpush1.bf16.msra.mxu0 0
      %3747 = vmatprep.subr.bf16.mxu0 0
      %3748 = vmatpush1.bf16.msra.mxu0 0
      %3749 = vmatprep.subr.bf16.mxu0 0
      %3750 = vmatpush1.bf16.msra.mxu0 0
      %3751 = vmatprep.subr.bf16.mxu0 0
      %3752 = vmatpush1.bf16.msra.mxu0 0
      %3753 = vmatprep.subr.bf16.mxu0 0
      %3754 = vmatpush1.bf16.msra.mxu0 0
      %3755 = vmatprep.subr.bf16.mxu0 0
      %3756 = vmatpush1.bf16.msra.mxu0 0
      %3757 = vmatprep.subr.bf16.mxu0 0
      %3758 = vmatpush1.bf16.msra.mxu0 0
      %3759 = vmatprep.mubr.bf16.mxu0 0
      %3760 = vmatmul.mubr.bf16.gmra.mrb[0].mxu0 %v3669
      %v3761 = vpop.f32.mrb[0].mxu0
      %v3762 = vadd.f32 0.0, %v3761
      %v3763 = vpop.f32.mrb[0].mxu0
      %v3764 = vpop.f32.mrb[0].mxu0
      %v3765 = vadd.f32 0.0, %v3764
      %v3766 = vpop.f32.mrb[0].mxu0
      %3767 = vmatprep.mubr.bf16.mxu0 0
      %3768 = vmatmul.mubr.bf16.gmra.mrb[0].mxu0 %v3670
      %v3769 = vpop.f32.mrb[0].mxu0
      %v3770 = vadd.f32 0.0, %v3769
      %v3771 = vpop.f32.mrb[0].mxu0
      %v3772 = vpop.f32.mrb[0].mxu0
      %v3773 = vadd.f32 0.0, %v3772
      %v3774 = vpop.f32.mrb[0].mxu0
      %3775 = vmatprep.mubr.bf16.mxu0 0
      %3776 = vmatmul.mubr.bf16.gmra.mrb[0].mxu0 %v3671
      %v3777 = vpop.f32.mrb[0].mxu0
      %v3778 = vadd.f32 0.0, %v3777
      %v3779 = vpop.f32.mrb[0].mxu0
      %v3780 = vpop.f32.mrb[0].mxu0
      %v3781 = vadd.f32 0.0, %v3780
      %v3782 = vpop.f32.mrb[0].mxu0
      %3783 = vmatprep.mubr.bf16.mxu0 0
      %3784 = vmatmul.mubr.bf16.gmra.mrb[0].mxu0 %v3672
      %v3785 = vpop.f32.mrb[0].mxu0
      %v3786 = vadd.f32 0.0, %v3785
      %v3787 = vpop.f32.mrb[0].mxu0
      %v3788 = vpop.f32.mrb[0].mxu0
      %v3789 = vadd.f32 0.0, %v3788
      %v3790 = vpop.f32.mrb[0].mxu0
      %3791 = vmatprep.mubr.bf16.mxu0 0
      %3792 = vmatmul.mubr.bf16.gmra.mrb[0].mxu0 %v3673
      %v3793 = vpop.f32.mrb[0].mxu0
      %v3794 = vadd.f32 0.0, %v3793
      %v3795 = vpop.f32.mrb[0].mxu0
      %v3796 = vpop.f32.mrb[0].mxu0
      %v3797 = vpop.f32.mrb[0].mxu0
      %3798 = vdwg.mxu0
      %v3799 = vadd.f32 %v3616, %v3762
      %v3800 = vadd.f32 %v3617, %v3765
      %v3801 = vadd.f32 %v3618, %v3770
      %v3802 = vadd.f32 %v3619, %v3773
      %v3803 = vadd.f32 %v3620, %v3778
      %v3804 = vadd.f32 %v3621, %v3781
      %v3805 = vadd.f32 %v3622, %v3786
      %v3806 = vadd.f32 %v3623, %v3789
      %v3807 = vadd.f32 %v3624, %v3794
      %3808 = vst [vmem:[#allocation2] sm:$0xff] %v3799
      %3809 = vst [vmem:[#allocation2 + $0x8] sm:$0xff] %v3800
      %3810 = vst [vmem:[#allocation2 + $0x10] sm:$0xff] %v3801
      %3811 = vst [vmem:[#allocation2 + $0x18] sm:$0xff] %v3802
      %3812 = vst [vmem:[#allocation2 + $0x20] sm:$0xff] %v3803
      %3813 = vst [vmem:[#allocation2 + $0x28] sm:$0xff] %v3804
      %3814 = vst [vmem:[#allocation2 + $0x30] sm:$0xff] %v3805
      %3815 = vst [vmem:[#allocation2 + $0x38] sm:$0xff] %v3806
      %3816 = vst [vmem:[#allocation2 + $0x40] sm:$0xff] %v3807
      %v3817 = vld [vmem:[#allocation2] sm:$0xff]
      %v3818 = vld [vmem:[#allocation2 + $0x8] sm:$0xff]
      %v3819 = vld [vmem:[#allocation2 + $0x10] sm:$0xff]
      %v3820 = vld [vmem:[#allocation2 + $0x18] sm:$0xff]
      %v3821 = vld [vmem:[#allocation2 + $0x20] sm:$0xff]
      %v3822 = vld [vmem:[#allocation2 + $0x28] sm:$0xff]
      %v3823 = vld [vmem:[#allocation2 + $0x30] sm:$0xff]
      %v3824 = vld [vmem:[#allocation2 + $0x38] sm:$0xff]
      %v3825 = vld [vmem:[#allocation2 + $0x40] sm:$0xff]
      %v3826 = vld [vmem:[#allocation3 + $0x8] sm:$0xf]
      %v3827 = vld [vmem:[#allocation3 + $0xc] sm:$0xf]
      %v3828 = vld [vmem:[#allocation3 + $0x10] sm:$0xf]
      %v3829 = vld [vmem:[#allocation3 + $0x14] sm:$0xf]
      %v3830 = vld [vmem:[#allocation3 + $0x18] sm:$0xf]
      %v3831 = vld [vmem:[#allocation3 + $0x1c] sm:$0xf]
      %v3832 = vld [vmem:[#allocation3 + $0x20] sm:$0xf]
      %v3833 = vld [vmem:[#allocation3 + $0x24] sm:$0xf]
      %v3834 = vld [vmem:[#allocation3 + $0x28] sm:$0xf]
      %v3835 = vld [vmem:[#allocation3 + $0x2c] sm:$0x1]
      %s3836 = scalar_lea.vmem %s2, 320
      %v3837 = vld [vmem:[%s3836] sm:$0xf]
      %v3838 = vld [vmem:[%s3836 + $0x4] sm:$0xf]
      %v3839 = vld [vmem:[%s3836 + $0x8] sm:$0xf]
      %v3840 = vld [vmem:[%s3836 + $0xc] sm:$0xf]
      %v3841 = vld [vmem:[%s3836 + $0x10] sm:$0xf]
      %v3842 = vld [vmem:[%s3836 + $0x14] sm:$0xf]
      %v3843 = vld [vmem:[%s3836 + $0x18] sm:$0xf]
      %v3844 = vld [vmem:[%s3836 + $0x1c] sm:$0xf]
      %v3845 = vld [vmem:[%s3836 + $0x20] sm:$0xf]
      %v3846 = vld [vmem:[%s3836 + $0x24] sm:$0xf]
      %v3847 = vld [vmem:[%s3836 + $0x28] sm:$0xf]
      %v3848 = vld [vmem:[%s3836 + $0x2c] sm:$0xf]
      %v3849 = vld [vmem:[%s3836 + $0x30] sm:$0xf]
      %v3850 = vld [vmem:[%s3836 + $0x34] sm:$0xf]
      %v3851 = vld [vmem:[%s3836 + $0x38] sm:$0xf]
      %v3852 = vld [vmem:[%s3836 + $0x3c] sm:$0xf]
      %v3863 = vunpack.c.l.b16 %v3826
      %v3864 = vunpack.c.l.b16 %v3827
      %v3865 = vunpack.c.l.b16 %v3828
      %v3866 = vunpack.c.l.b16 %v3829
      %v3867 = vunpack.c.l.b16 %v3830
      %v3868 = vunpack.c.l.b16 %v3831
      %v3869 = vunpack.c.l.b16 %v3832
      %v3870 = vunpack.c.l.b16 %v3833
      %v3871 = vunpack.c.l.b16 %v3834
      %v3872 = vunpack.c.l.b16 %v3835
      %v3873 = vpack.c.b16 %v3864, %v3863
      %v3874 = vpack.c.b16 %v3866, %v3865
      %v3875 = vpack.c.b16 %v3868, %v3867
      %v3876 = vpack.c.b16 %v3870, %v3869
      %v3877 = vpack.c.b16 %v3872, %v3871
      %v3879 = vshrl.u32 %v3873, 16
      %v3881 = vshll.u32 %v3873, 16
      %v3883 = vrot.slane %v3881, 1
      %v3884 = vor.u32 %v3879, %v3883
      %v3886 = vshll.u32 %v3874, 16
      %v3888 = vrot.slane %v3886, 1
      %v3889 = vsel %vm527, %v3884, %v3888
      %v3890 = vshrl.u32 %v3874, 16
      %v3892 = vor.u32 %v3890, %v3888
      %v3894 = vshll.u32 %v3875, 16
      %v3896 = vrot.slane %v3894, 1
      %v3897 = vsel %vm527, %v3892, %v3896
      %v3898 = vshrl.u32 %v3875, 16
      %v3900 = vor.u32 %v3898, %v3896
      %v3902 = vshll.u32 %v3876, 16
      %v3904 = vrot.slane %v3902, 1
      %v3905 = vsel %vm527, %v3900, %v3904
      %v3906 = vshrl.u32 %v3876, 16
      %v3908 = vor.u32 %v3906, %v3904
      %v3910 = vshll.u32 %v3877, 16
      %v3912 = vrot.slane %v3910, 1
      %v3913 = vsel %vm527, %v3908, %v3912
      %v3914 = vshrl.u32 %v3877, 16
      %v3916 = vor.u32 %v3914, %v3912
      %v3938 = vunpack.c.l.b16 %v3837
      %v3939 = vunpack.c.l.b16 %v3838
      %v3940 = vunpack.c.l.b16 %v3839
      %v3941 = vunpack.c.l.b16 %v3840
      %v3942 = vunpack.c.l.b16 %v3841
      %v3943 = vunpack.c.l.b16 %v3842
      %v3944 = vunpack.c.l.b16 %v3843
      %v3945 = vunpack.c.l.b16 %v3844
      %v3946 = vunpack.c.l.b16 %v3845
      %v3947 = vunpack.c.l.b16 %v3846
      %v3948 = vunpack.c.l.b16 %v3847
      %v3949 = vunpack.c.l.b16 %v3848
      %v3950 = vunpack.c.l.b16 %v3849
      %v3951 = vunpack.c.l.b16 %v3850
      %v3952 = vunpack.c.l.b16 %v3851
      %v3953 = vunpack.c.l.b16 %v3852
      %v3954 = vpack.c.b16 %v3939, %v3938
      %v3955 = vpack.c.b16 %v3941, %v3940
      %v3956 = vpack.c.b16 %v3943, %v3942
      %v3957 = vpack.c.b16 %v3945, %v3944
      %v3958 = vpack.c.b16 %v3947, %v3946
      %v3959 = vpack.c.b16 %v3949, %v3948
      %v3960 = vpack.c.b16 %v3951, %v3950
      %v3961 = vpack.c.b16 %v3953, %v3952
      %3970 = vmatprep.subr.bf16.mxu0 0
      %3971 = vmatpush1.bf16.msra.mxu0 %v3954
      %3972 = vmatprep.subr.bf16.mxu0 0
      %3973 = vmatpush1.bf16.msra.mxu0 %v3955
      %3974 = vmatprep.subr.bf16.mxu0 0
      %3975 = vmatpush1.bf16.msra.mxu0 %v3956
      %3976 = vmatprep.subr.bf16.mxu0 0
      %3977 = vmatpush1.bf16.msra.mxu0 %v3957
      %3978 = vmatprep.subr.bf16.mxu0 0
      %3979 = vmatpush1.bf16.msra.mxu0 %v3958
      %3980 = vmatprep.subr.bf16.mxu0 0
      %3981 = vmatpush1.bf16.msra.mxu0 %v3959
      %3982 = vmatprep.subr.bf16.mxu0 0
      %3983 = vmatpush1.bf16.msra.mxu0 %v3960
      %3984 = vmatprep.subr.bf16.mxu0 0
      %3985 = vmatpush1.bf16.msra.mxu0 %v3961
      %3986 = vmatprep.subr.bf16.mxu0 0
      %3987 = vmatpush1.bf16.msra.mxu0 0
      %3988 = vmatprep.subr.bf16.mxu0 0
      %3989 = vmatpush1.bf16.msra.mxu0 0
      %3990 = vmatprep.subr.bf16.mxu0 0
      %3991 = vmatpush1.bf16.msra.mxu0 0
      %3992 = vmatprep.subr.bf16.mxu0 0
      %3993 = vmatpush1.bf16.msra.mxu0 0
      %3994 = vmatprep.subr.bf16.mxu0 0
      %3995 = vmatpush1.bf16.msra.mxu0 0
      %3996 = vmatprep.subr.bf16.mxu0 0
      %3997 = vmatpush1.bf16.msra.mxu0 0
      %3998 = vmatprep.subr.bf16.mxu0 0
      %3999 = vmatpush1.bf16.msra.mxu0 0
      %4000 = vmatprep.subr.bf16.mxu0 0
      %4001 = vmatpush1.bf16.msra.mxu0 0
      %4002 = vmatprep.mubr.bf16.mxu0 0
      %4003 = vmatmul.mubr.bf16.gmra.mrb[0].mxu0 %v3889
      %v4004 = vpop.f32.mrb[0].mxu0
      %v4005 = vadd.f32 0.0, %v4004
      %v4006 = vpop.f32.mrb[0].mxu0
      %v4007 = vpop.f32.mrb[0].mxu0
      %v4008 = vadd.f32 0.0, %v4007
      %v4009 = vpop.f32.mrb[0].mxu0
      %4010 = vmatprep.mubr.bf16.mxu0 0
      %4011 = vmatmul.mubr.bf16.gmra.mrb[0].mxu0 %v3897
      %v4012 = vpop.f32.mrb[0].mxu0
      %v4013 = vadd.f32 0.0, %v4012
      %v4014 = vpop.f32.mrb[0].mxu0
      %v4015 = vpop.f32.mrb[0].mxu0
      %v4016 = vadd.f32 0.0, %v4015
      %v4017 = vpop.f32.mrb[0].mxu0
      %4018 = vmatprep.mubr.bf16.mxu0 0
      %4019 = vmatmul.mubr.bf16.gmra.mrb[0].mxu0 %v3905
      %v4020 = vpop.f32.mrb[0].mxu0
      %v4021 = vadd.f32 0.0, %v4020
      %v4022 = vpop.f32.mrb[0].mxu0
      %v4023 = vpop.f32.mrb[0].mxu0
      %v4024 = vadd.f32 0.0, %v4023
      %v4025 = vpop.f32.mrb[0].mxu0
      %4026 = vmatprep.mubr.bf16.mxu0 0
      %4027 = vmatmul.mubr.bf16.gmra.mrb[0].mxu0 %v3913
      %v4028 = vpop.f32.mrb[0].mxu0
      %v4029 = vadd.f32 0.0, %v4028
      %v4030 = vpop.f32.mrb[0].mxu0
      %v4031 = vpop.f32.mrb[0].mxu0
      %v4032 = vadd.f32 0.0, %v4031
      %v4033 = vpop.f32.mrb[0].mxu0
      %4034 = vmatprep.mubr.bf16.mxu0 0
      %4035 = vmatmul.mubr.bf16.gmra.mrb[0].mxu0 %v3916
      %v4036 = vpop.f32.mrb[0].mxu0
      %v4037 = vadd.f32 0.0, %v4036
      %v4038 = vpop.f32.mrb[0].mxu0
      %v4039 = vpop.f32.mrb[0].mxu0
      %v4040 = vpop.f32.mrb[0].mxu0
      %4041 = vdwg.mxu0
      %v4042 = vadd.f32 %v3817, %v4005
      %v4043 = vadd.f32 %v3818, %v4008
      %v4044 = vadd.f32 %v3819, %v4013
      %v4045 = vadd.f32 %v3820, %v4016
      %v4046 = vadd.f32 %v3821, %v4021
      %v4047 = vadd.f32 %v3822, %v4024
      %v4048 = vadd.f32 %v3823, %v4029
      %v4049 = vadd.f32 %v3824, %v4032
      %v4050 = vadd.f32 %v3825, %v4037
      %4051 = vst [vmem:[#allocation2] sm:$0xff] %v4042
      %4052 = vst [vmem:[#allocation2 + $0x8] sm:$0xff] %v4043
      %4053 = vst [vmem:[#allocation2 + $0x10] sm:$0xff] %v4044
      %4054 = vst [vmem:[#allocation2 + $0x18] sm:$0xff] %v4045
      %4055 = vst [vmem:[#allocation2 + $0x20] sm:$0xff] %v4046
      %4056 = vst [vmem:[#allocation2 + $0x28] sm:$0xff] %v4047
      %4057 = vst [vmem:[#allocation2 + $0x30] sm:$0xff] %v4048
      %4058 = vst [vmem:[#allocation2 + $0x38] sm:$0xff] %v4049
      %4059 = vst [vmem:[#allocation2 + $0x40] sm:$0xff] %v4050
      %v4060 = vld [vmem:[#allocation2] sm:$0xff]
      %v4061 = vld [vmem:[#allocation2 + $0x8] sm:$0xff]
      %v4062 = vld [vmem:[#allocation2 + $0x10] sm:$0xff]
      %v4063 = vld [vmem:[#allocation2 + $0x18] sm:$0xff]
      %v4064 = vld [vmem:[#allocation2 + $0x20] sm:$0xff]
      %v4065 = vld [vmem:[#allocation2 + $0x28] sm:$0xff]
      %v4066 = vld [vmem:[#allocation2 + $0x30] sm:$0xff]
      %v4067 = vld [vmem:[#allocation2 + $0x38] sm:$0xff]
      %v4068 = vld [vmem:[#allocation2 + $0x40] sm:$0xff]
      %v4069 = vld [vmem:[#allocation3 + $0xc] sm:$0xf]
      %v4070 = vld [vmem:[#allocation3 + $0x10] sm:$0xf]
      %v4071 = vld [vmem:[#allocation3 + $0x14] sm:$0xf]
      %v4072 = vld [vmem:[#allocation3 + $0x18] sm:$0xf]
      %v4073 = vld [vmem:[#allocation3 + $0x1c] sm:$0xf]
      %v4074 = vld [vmem:[#allocation3 + $0x20] sm:$0xf]
      %v4075 = vld [vmem:[#allocation3 + $0x24] sm:$0xf]
      %v4076 = vld [vmem:[#allocation3 + $0x28] sm:$0xf]
      %v4077 = vld [vmem:[#allocation3 + $0x2c] sm:$0xf]
      %s4078 = scalar_lea.vmem %s2, 384
      %v4079 = vld [vmem:[%s4078] sm:$0xf]
      %v4080 = vld [vmem:[%s4078 + $0x4] sm:$0xf]
      %v4081 = vld [vmem:[%s4078 + $0x8] sm:$0xf]
      %v4082 = vld [vmem:[%s4078 + $0xc] sm:$0xf]
      %v4083 = vld [vmem:[%s4078 + $0x10] sm:$0xf]
      %v4084 = vld [vmem:[%s4078 + $0x14] sm:$0xf]
      %v4085 = vld [vmem:[%s4078 + $0x18] sm:$0xf]
      %v4086 = vld [vmem:[%s4078 + $0x1c] sm:$0xf]
      %v4087 = vld [vmem:[%s4078 + $0x20] sm:$0xf]
      %v4088 = vld [vmem:[%s4078 + $0x24] sm:$0xf]
      %v4089 = vld [vmem:[%s4078 + $0x28] sm:$0xf]
      %v4090 = vld [vmem:[%s4078 + $0x2c] sm:$0xf]
      %v4091 = vld [vmem:[%s4078 + $0x30] sm:$0xf]
      %v4092 = vld [vmem:[%s4078 + $0x34] sm:$0xf]
      %v4093 = vld [vmem:[%s4078 + $0x38] sm:$0xf]
      %v4094 = vld [vmem:[%s4078 + $0x3c] sm:$0xf]
      %v4104 = vunpack.c.l.b16 %v4069
      %v4105 = vunpack.c.l.b16 %v4070
      %v4106 = vunpack.c.l.b16 %v4071
      %v4107 = vunpack.c.l.b16 %v4072
      %v4108 = vunpack.c.l.b16 %v4073
      %v4109 = vunpack.c.l.b16 %v4074
      %v4110 = vunpack.c.l.b16 %v4075
      %v4111 = vunpack.c.l.b16 %v4076
      %v4112 = vunpack.c.l.b16 %v4077
      %v4113 = vpack.c.b16 %v4105, %v4104
      %v4114 = vpack.c.b16 %v4107, %v4106
      %v4115 = vpack.c.b16 %v4109, %v4108
      %v4116 = vpack.c.b16 %v4111, %v4110
      %v4117 = vpack.c.b16 %v4112, %v4112
      %v4139 = vunpack.c.l.b16 %v4079
      %v4140 = vunpack.c.l.b16 %v4080
      %v4141 = vunpack.c.l.b16 %v4081
      %v4142 = vunpack.c.l.b16 %v4082
      %v4143 = vunpack.c.l.b16 %v4083
      %v4144 = vunpack.c.l.b16 %v4084
      %v4145 = vunpack.c.l.b16 %v4085
      %v4146 = vunpack.c.l.b16 %v4086
      %v4147 = vunpack.c.l.b16 %v4087
      %v4148 = vunpack.c.l.b16 %v4088
      %v4149 = vunpack.c.l.b16 %v4089
      %v4150 = vunpack.c.l.b16 %v4090
      %v4151 = vunpack.c.l.b16 %v4091
      %v4152 = vunpack.c.l.b16 %v4092
      %v4153 = vunpack.c.l.b16 %v4093
      %v4154 = vunpack.c.l.b16 %v4094
      %v4155 = vpack.c.b16 %v4140, %v4139
      %v4156 = vpack.c.b16 %v4142, %v4141
      %v4157 = vpack.c.b16 %v4144, %v4143
      %v4158 = vpack.c.b16 %v4146, %v4145
      %v4159 = vpack.c.b16 %v4148, %v4147
      %v4160 = vpack.c.b16 %v4150, %v4149
      %v4161 = vpack.c.b16 %v4152, %v4151
      %v4162 = vpack.c.b16 %v4154, %v4153
      %4171 = vmatprep.subr.bf16.mxu0 0
      %4172 = vmatpush1.bf16.msra.mxu0 %v4155
      %4173 = vmatprep.subr.bf16.mxu0 0
      %4174 = vmatpush1.bf16.msra.mxu0 %v4156
      %4175 = vmatprep.subr.bf16.mxu0 0
      %4176 = vmatpush1.bf16.msra.mxu0 %v4157
      %4177 = vmatprep.subr.bf16.mxu0 0
      %4178 = vmatpush1.bf16.msra.mxu0 %v4158
      %4179 = vmatprep.subr.bf16.mxu0 0
      %4180 = vmatpush1.bf16.msra.mxu0 %v4159
      %4181 = vmatprep.subr.bf16.mxu0 0
      %4182 = vmatpush1.bf16.msra.mxu0 %v4160
      %4183 = vmatprep.subr.bf16.mxu0 0
      %4184 = vmatpush1.bf16.msra.mxu0 %v4161
      %4185 = vmatprep.subr.bf16.mxu0 0
      %4186 = vmatpush1.bf16.msra.mxu0 %v4162
      %4187 = vmatprep.subr.bf16.mxu0 0
      %4188 = vmatpush1.bf16.msra.mxu0 0
      %4189 = vmatprep.subr.bf16.mxu0 0
      %4190 = vmatpush1.bf16.msra.mxu0 0
      %4191 = vmatprep.subr.bf16.mxu0 0
      %4192 = vmatpush1.bf16.msra.mxu0 0
      %4193 = vmatprep.subr.bf16.mxu0 0
      %4194 = vmatpush1.bf16.msra.mxu0 0
      %4195 = vmatprep.subr.bf16.mxu0 0
      %4196 = vmatpush1.bf16.msra.mxu0 0
      %4197 = vmatprep.subr.bf16.mxu0 0
      %4198 = vmatpush1.bf16.msra.mxu0 0
      %4199 = vmatprep.subr.bf16.mxu0 0
      %4200 = vmatpush1.bf16.msra.mxu0 0
      %4201 = vmatprep.subr.bf16.mxu0 0
      %4202 = vmatpush1.bf16.msra.mxu0 0
      %4203 = vmatprep.mubr.bf16.mxu0 0
      %4204 = vmatmul.mubr.bf16.gmra.mrb[0].mxu0 %v4113
      %v4205 = vpop.f32.mrb[0].mxu0
      %v4206 = vadd.f32 0.0, %v4205
      %v4207 = vpop.f32.mrb[0].mxu0
      %v4208 = vpop.f32.mrb[0].mxu0
      %v4209 = vadd.f32 0.0, %v4208
      %v4210 = vpop.f32.mrb[0].mxu0
      %4211 = vmatprep.mubr.bf16.mxu0 0
      %4212 = vmatmul.mubr.bf16.gmra.mrb[0].mxu0 %v4114
      %v4213 = vpop.f32.mrb[0].mxu0
      %v4214 = vadd.f32 0.0, %v4213
      %v4215 = vpop.f32.mrb[0].mxu0
      %v4216 = vpop.f32.mrb[0].mxu0
      %v4217 = vadd.f32 0.0, %v4216
      %v4218 = vpop.f32.mrb[0].mxu0
      %4219 = vmatprep.mubr.bf16.mxu0 0
      %4220 = vmatmul.mubr.bf16.gmra.mrb[0].mxu0 %v4115
      %v4221 = vpop.f32.mrb[0].mxu0
      %v4222 = vadd.f32 0.0, %v4221
      %v4223 = vpop.f32.mrb[0].mxu0
      %v4224 = vpop.f32.mrb[0].mxu0
      %v4225 = vadd.f32 0.0, %v4224
      %v4226 = vpop.f32.mrb[0].mxu0
      %4227 = vmatprep.mubr.bf16.mxu0 0
      %4228 = vmatmul.mubr.bf16.gmra.mrb[0].mxu0 %v4116
      %v4229 = vpop.f32.mrb[0].mxu0
      %v4230 = vadd.f32 0.0, %v4229
      %v4231 = vpop.f32.mrb[0].mxu0
      %v4232 = vpop.f32.mrb[0].mxu0
      %v4233 = vadd.f32 0.0, %v4232
      %v4234 = vpop.f32.mrb[0].mxu0
      %4235 = vmatprep.mubr.bf16.mxu0 0
      %4236 = vmatmul.mubr.bf16.gmra.mrb[0].mxu0 %v4117
      %v4237 = vpop.f32.mrb[0].mxu0
      %v4238 = vadd.f32 0.0, %v4237
      %v4239 = vpop.f32.mrb[0].mxu0
      %v4240 = vpop.f32.mrb[0].mxu0
      %v4241 = vpop.f32.mrb[0].mxu0
      %4242 = vdwg.mxu0
      %v4243 = vadd.f32 %v4060, %v4206
      %v4244 = vadd.f32 %v4061, %v4209
      %v4245 = vadd.f32 %v4062, %v4214
      %v4246 = vadd.f32 %v4063, %v4217
      %v4247 = vadd.f32 %v4064, %v4222
      %v4248 = vadd.f32 %v4065, %v4225
      %v4249 = vadd.f32 %v4066, %v4230
      %v4250 = vadd.f32 %v4067, %v4233
      %v4251 = vadd.f32 %v4068, %v4238
      %4252 = vst [vmem:[#allocation2] sm:$0xff] %v4243
      %4253 = vst [vmem:[#allocation2 + $0x8] sm:$0xff] %v4244
      %4254 = vst [vmem:[#allocation2 + $0x10] sm:$0xff] %v4245
      %4255 = vst [vmem:[#allocation2 + $0x18] sm:$0xff] %v4246
      %4256 = vst [vmem:[#allocation2 + $0x20] sm:$0xff] %v4247
      %4257 = vst [vmem:[#allocation2 + $0x28] sm:$0xff] %v4248
      %4258 = vst [vmem:[#allocation2 + $0x30] sm:$0xff] %v4249
      %4259 = vst [vmem:[#allocation2 + $0x38] sm:$0xff] %v4250
      %4260 = vst [vmem:[#allocation2 + $0x40] sm:$0xff] %v4251
      %v4261 = vld [vmem:[#allocation2] sm:$0xff]
      %v4262 = vld [vmem:[#allocation2 + $0x8] sm:$0xff]
      %v4263 = vld [vmem:[#allocation2 + $0x10] sm:$0xff]
      %v4264 = vld [vmem:[#allocation2 + $0x18] sm:$0xff]
      %v4265 = vld [vmem:[#allocation2 + $0x20] sm:$0xff]
      %v4266 = vld [vmem:[#allocation2 + $0x28] sm:$0xff]
      %v4267 = vld [vmem:[#allocation2 + $0x30] sm:$0xff]
      %v4268 = vld [vmem:[#allocation2 + $0x38] sm:$0xff]
      %v4269 = vld [vmem:[#allocation2 + $0x40] sm:$0xff]
      %v4270 = vld [vmem:[#allocation3 + $0xc] sm:$0xf]
      %v4271 = vld [vmem:[#allocation3 + $0x10] sm:$0xf]
      %v4272 = vld [vmem:[#allocation3 + $0x14] sm:$0xf]
      %v4273 = vld [vmem:[#allocation3 + $0x18] sm:$0xf]
      %v4274 = vld [vmem:[#allocation3 + $0x1c] sm:$0xf]
      %v4275 = vld [vmem:[#allocation3 + $0x20] sm:$0xf]
      %v4276 = vld [vmem:[#allocation3 + $0x24] sm:$0xf]
      %v4277 = vld [vmem:[#allocation3 + $0x28] sm:$0xf]
      %v4278 = vld [vmem:[#allocation3 + $0x2c] sm:$0xf]
      %v4279 = vld [vmem:[#allocation3 + $0x30] sm:$0x1]
      %s4280 = scalar_lea.vmem %s2, 448
      %v4281 = vld [vmem:[%s4280] sm:$0xf]
      %v4282 = vld [vmem:[%s4280 + $0x4] sm:$0xf]
      %v4283 = vld [vmem:[%s4280 + $0x8] sm:$0xf]
      %v4284 = vld [vmem:[%s4280 + $0xc] sm:$0xf]
      %v4285 = vld [vmem:[%s4280 + $0x10] sm:$0xf]
      %v4286 = vld [vmem:[%s4280 + $0x14] sm:$0xf]
      %v4287 = vld [vmem:[%s4280 + $0x18] sm:$0xf]
      %v4288 = vld [vmem:[%s4280 + $0x1c] sm:$0xf]
      %v4289 = vld [vmem:[%s4280 + $0x20] sm:$0xf]
      %v4290 = vld [vmem:[%s4280 + $0x24] sm:$0xf]
      %v4291 = vld [vmem:[%s4280 + $0x28] sm:$0xf]
      %v4292 = vld [vmem:[%s4280 + $0x2c] sm:$0xf]
      %v4293 = vld [vmem:[%s4280 + $0x30] sm:$0xf]
      %v4294 = vld [vmem:[%s4280 + $0x34] sm:$0xf]
      %v4295 = vld [vmem:[%s4280 + $0x38] sm:$0xf]
      %v4296 = vld [vmem:[%s4280 + $0x3c] sm:$0xf]
      %v4307 = vunpack.c.l.b16 %v4270
      %v4308 = vunpack.c.l.b16 %v4271
      %v4309 = vunpack.c.l.b16 %v4272
      %v4310 = vunpack.c.l.b16 %v4273
      %v4311 = vunpack.c.l.b16 %v4274
      %v4312 = vunpack.c.l.b16 %v4275
      %v4313 = vunpack.c.l.b16 %v4276
      %v4314 = vunpack.c.l.b16 %v4277
      %v4315 = vunpack.c.l.b16 %v4278
      %v4316 = vunpack.c.l.b16 %v4279
      %v4317 = vpack.c.b16 %v4308, %v4307
      %v4318 = vpack.c.b16 %v4310, %v4309
      %v4319 = vpack.c.b16 %v4312, %v4311
      %v4320 = vpack.c.b16 %v4314, %v4313
      %v4321 = vpack.c.b16 %v4316, %v4315
      %v4323 = vshrl.u32 %v4317, 16
      %v4325 = vshll.u32 %v4317, 16
      %v4327 = vrot.slane %v4325, 1
      %v4328 = vor.u32 %v4323, %v4327
      %v4330 = vshll.u32 %v4318, 16
      %v4332 = vrot.slane %v4330, 1
      %v4333 = vsel %vm527, %v4328, %v4332
      %v4334 = vshrl.u32 %v4318, 16
      %v4336 = vor.u32 %v4334, %v4332
      %v4338 = vshll.u32 %v4319, 16
      %v4340 = vrot.slane %v4338, 1
      %v4341 = vsel %vm527, %v4336, %v4340
      %v4342 = vshrl.u32 %v4319, 16
      %v4344 = vor.u32 %v4342, %v4340
      %v4346 = vshll.u32 %v4320, 16
      %v4348 = vrot.slane %v4346, 1
      %v4349 = vsel %vm527, %v4344, %v4348
      %v4350 = vshrl.u32 %v4320, 16
      %v4352 = vor.u32 %v4350, %v4348
      %v4354 = vshll.u32 %v4321, 16
      %v4356 = vrot.slane %v4354, 1
      %v4357 = vsel %vm527, %v4352, %v4356
      %v4358 = vshrl.u32 %v4321, 16
      %v4360 = vor.u32 %v4358, %v4356
      %v4382 = vunpack.c.l.b16 %v4281
      %v4383 = vunpack.c.l.b16 %v4282
      %v4384 = vunpack.c.l.b16 %v4283
      %v4385 = vunpack.c.l.b16 %v4284
      %v4386 = vunpack.c.l.b16 %v4285
      %v4387 = vunpack.c.l.b16 %v4286
      %v4388 = vunpack.c.l.b16 %v4287
      %v4389 = vunpack.c.l.b16 %v4288
      %v4390 = vunpack.c.l.b16 %v4289
      %v4391 = vunpack.c.l.b16 %v4290
      %v4392 = vunpack.c.l.b16 %v4291
      %v4393 = vunpack.c.l.b16 %v4292
      %v4394 = vunpack.c.l.b16 %v4293
      %v4395 = vunpack.c.l.b16 %v4294
      %v4396 = vunpack.c.l.b16 %v4295
      %v4397 = vunpack.c.l.b16 %v4296
      %v4398 = vpack.c.b16 %v4383, %v4382
      %v4399 = vpack.c.b16 %v4385, %v4384
      %v4400 = vpack.c.b16 %v4387, %v4386
      %v4401 = vpack.c.b16 %v4389, %v4388
      %v4402 = vpack.c.b16 %v4391, %v4390
      %v4403 = vpack.c.b16 %v4393, %v4392
      %v4404 = vpack.c.b16 %v4395, %v4394
      %v4405 = vpack.c.b16 %v4397, %v4396
      %4414 = vmatprep.subr.bf16.mxu0 0
      %4415 = vmatpush1.bf16.msra.mxu0 %v4398
      %4416 = vmatprep.subr.bf16.mxu0 0
      %4417 = vmatpush1.bf16.msra.mxu0 %v4399
      %4418 = vmatprep.subr.bf16.mxu0 0
      %4419 = vmatpush1.bf16.msra.mxu0 %v4400
      %4420 = vmatprep.subr.bf16.mxu0 0
      %4421 = vmatpush1.bf16.msra.mxu0 %v4401
      %4422 = vmatprep.subr.bf16.mxu0 0
      %4423 = vmatpush1.bf16.msra.mxu0 %v4402
      %4424 = vmatprep.subr.bf16.mxu0 0
      %4425 = vmatpush1.bf16.msra.mxu0 %v4403
      %4426 = vmatprep.subr.bf16.mxu0 0
      %4427 = vmatpush1.bf16.msra.mxu0 %v4404
      %4428 = vmatprep.subr.bf16.mxu0 0
      %4429 = vmatpush1.bf16.msra.mxu0 %v4405
      %4430 = vmatprep.subr.bf16.mxu0 0
      %4431 = vmatpush1.bf16.msra.mxu0 0
      %4432 = vmatprep.subr.bf16.mxu0 0
      %4433 = vmatpush1.bf16.msra.mxu0 0
      %4434 = vmatprep.subr.bf16.mxu0 0
      %4435 = vmatpush1.bf16.msra.mxu0 0
      %4436 = vmatprep.subr.bf16.mxu0 0
      %4437 = vmatpush1.bf16.msra.mxu0 0
      %4438 = vmatprep.subr.bf16.mxu0 0
      %4439 = vmatpush1.bf16.msra.mxu0 0
      %4440 = vmatprep.subr.bf16.mxu0 0
      %4441 = vmatpush1.bf16.msra.mxu0 0
      %4442 = vmatprep.subr.bf16.mxu0 0
      %4443 = vmatpush1.bf16.msra.mxu0 0
      %4444 = vmatprep.subr.bf16.mxu0 0
      %4445 = vmatpush1.bf16.msra.mxu0 0
      %4446 = vmatprep.mubr.bf16.mxu0 0
      %4447 = vmatmul.mubr.bf16.gmra.mrb[0].mxu0 %v4333
      %v4448 = vpop.f32.mrb[0].mxu0
      %v4449 = vadd.f32 0.0, %v4448
      %v4450 = vpop.f32.mrb[0].mxu0
      %v4451 = vpop.f32.mrb[0].mxu0
      %v4452 = vadd.f32 0.0, %v4451
      %v4453 = vpop.f32.mrb[0].mxu0
      %4454 = vmatprep.mubr.bf16.mxu0 0
      %4455 = vmatmul.mubr.bf16.gmra.mrb[0].mxu0 %v4341
      %v4456 = vpop.f32.mrb[0].mxu0
      %v4457 = vadd.f32 0.0, %v4456
      %v4458 = vpop.f32.mrb[0].mxu0
      %v4459 = vpop.f32.mrb[0].mxu0
      %v4460 = vadd.f32 0.0, %v4459
      %v4461 = vpop.f32.mrb[0].mxu0
      %4462 = vmatprep.mubr.bf16.mxu0 0
      %4463 = vmatmul.mubr.bf16.gmra.mrb[0].mxu0 %v4349
      %v4464 = vpop.f32.mrb[0].mxu0
      %v4465 = vadd.f32 0.0, %v4464
      %v4466 = vpop.f32.mrb[0].mxu0
      %v4467 = vpop.f32.mrb[0].mxu0
      %v4468 = vadd.f32 0.0, %v4467
      %v4469 = vpop.f32.mrb[0].mxu0
      %4470 = vmatprep.mubr.bf16.mxu0 0
      %4471 = vmatmul.mubr.bf16.gmra.mrb[0].mxu0 %v4357
      %v4472 = vpop.f32.mrb[0].mxu0
      %v4473 = vadd.f32 0.0, %v4472
      %v4474 = vpop.f32.mrb[0].mxu0
      %v4475 = vpop.f32.mrb[0].mxu0
      %v4476 = vadd.f32 0.0, %v4475
      %v4477 = vpop.f32.mrb[0].mxu0
      %4478 = vmatprep.mubr.bf16.mxu0 0
      %4479 = vmatmul.mubr.bf16.gmra.mrb[0].mxu0 %v4360
      %v4480 = vpop.f32.mrb[0].mxu0
      %v4481 = vadd.f32 0.0, %v4480
      %v4482 = vpop.f32.mrb[0].mxu0
      %v4483 = vpop.f32.mrb[0].mxu0
      %v4484 = vpop.f32.mrb[0].mxu0
      %4485 = vdwg.mxu0
      %v4486 = vadd.f32 %v4261, %v4449
      %v4487 = vadd.f32 %v4262, %v4452
      %v4488 = vadd.f32 %v4263, %v4457
      %v4489 = vadd.f32 %v4264, %v4460
      %v4490 = vadd.f32 %v4265, %v4465
      %v4491 = vadd.f32 %v4266, %v4468
      %v4492 = vadd.f32 %v4267, %v4473
      %v4493 = vadd.f32 %v4268, %v4476
      %v4494 = vadd.f32 %v4269, %v4481
      %4495 = vst [vmem:[#allocation2] sm:$0xff] %v4486
      %4496 = vst [vmem:[#allocation2 + $0x8] sm:$0xff] %v4487
      %4497 = vst [vmem:[#allocation2 + $0x10] sm:$0xff] %v4488
      %4498 = vst [vmem:[#allocation2 + $0x18] sm:$0xff] %v4489
      %4499 = vst [vmem:[#allocation2 + $0x20] sm:$0xff] %v4490
      %4500 = vst [vmem:[#allocation2 + $0x28] sm:$0xff] %v4491
      %4501 = vst [vmem:[#allocation2 + $0x30] sm:$0xff] %v4492
      %4502 = vst [vmem:[#allocation2 + $0x38] sm:$0xff] %v4493
      %4503 = vst [vmem:[#allocation2 + $0x40] sm:$0xff] %v4494
      %v4504 = vld [vmem:[#allocation2] sm:$0xff]
      %v4505 = vld [vmem:[#allocation2 + $0x8] sm:$0xff]
      %v4506 = vld [vmem:[#allocation2 + $0x10] sm:$0xff]
      %v4507 = vld [vmem:[#allocation2 + $0x18] sm:$0xff]
      %v4508 = vld [vmem:[#allocation2 + $0x20] sm:$0xff]
      %v4509 = vld [vmem:[#allocation2 + $0x28] sm:$0xff]
      %v4510 = vld [vmem:[#allocation2 + $0x30] sm:$0xff]
      %v4511 = vld [vmem:[#allocation2 + $0x38] sm:$0xff]
      %v4512 = vld [vmem:[#allocation2 + $0x40] sm:$0xff]
      %v4513 = vld [vmem:[#allocation3 + $0xc] sm:$0xe]
      %v4514 = vld [vmem:[#allocation3 + $0x10] sm:$0xf]
      %v4515 = vld [vmem:[#allocation3 + $0x14] sm:$0xf]
      %v4516 = vld [vmem:[#allocation3 + $0x18] sm:$0xf]
      %v4517 = vld [vmem:[#allocation3 + $0x1c] sm:$0xf]
      %v4518 = vld [vmem:[#allocation3 + $0x20] sm:$0xf]
      %v4519 = vld [vmem:[#allocation3 + $0x24] sm:$0xf]
      %v4520 = vld [vmem:[#allocation3 + $0x28] sm:$0xf]
      %v4521 = vld [vmem:[#allocation3 + $0x2c] sm:$0xf]
      %v4522 = vld [vmem:[#allocation3 + $0x30] sm:$0x1]
      %s4523 = scalar_lea.vmem %s2, 512
      %v4524 = vld [vmem:[%s4523] sm:$0xf]
      %v4525 = vld [vmem:[%s4523 + $0x4] sm:$0xf]
      %v4526 = vld [vmem:[%s4523 + $0x8] sm:$0xf]
      %v4527 = vld [vmem:[%s4523 + $0xc] sm:$0xf]
      %v4528 = vld [vmem:[%s4523 + $0x10] sm:$0xf]
      %v4529 = vld [vmem:[%s4523 + $0x14] sm:$0xf]
      %v4530 = vld [vmem:[%s4523 + $0x18] sm:$0xf]
      %v4531 = vld [vmem:[%s4523 + $0x1c] sm:$0xf]
      %v4532 = vld [vmem:[%s4523 + $0x20] sm:$0xf]
      %v4533 = vld [vmem:[%s4523 + $0x24] sm:$0xf]
      %v4534 = vld [vmem:[%s4523 + $0x28] sm:$0xf]
      %v4535 = vld [vmem:[%s4523 + $0x2c] sm:$0xf]
      %v4536 = vld [vmem:[%s4523 + $0x30] sm:$0xf]
      %v4537 = vld [vmem:[%s4523 + $0x34] sm:$0xf]
      %v4538 = vld [vmem:[%s4523 + $0x38] sm:$0xf]
      %v4539 = vld [vmem:[%s4523 + $0x3c] sm:$0xf]
      %v4550 = vunpack.c.l.b16 %v4513
      %v4551 = vunpack.c.l.b16 %v4514
      %v4552 = vunpack.c.l.b16 %v4515
      %v4553 = vunpack.c.l.b16 %v4516
      %v4554 = vunpack.c.l.b16 %v4517
      %v4555 = vunpack.c.l.b16 %v4518
      %v4556 = vunpack.c.l.b16 %v4519
      %v4557 = vunpack.c.l.b16 %v4520
      %v4558 = vunpack.c.l.b16 %v4521
      %v4559 = vunpack.c.l.b16 %v4522
      %v4560 = vpack.c.b16 %v4551, %v4550
      %v4561 = vpack.c.b16 %v4553, %v4552
      %v4562 = vpack.c.b16 %v4555, %v4554
      %v4563 = vpack.c.b16 %v4557, %v4556
      %v4564 = vpack.c.b16 %v4559, %v4558
      %v4565 = vrot.slane %v4560, 1
      %v4566 = vrot.slane %v4561, 1
      %v4567 = vsel %vm1014, %v4565, %v4566
      %v4568 = vrot.slane %v4562, 1
      %v4569 = vsel %vm1014, %v4566, %v4568
      %v4570 = vrot.slane %v4563, 1
      %v4571 = vsel %vm1014, %v4568, %v4570
      %v4572 = vrot.slane %v4564, 1
      %v4573 = vsel %vm1014, %v4570, %v4572
      %v4595 = vunpack.c.l.b16 %v4524
      %v4596 = vunpack.c.l.b16 %v4525
      %v4597 = vunpack.c.l.b16 %v4526
      %v4598 = vunpack.c.l.b16 %v4527
      %v4599 = vunpack.c.l.b16 %v4528
      %v4600 = vunpack.c.l.b16 %v4529
      %v4601 = vunpack.c.l.b16 %v4530
      %v4602 = vunpack.c.l.b16 %v4531
      %v4603 = vunpack.c.l.b16 %v4532
      %v4604 = vunpack.c.l.b16 %v4533
      %v4605 = vunpack.c.l.b16 %v4534
      %v4606 = vunpack.c.l.b16 %v4535
      %v4607 = vunpack.c.l.b16 %v4536
      %v4608 = vunpack.c.l.b16 %v4537
      %v4609 = vunpack.c.l.b16 %v4538
      %v4610 = vunpack.c.l.b16 %v4539
      %v4611 = vpack.c.b16 %v4596, %v4595
      %v4612 = vpack.c.b16 %v4598, %v4597
      %v4613 = vpack.c.b16 %v4600, %v4599
      %v4614 = vpack.c.b16 %v4602, %v4601
      %v4615 = vpack.c.b16 %v4604, %v4603
      %v4616 = vpack.c.b16 %v4606, %v4605
      %v4617 = vpack.c.b16 %v4608, %v4607
      %v4618 = vpack.c.b16 %v4610, %v4609
      %4627 = vmatprep.subr.bf16.mxu0 0
      %4628 = vmatpush1.bf16.msra.mxu0 %v4611
      %4629 = vmatprep.subr.bf16.mxu0 0
      %4630 = vmatpush1.bf16.msra.mxu0 %v4612
      %4631 = vmatprep.subr.bf16.mxu0 0
      %4632 = vmatpush1.bf16.msra.mxu0 %v4613
      %4633 = vmatprep.subr.bf16.mxu0 0
      %4634 = vmatpush1.bf16.msra.mxu0 %v4614
      %4635 = vmatprep.subr.bf16.mxu0 0
      %4636 = vmatpush1.bf16.msra.mxu0 %v4615
      %4637 = vmatprep.subr.bf16.mxu0 0
      %4638 = vmatpush1.bf16.msra.mxu0 %v4616
      %4639 = vmatprep.subr.bf16.mxu0 0
      %4640 = vmatpush1.bf16.msra.mxu0 %v4617
      %4641 = vmatprep.subr.bf16.mxu0 0
      %4642 = vmatpush1.bf16.msra.mxu0 %v4618
      %4643 = vmatprep.subr.bf16.mxu0 0
      %4644 = vmatpush1.bf16.msra.mxu0 0
      %4645 = vmatprep.subr.bf16.mxu0 0
      %4646 = vmatpush1.bf16.msra.mxu0 0
      %4647 = vmatprep.subr.bf16.mxu0 0
      %4648 = vmatpush1.bf16.msra.mxu0 0
      %4649 = vmatprep.subr.bf16.mxu0 0
      %4650 = vmatpush1.bf16.msra.mxu0 0
      %4651 = vmatprep.subr.bf16.mxu0 0
      %4652 = vmatpush1.bf16.msra.mxu0 0
      %4653 = vmatprep.subr.bf16.mxu0 0
      %4654 = vmatpush1.bf16.msra.mxu0 0
      %4655 = vmatprep.subr.bf16.mxu0 0
      %4656 = vmatpush1.bf16.msra.mxu0 0
      %4657 = vmatprep.subr.bf16.mxu0 0
      %4658 = vmatpush1.bf16.msra.mxu0 0
      %4659 = vmatprep.mubr.bf16.mxu0 0
      %4660 = vmatmul.mubr.bf16.gmra.mrb[0].mxu0 %v4567
      %v4661 = vpop.f32.mrb[0].mxu0
      %v4662 = vadd.f32 0.0, %v4661
      %v4663 = vpop.f32.mrb[0].mxu0
      %v4664 = vpop.f32.mrb[0].mxu0
      %v4665 = vadd.f32 0.0, %v4664
      %v4666 = vpop.f32.mrb[0].mxu0
      %4667 = vmatprep.mubr.bf16.mxu0 0
      %4668 = vmatmul.mubr.bf16.gmra.mrb[0].mxu0 %v4569
      %v4669 = vpop.f32.mrb[0].mxu0
      %v4670 = vadd.f32 0.0, %v4669
      %v4671 = vpop.f32.mrb[0].mxu0
      %v4672 = vpop.f32.mrb[0].mxu0
      %v4673 = vadd.f32 0.0, %v4672
      %v4674 = vpop.f32.mrb[0].mxu0
      %4675 = vmatprep.mubr.bf16.mxu0 0
      %4676 = vmatmul.mubr.bf16.gmra.mrb[0].mxu0 %v4571
      %v4677 = vpop.f32.mrb[0].mxu0
      %v4678 = vadd.f32 0.0, %v4677
      %v4679 = vpop.f32.mrb[0].mxu0
      %v4680 = vpop.f32.mrb[0].mxu0
      %v4681 = vadd.f32 0.0, %v4680
      %v4682 = vpop.f32.mrb[0].mxu0
      %4683 = vmatprep.mubr.bf16.mxu0 0
      %4684 = vmatmul.mubr.bf16.gmra.mrb[0].mxu0 %v4573
      %v4685 = vpop.f32.mrb[0].mxu0
      %v4686 = vadd.f32 0.0, %v4685
      %v4687 = vpop.f32.mrb[0].mxu0
      %v4688 = vpop.f32.mrb[0].mxu0
      %v4689 = vadd.f32 0.0, %v4688
      %v4690 = vpop.f32.mrb[0].mxu0
      %4691 = vmatprep.mubr.bf16.mxu0 0
      %4692 = vmatmul.mubr.bf16.gmra.mrb[0].mxu0 %v4572
      %v4693 = vpop.f32.mrb[0].mxu0
      %v4694 = vadd.f32 0.0, %v4693
      %v4695 = vpop.f32.mrb[0].mxu0
      %v4696 = vpop.f32.mrb[0].mxu0
      %v4697 = vpop.f32.mrb[0].mxu0
      %4698 = vdwg.mxu0
      %v4699 = vadd.f32 %v4504, %v4662
      %v4700 = vadd.f32 %v4505, %v4665
      %v4701 = vadd.f32 %v4506, %v4670
      %v4702 = vadd.f32 %v4507, %v4673
      %v4703 = vadd.f32 %v4508, %v4678
      %v4704 = vadd.f32 %v4509, %v4681
      %v4705 = vadd.f32 %v4510, %v4686
      %v4706 = vadd.f32 %v4511, %v4689
      %v4707 = vadd.f32 %v4512, %v4694
      %4708 = vst [vmem:[#allocation2] sm:$0xff] %v4699
      %4709 = vst [vmem:[#allocation2 + $0x8] sm:$0xff] %v4700
      %4710 = vst [vmem:[#allocation2 + $0x10] sm:$0xff] %v4701
      %4711 = vst [vmem:[#allocation2 + $0x18] sm:$0xff] %v4702
      %4712 = vst [vmem:[#allocation2 + $0x20] sm:$0xff] %v4703
      %4713 = vst [vmem:[#allocation2 + $0x28] sm:$0xff] %v4704
      %4714 = vst [vmem:[#allocation2 + $0x30] sm:$0xff] %v4705
      %4715 = vst [vmem:[#allocation2 + $0x38] sm:$0xff] %v4706
      %4716 = vst [vmem:[#allocation2 + $0x40] sm:$0xff] %v4707
      %v4717 = vld [vmem:[#allocation2] sm:$0xff]
      %v4718 = vld [vmem:[#allocation2 + $0x8] sm:$0xff]
      %v4719 = vld [vmem:[#allocation2 + $0x10] sm:$0xff]
      %v4720 = vld [vmem:[#allocation2 + $0x18] sm:$0xff]
      %v4721 = vld [vmem:[#allocation2 + $0x20] sm:$0xff]
      %v4722 = vld [vmem:[#allocation2 + $0x28] sm:$0xff]
      %v4723 = vld [vmem:[#allocation2 + $0x30] sm:$0xff]
      %v4724 = vld [vmem:[#allocation2 + $0x38] sm:$0xff]
      %v4725 = vld [vmem:[#allocation2 + $0x40] sm:$0xff]
      %v4726 = vld [vmem:[%s4] sm:$0x1]
      %v4728 = vlaneseq
      %v4729 = vshrl.u32 %v4728, 7
      %v4730 = vsub.s32 0, %v4729
      %v4731 = vrot.slane %v4726, %v4730
      %v4733 = vadd.f32 %v4717, %v4731
      %v4734 = vadd.f32 %v4718, %v4731
      %v4735 = vadd.f32 %v4719, %v4731
      %v4736 = vadd.f32 %v4720, %v4731
      %v4737 = vadd.f32 %v4721, %v4731
      %v4738 = vadd.f32 %v4722, %v4731
      %v4739 = vadd.f32 %v4723, %v4731
      %v4740 = vadd.f32 %v4724, %v4731
      %v4741 = vadd.f32 %v4725, %v4731
      %v4742 = vmax.f32 %v4733, 0.0
      %v4743 = vmax.f32 %v4734, 0.0
      %v4744 = vmax.f32 %v4735, 0.0
      %v4745 = vmax.f32 %v4736, 0.0
      %v4746 = vmax.f32 %v4737, 0.0
      %v4747 = vmax.f32 %v4738, 0.0
      %v4748 = vmax.f32 %v4739, 0.0
      %v4749 = vmax.f32 %v4740, 0.0
      %v4750 = vmax.f32 %v4741, 0.0
      %v4751 = vpack.c.bf16 %v4743, %v4742
      %v4752 = vpack.c.bf16 %v4745, %v4744
      %v4753 = vpack.c.bf16 %v4747, %v4746
      %v4754 = vpack.c.bf16 %v4749, %v4748
      %v4755 = vpack.c.bf16 %v4750, %v4750
      %v4761 = vunpack.c.l.b16 %v4751
      %v4762 = vunpack.c.h.b16 %v4751
      %v4763 = vunpack.c.l.b16 %v4752
      %v4764 = vunpack.c.h.b16 %v4752
      %v4765 = vunpack.c.l.b16 %v4753
      %v4766 = vunpack.c.h.b16 %v4753
      %v4767 = vunpack.c.l.b16 %v4754
      %v4768 = vunpack.c.h.b16 %v4754
      %v4769 = vunpack.c.l.b16 %v4755
      %v4770 = vpack.c.b16 %v4761, %v4761
      %v4771 = vpack.c.b16 %v4762, %v4762
      %v4772 = vpack.c.b16 %v4763, %v4763
      %v4773 = vpack.c.b16 %v4764, %v4764
      %v4774 = vpack.c.b16 %v4765, %v4765
      %v4775 = vpack.c.b16 %v4766, %v4766
      %v4776 = vpack.c.b16 %v4767, %v4767
      %v4777 = vpack.c.b16 %v4768, %v4768
      %v4778 = vpack.c.b16 %v4769, %v4769
      %4788 = vst [vmem:[%s278] sm:$0xf] %v4770
      %4789 = vst [vmem:[%s278 + $0x4] sm:$0xf] %v4771
      %4790 = vst [vmem:[%s278 + $0x8] sm:$0xf] %v4772
      %4791 = vst [vmem:[%s278 + $0xc] sm:$0xf] %v4773
      %4792 = vst [vmem:[%s278 + $0x10] sm:$0xf] %v4774
      %4793 = vst [vmem:[%s278 + $0x14] sm:$0xf] %v4775
      %4794 = vst [vmem:[%s278 + $0x18] sm:$0xf] %v4776
      %4795 = vst [vmem:[%s278 + $0x1c] sm:$0xf] %v4777
      %4796 = vst [vmem:[%s278 + $0x20] sm:$0xf] %v4778
      %p4797 = scmp.lt.s32.totalorder %s18, 1
      %s4798 = scalar_select %p4797, %s18, 1
      %s4799 = smul.addr %s4798, 9
      %s4800 = smul.addr %s4799, 4
      %s4801 = scalar_lea.vmem %s7, %s4800
      // Predicated region
      $region49: #{residual_block_forward.1} parent=47 // pred_check
        %p4802 = pneg %p188
      $region50: #{residual_block_forward.1} parent=47 // pred_check_branch
        %4804 = sbr.rel (%p4802) target = $region52
      $region51: #{residual_block_forward.1} parent=47 // pred_region
        _
      $region52: #{residual_block_forward.1} parent=47 // pred_fallthru
        _
    $region48: #{residual_block_forward.1} parent=5 // pred_fallthru
      _
    %p4805 = scmp.le.s32.totalorder 2, %s13
    // Predicated region
    $region53: #{residual_block_forward.1} parent=5 // pred_check
      %p4806 = pneg %p4805
    $region54: #{residual_block_forward.1} parent=5 // pred_check_branch
      %4808 = sbr.rel (%p4806) target = $region56
    $region55: #{residual_block_forward.1} parent=5 // pred_region
      %s4809 = ssub.s32 %s13, 2
      // Predicated region
      $region57: #{residual_block_forward.1} parent=55 // pred_check
        %p4810 = pneg %p194
      $region58: #{residual_block_forward.1} parent=55 // pred_check_branch
        %4812 = sbr.rel (%p4810) target = $region60
      $region59: #{residual_block_forward.1} parent=55 // pred_region
        %p4813 = scmp.lt.s32.totalorder %s19, 1
        %s4814 = scalar_select %p4813, %s19, 1
        %s4815 = smul.addr %s4814, 9
        %s4816 = smul.addr %s4815, 4
        %s4817 = scalar_lea.vmem %s7, %s4816
      $region60: #{residual_block_forward.1} parent=55 // pred_fallthru
        _
    $region56: #{residual_block_forward.1} parent=5 // pred_fallthru
      _
  $region6: #{residual_block_forward.1} parent=0 // loop_footer
    %s17 = sadd.s32 1, %s13
  $region7: #{residual_block_forward.1} parent=0 // loop_footer_branch
    %12 = sbr.rel target = $region3
  $region8: #{residual_block_forward.1} parent=0 // loop_exit
    _

</llo_original>
